<compile_context>
chip_gen: v6e
topology: v6e:2x2x1
jax: 0.10.0
libtpu: 0.0.40
codegen_flags: <defaults>
</compile_context>

<pallas_src>
import functools

import jax
import jax.numpy as jnp
from jax import lax
from jax.experimental import pallas as pl
from jax.experimental.pallas import tpu as pltpu


def _rcu_kernel(top_ref, mid_ref, bot_ref, w1_ref, b1_ref, w2_ref, b2_ref,
                o_ref, imcol_ref, acc_ref, *, tile_h, img_h, conv_dtype):
    """One (batch, row-tile) grid step.

    top_ref : (1, 2, W, C)        2 input rows above the tile (ignored at t == 0)
    mid_ref : (1, tile_h, W, C)   the tile's input rows
    bot_ref : (1, 2, W, C)        2 input rows below the tile (ignored at t == last)
    w*_ref  : (3, 3*C, C)         conv weights, HWIO flattened to (dh, dw*Cin + ci, co)
    b*_ref  : (1, C)              f32 biases
    o_ref   : (1, tile_h, W, C)   output rows of this tile
    imcol   : (tile_h+4, W, 3*C)  shared width-im2col scratch (conv_dtype)
    acc     : ((tile_h+2)*W, C)   f32 accumulator scratch
    """
    _, _, w_dim, c_dim = mid_ref.shape
    r1 = tile_h + 2                       # conv1 rows needed to cover conv2's halo
    t = pl.program_id(1)
    last_t = pl.num_programs(1) - 1

    def write_taps(r0, act):
        """Store one activation chunk (n, W, C) into im2col rows [r0, r0+n).

        Channel blocks: [0:C] = left tap (col-1), [C:2C] = centre, [2C:3C] = right tap.
        """
        n = act.shape[0]
        zcol = jnp.zeros((n, 1, c_dim), conv_dtype)
        imcol_ref[r0:r0 + n, :, c_dim:2 * c_dim] = act
        imcol_ref[r0:r0 + n, 0:1, 0:c_dim] = zcol
        imcol_ref[r0:r0 + n, w_dim - 1:w_dim, 2 * c_dim:3 * c_dim] = zcol
        if w_dim > 1:
            imcol_ref[r0:r0 + n, 1:w_dim, 0:c_dim] = act[:, 0:w_dim - 1, :]
            imcol_ref[r0:r0 + n, 0:w_dim - 1, 2 * c_dim:3 * c_dim] = act[:, 1:w_dim, :]

    def conv3x3(rows_out, w_ref, bias_v):
        """acc[0:rows_out*W] = 3x3 conv of im2col rows [0, rows_out+2) + bias.

        Three MXU matmuls (one per kernel row, K = 3C) fused into one sum per
        M-chunk; the accumulator is written once per chunk (no read-modify-write).
        """
        rows_per_chunk = min(rows_out, max(1, 512 // w_dim))
        for m0 in range(0, rows_out, rows_per_chunk):
            mc = min(rows_per_chunk, rows_out - m0)

            def mm(dh, m0=m0, mc=mc):
                lhs = imcol_ref[m0 + dh:m0 + dh + mc].reshape(mc * w_dim, 3 * c_dim)
                return jnp.dot(lhs, w_ref[dh], preferred_element_type=jnp.float32)

            acc_ref[m0 * w_dim:(m0 + mc) * w_dim, :] = mm(0) + mm(1) + mm(2) + bias_v

    # Biases loaded once (f32), reused by both convs.
    b1v = b1_ref[...]
    b2v = b2_ref[...]

    # ---- stage 1: relu(x) -> shared width-im2col scratch (tile rows + 2-row halos) ----
    top = jnp.where(t == 0, 0.0, top_ref[0])          # image rows < 0 are zero padding
    bot = jnp.where(t == last_t, 0.0, bot_ref[0])     # rows past the padded image
    write_taps(0, jnp.maximum(top, 0.0).astype(conv_dtype))
    write_taps(2, jnp.maximum(mid_ref[0], 0.0).astype(conv_dtype))
    write_taps(tile_h + 2, jnp.maximum(bot, 0.0).astype(conv_dtype))

    # ---- conv1 + b1 over tile_h + 2 rows (extra rows feed conv2's 1-row halo) ----
    conv3x3(r1, w1_ref, b1v)

    # ---- stage 2: relu(conv1) -> same im2col scratch. Rows outside the ORIGINAL
    #      image (top border, bottom border, ragged-H zero-pad rows) must act as
    #      conv2's zero padding, enforced with a per-row validity mask. ----
    c1 = acc_ref[0:r1 * w_dim, :].reshape(r1, w_dim, c_dim)
    img_row = (t * tile_h - 1) + lax.broadcasted_iota(jnp.int32, (r1, 1, 1), 0)
    valid = jnp.logical_and(img_row >= 0, img_row < img_h)
    c1 = jnp.where(valid, jnp.maximum(c1, 0.0), 0.0).astype(conv_dtype)
    write_taps(0, c1)

    # ---- conv2 + b2 over the tile's output rows ----
    conv3x3(tile_h, w2_ref, b2v)

    # ---- residual add with the un-activated input rows (kept in f32, exact) ----
    o_ref[0] = (acc_ref[0:tile_h * w_dim, :].reshape(tile_h, w_dim, c_dim)
                + mid_ref[0].astype(jnp.float32)).astype(o_ref.dtype)


def _choose_tile_h(H, W, C, B, in_bytes, conv_bytes, max_tile_h, budget_bytes):
    """Pick an even row-tile height whose per-step working set fits the VMEM budget.

    Returns (tile_h, padded_H, estimated_working_set_bytes). padded_H is a multiple
    of tile_h (the wrapper zero-pads ragged heights; the kernel masks at row img_h).
    """
    def est(th):
        r_in, r1 = th + 4, th + 2
        io = 2 * (r_in * W * C * in_bytes + th * W * C * in_bytes)   # dbl-buffered in/out
        wgt = 2 * 9 * C * C * conv_bytes + 2 * C * 4
        imcol = r_in * W * 3 * C * conv_bytes
        acc = r1 * W * C * 4
        m = min(512, r1 * W)
        temps = 3 * m * C * 4 + 2 * m * 3 * C * conv_bytes           # dot partials + lhs
        return io + wgt + imcol + acc + temps

    cand = max(2, (min(max_tile_h, H + (H % 2)) // 2) * 2)
    while cand > 2 and est(cand) > budget_bytes:
        cand -= 2
    num = -(-H // cand)
    if B * num < 2 and H > 2:
        num = 2                      # keep >=2 grid steps for 2-TensorCore (v7x) chips
    th = ((-(-H // num)) + 1) // 2 * 2
    return th, num * th, est(th)


def residual_conv_unit_nhwc(x_nhwc, w1_hwio, b1, w2_hwio, b2, *,
                            max_tile_h=32, conv_dtype=jnp.bfloat16,
                            vmem_budget_bytes=32 * 2 ** 20):
    """NHWC entry point (preferred: no layout transposes around the kernel)."""
    B, H, W, C = x_nhwc.shape
    in_bytes = x_nhwc.dtype.itemsize
    cv_bytes = jnp.dtype(conv_dtype).itemsize
    tile_h, Hp, est = _choose_tile_h(H, W, C, B, in_bytes, cv_bytes,
                                     max_tile_h, vmem_budget_bytes)
    num_tiles = Hp // tile_h
    half = tile_h // 2

    # Ragged heights: zero-pad the bottom (kernel's validity mask restores exact
    # zero-padding semantics at the true image boundary; extra rows are sliced off).
    xh = x_nhwc if Hp == H else jnp.pad(x_nhwc, ((0, 0), (0, Hp - H), (0, 0), (0, 0)))

    # Weights: HWIO (3,3,Cin,Cout) -> (dh, dw*Cin + ci, co); cast once for the MXU.
    w1r = w1_hwio.reshape(3, 3 * C, C).astype(conv_dtype)
    w2r = w2_hwio.reshape(3, 3 * C, C).astype(conv_dtype)
    b1r = b1.reshape(1, C).astype(jnp.float32)
    b2r = b2.reshape(1, C).astype(jnp.float32)

    # VMEM limit from the estimated working set, with headroom but capped safely
    # below v7x's 64 MiB physical VMEM.
    vmem_limit = int(min(max(1.5 * est, 32 * 2 ** 20), 48 * 2 ** 20))

    kernel = functools.partial(_rcu_kernel, tile_h=tile_h, img_h=H,
                               conv_dtype=conv_dtype)

    # Halo index maps on a 2-row-blocked view of xh; clamped at the borders
    # (the kernel substitutes zeros there, so the clamped data is never used).
    def top_map(b, t):
        return (b, jnp.maximum(t * half - 1, 0), 0, 0)

    def bot_map(b, t):
        return (b, jnp.minimum((t + 1) * half, Hp // 2 - 1), 0, 0)

    out = pl.pallas_call(
        kernel,
        out_shape=jax.ShapeDtypeStruct((B, Hp, W, C), x_nhwc.dtype),
        grid_spec=pltpu.PrefetchScalarGridSpec(
            num_scalar_prefetch=0,
            grid=(B, num_tiles),
            in_specs=[
                pl.BlockSpec((1, 2, W, C), top_map),                       # top halo
                pl.BlockSpec((1, tile_h, W, C), lambda b, t: (b, t, 0, 0)),  # tile rows
                pl.BlockSpec((1, 2, W, C), bot_map),                       # bottom halo
                pl.BlockSpec((3, 3 * C, C), lambda b, t: (0, 0, 0)),
                pl.BlockSpec((1, C), lambda b, t: (0, 0)),
                pl.BlockSpec((3, 3 * C, C), lambda b, t: (0, 0, 0)),
                pl.BlockSpec((1, C), lambda b, t: (0, 0)),
            ],
            out_specs=pl.BlockSpec((1, tile_h, W, C), lambda b, t: (b, t, 0, 0)),
            scratch_shapes=[
                pltpu.VMEM((tile_h + 4, W, 3 * C), conv_dtype),
                pltpu.VMEM(((tile_h + 2) * W, C), jnp.float32),
            ],
        ),
        compiler_params=pltpu.CompilerParams(
            dimension_semantics=("parallel", "parallel"),
            vmem_limit_bytes=vmem_limit,
        ),
    )(xh, xh, xh, w1r, b1r, w2r, b2r)

    return out if Hp == H else out[:, :H]


@functools.partial(jax.jit, static_argnames=("max_tile_h",))
def residual_conv_unit(x_nchw, w1_oihw, b1, w2_oihw, b2, *, max_tile_h=32):
    """Wrapper matching the PyTorch NCHW convention (bn=False, activation=ReLU).

    The NCHW<->NHWC transposes exist only for PyTorch API parity; in an NHWC model
    call residual_conv_unit_nhwc directly and skip them.
    """
    x_nhwc = jnp.transpose(x_nchw, (0, 2, 3, 1))
    w1_hwio = jnp.transpose(w1_oihw, (2, 3, 1, 0))   # (Cout,Cin,3,3) -> (3,3,Cin,Cout)
    w2_hwio = jnp.transpose(w2_oihw, (2, 3, 1, 0))
    out_nhwc = residual_conv_unit_nhwc(x_nhwc, w1_hwio, b1, w2_hwio, b2,
                                       max_tile_h=max_tile_h)
    return jnp.transpose(out_nhwc, (0, 3, 1, 2))


def _reference_nchw(x_nchw, w1_oihw, b1, w2_oihw, b2, conv_dtype=jnp.float32):
    """Pure-JAX reference mirroring the PyTorch forward (bn=False, ReLU).

    conv_dtype=bfloat16 mirrors the kernel's bf16 MXU operands (f32 accumulation).
    """
    dn = ("NCHW", "OIHW", "NCHW")

    def conv(inp, w, b):
        out = lax.conv_general_dilated(
            inp.astype(conv_dtype).astype(jnp.float32),
            w.astype(conv_dtype).astype(jnp.float32),
            (1, 1), ((1, 1), (1, 1)), dimension_numbers=dn)
        return out + b[None, :, None, None]

    out = jnp.maximum(x_nchw, 0.0)
    out = conv(out, w1_oihw, b1)
    out = jnp.maximum(out, 0.0)
    out = conv(out, w2_oihw, b2)
    return out + x_nchw


if __name__ == "__main__":
    # Small deterministic example: batch=2, features=4, spatial=16x16.
    B, C, H, W = 2, 4, 16, 16
    key = jax.random.PRNGKey(0)
    kx, kw1, kb1, kw2, kb2 = jax.random.split(key, 5)

    x = jax.random.normal(kx, (B, C, H, W), dtype=jnp.float32)
    # Conv2d(features, features, 3, padding=1, bias=True) parameter shapes.
    w1 = jax.random.normal(kw1, (C, C, 3, 3), dtype=jnp.float32) * 0.1
    b1 = jax.random.normal(kb1, (C,), dtype=jnp.float32) * 0.1
    w2 = jax.random.normal(kw2, (C, C, 3, 3), dtype=jnp.float32) * 0.1
    b2 = jax.random.normal(kb2, (C,), dtype=jnp.float32) * 0.1

    # Case 1: default tiling (single row tile per image, grid parallel over batch).
    out = jax.block_until_ready(residual_conv_unit(x, w1, b1, w2, b2))
    ref_bf16 = _reference_nchw(x, w1, b1, w2, b2, conv_dtype=jnp.bfloat16)
    ref_f32 = _reference_nchw(x, w1, b1, w2, b2, conv_dtype=jnp.float32)
    assert out.shape == (B, C, H, W)
    # Kernel uses bf16 MXU operands with f32 accumulation: tight vs. the bf16-mirrored
    # reference, loose sanity check vs. the pure-f32 reference.
    assert jnp.max(jnp.abs(out - ref_bf16)) < 2e-2, "mismatch vs bf16-mirrored reference"
    assert jnp.max(jnp.abs(out - ref_f32)) < 5e-2, "mismatch vs f32 reference"

    # Case 2: multi-tile halo path + ragged height (H=14 zero-padded to 16, masked).
    x2 = jax.random.normal(jax.random.PRNGKey(1), (1, C, 14, W), dtype=jnp.float32)
    out2 = jax.block_until_ready(residual_conv_unit(x2, w1, b1, w2, b2, max_tile_h=8))
    ref2 = _reference_nchw(x2, w1, b1, w2, b2, conv_dtype=jnp.bfloat16)
    assert out2.shape == (1, C, 14, W)
    assert jnp.max(jnp.abs(out2 - ref2)) < 2e-2, "mismatch on ragged-H / multi-tile case"

    print("KERNEL_OK")
</pallas_src>

<mosaic_0001>
module attributes {stable_mosaic.version = 11 : i64} {
  func.func @_rcu_kernel(%arg0: i32, %arg1: i32, %arg2: memref<1x2x16x4xf32, #tpu.memory_space<vmem>>, %arg3: memref<1x16x16x4xf32, #tpu.memory_space<vmem>>, %arg4: memref<1x2x16x4xf32, #tpu.memory_space<vmem>>, %arg5: memref<3x12x4xbf16, #tpu.memory_space<vmem>>, %arg6: memref<1x4xf32, #tpu.memory_space<vmem>>, %arg7: memref<3x12x4xbf16, #tpu.memory_space<vmem>>, %arg8: memref<1x4xf32, #tpu.memory_space<vmem>>, %arg9: memref<1x16x16x4xf32, #tpu.memory_space<vmem>>, %arg10: memref<20x16x12xbf16, #tpu.memory_space<vmem>>, %arg11: memref<288x4xf32, #tpu.memory_space<vmem>>) attributes {dimension_semantics = [#tpu.dimension_semantics<parallel>, #tpu.dimension_semantics<parallel>], iteration_bounds = array<i64: 2, 1>, scalar_prefetch = 0 : i64, scratch_operands = 2 : i64, tpu.core_type = #tpu.core_type<tc>, window_params = [{transform_indices = @transform_0, window_bounds = array<i64: 1, 2, 16, 4>}, {transform_indices = @transform_1, window_bounds = array<i64: 1, 16, 16, 4>}, {transform_indices = @transform_2, window_bounds = array<i64: 1, 2, 16, 4>}, {pipeline_mode = #tpu.pipeline_mode<synchronous>, transform_indices = @transform_3, window_bounds = array<i64: 3, 12, 4>}, {pipeline_mode = #tpu.pipeline_mode<synchronous>, transform_indices = @transform_4, window_bounds = array<i64: 1, 4>}, {pipeline_mode = #tpu.pipeline_mode<synchronous>, transform_indices = @transform_5, window_bounds = array<i64: 3, 12, 4>}, {pipeline_mode = #tpu.pipeline_mode<synchronous>, transform_indices = @transform_6, window_bounds = array<i64: 1, 4>}, {transform_indices = @transform_7, window_bounds = array<i64: 1, 16, 16, 4>}]} {
    %c0 = arith.constant 0 : index
    %c0_0 = arith.constant 0 : index
    %0 = vector.load %arg6[%c0, %c0_0] : memref<1x4xf32, #tpu.memory_space<vmem>>, vector<1x4xf32>
    %c0_1 = arith.constant 0 : index
    %c0_2 = arith.constant 0 : index
    %1 = vector.load %arg8[%c0_1, %c0_2] : memref<1x4xf32, #tpu.memory_space<vmem>>, vector<1x4xf32>
    %c0_i32 = arith.constant 0 : i32
    %2 = arith.cmpi eq, %arg1, %c0_i32 : i32
    %c0_3 = arith.constant 0 : index
    %c0_4 = arith.constant 0 : index
    %c0_5 = arith.constant 0 : index
    %c0_6 = arith.constant 0 : index
    %3 = vector.load %arg2[%c0_3, %c0_4, %c0_5, %c0_6] : memref<1x2x16x4xf32, #tpu.memory_space<vmem>>, vector<1x2x16x4xf32>
    %4 = vector.shape_cast %3 : vector<1x2x16x4xf32> to vector<2x16x4xf32>
    %cst = arith.constant 0.000000e+00 : f32
    %5 = vector.broadcast %cst : f32 to vector<2x16x4xf32>
    %6 = arith.select %2, %5, %4 : vector<2x16x4xf32>
    %c0_i32_7 = arith.constant 0 : i32
    %7 = arith.cmpi eq, %arg1, %c0_i32_7 : i32
    %c0_8 = arith.constant 0 : index
    %c0_9 = arith.constant 0 : index
    %c0_10 = arith.constant 0 : index
    %c0_11 = arith.constant 0 : index
    %8 = vector.load %arg4[%c0_8, %c0_9, %c0_10, %c0_11] : memref<1x2x16x4xf32, #tpu.memory_space<vmem>>, vector<1x2x16x4xf32>
    %9 = vector.shape_cast %8 : vector<1x2x16x4xf32> to vector<2x16x4xf32>
    %cst_12 = arith.constant 0.000000e+00 : f32
    %10 = vector.broadcast %cst_12 : f32 to vector<2x16x4xf32>
    %11 = arith.select %7, %10, %9 : vector<2x16x4xf32>
    %cst_13 = arith.constant 0.000000e+00 : f32
    %12 = vector.broadcast %cst_13 : f32 to vector<2x16x4xf32>
    %13 = arith.maximumf %6, %12 : vector<2x16x4xf32>
    %14 = arith.truncf %13 : vector<2x16x4xf32> to vector<2x16x4xbf16>
    %cst_14 = arith.constant 0.000000e+00 : bf16
    %15 = vector.broadcast %cst_14 : bf16 to vector<2x1x4xbf16>
    %c0_15 = arith.constant 0 : index
    %c0_16 = arith.constant 0 : index
    %c4 = arith.constant 4 : index
    %16 = vector.load %arg10[%c0_15, %c0_16, %c4] : memref<20x16x12xbf16, #tpu.memory_space<vmem>>, vector<2x16x4xbf16>
    tpu.vector_store %arg10[%c0_15, %c0_16, %c4], %14 {strides = array<i32>} : memref<20x16x12xbf16, #tpu.memory_space<vmem>>, vector<2x16x4xbf16>,
    %c0_17 = arith.constant 0 : index
    %c0_18 = arith.constant 0 : index
    %c0_19 = arith.constant 0 : index
    %17 = vector.load %arg10[%c0_17, %c0_18, %c0_19] : memref<20x16x12xbf16, #tpu.memory_space<vmem>>, vector<2x1x4xbf16>
    tpu.vector_store %arg10[%c0_17, %c0_18, %c0_19], %15 {strides = array<i32>} : memref<20x16x12xbf16, #tpu.memory_space<vmem>>, vector<2x1x4xbf16>,
    %c0_20 = arith.constant 0 : index
    %c15 = arith.constant 15 : index
    %c8 = arith.constant 8 : index
    %18 = vector.load %arg10[%c0_20, %c15, %c8] : memref<20x16x12xbf16, #tpu.memory_space<vmem>>, vector<2x1x4xbf16>
    tpu.vector_store %arg10[%c0_20, %c15, %c8], %15 {strides = array<i32>} : memref<20x16x12xbf16, #tpu.memory_space<vmem>>, vector<2x1x4xbf16>,
    %19 = vector.extract_strided_slice %14 {offsets = [0, 0, 0], sizes = [2, 15, 4], strides = [1, 1, 1]} : vector<2x16x4xbf16> to vector<2x15x4xbf16>
    %c0_21 = arith.constant 0 : index
    %c1 = arith.constant 1 : index
    %c0_22 = arith.constant 0 : index
    %20 = vector.load %arg10[%c0_21, %c1, %c0_22] : memref<20x16x12xbf16, #tpu.memory_space<vmem>>, vector<2x15x4xbf16>
    tpu.vector_store %arg10[%c0_21, %c1, %c0_22], %19 {strides = array<i32>} : memref<20x16x12xbf16, #tpu.memory_space<vmem>>, vector<2x15x4xbf16>,
    %21 = vector.extract_strided_slice %14 {offsets = [0, 1, 0], sizes = [2, 15, 4], strides = [1, 1, 1]} : vector<2x16x4xbf16> to vector<2x15x4xbf16>
    %c0_23 = arith.constant 0 : index
    %c0_24 = arith.constant 0 : index
    %c8_25 = arith.constant 8 : index
    %22 = vector.load %arg10[%c0_23, %c0_24, %c8_25] : memref<20x16x12xbf16, #tpu.memory_space<vmem>>, vector<2x15x4xbf16>
    tpu.vector_store %arg10[%c0_23, %c0_24, %c8_25], %21 {strides = array<i32>} : memref<20x16x12xbf16, #tpu.memory_space<vmem>>, vector<2x15x4xbf16>,
    %c0_26 = arith.constant 0 : index
    %c0_27 = arith.constant 0 : index
    %c0_28 = arith.constant 0 : index
    %c0_29 = arith.constant 0 : index
    %23 = vector.load %arg3[%c0_26, %c0_27, %c0_28, %c0_29] : memref<1x16x16x4xf32, #tpu.memory_space<vmem>>, vector<1x16x16x4xf32>
    %24 = vector.shape_cast %23 : vector<1x16x16x4xf32> to vector<16x16x4xf32>
    %cst_30 = arith.constant 0.000000e+00 : f32
    %25 = vector.broadcast %cst_30 : f32 to vector<16x16x4xf32>
    %26 = arith.maximumf %24, %25 : vector<16x16x4xf32>
    %27 = arith.truncf %26 : vector<16x16x4xf32> to vector<16x16x4xbf16>
    %cst_31 = arith.constant 0.000000e+00 : bf16
    %28 = vector.broadcast %cst_31 : bf16 to vector<16x1x4xbf16>
    %c2 = arith.constant 2 : index
    %c0_32 = arith.constant 0 : index
    %c4_33 = arith.constant 4 : index
    %29 = vector.load %arg10[%c2, %c0_32, %c4_33] : memref<20x16x12xbf16, #tpu.memory_space<vmem>>, vector<16x16x4xbf16>
    tpu.vector_store %arg10[%c2, %c0_32, %c4_33], %27 {strides = array<i32>} : memref<20x16x12xbf16, #tpu.memory_space<vmem>>, vector<16x16x4xbf16>,
    %c2_34 = arith.constant 2 : index
    %c0_35 = arith.constant 0 : index
    %c0_36 = arith.constant 0 : index
    %30 = vector.load %arg10[%c2_34, %c0_35, %c0_36] : memref<20x16x12xbf16, #tpu.memory_space<vmem>>, vector<16x1x4xbf16>
    tpu.vector_store %arg10[%c2_34, %c0_35, %c0_36], %28 {strides = array<i32>} : memref<20x16x12xbf16, #tpu.memory_space<vmem>>, vector<16x1x4xbf16>,
    %c2_37 = arith.constant 2 : index
    %c15_38 = arith.constant 15 : index
    %c8_39 = arith.constant 8 : index
    %31 = vector.load %arg10[%c2_37, %c15_38, %c8_39] : memref<20x16x12xbf16, #tpu.memory_space<vmem>>, vector<16x1x4xbf16>
    tpu.vector_store %arg10[%c2_37, %c15_38, %c8_39], %28 {strides = array<i32>} : memref<20x16x12xbf16, #tpu.memory_space<vmem>>, vector<16x1x4xbf16>,
    %32 = vector.extract_strided_slice %27 {offsets = [0, 0, 0], sizes = [16, 15, 4], strides = [1, 1, 1]} : vector<16x16x4xbf16> to vector<16x15x4xbf16>
    %c2_40 = arith.constant 2 : index
    %c1_41 = arith.constant 1 : index
    %c0_42 = arith.constant 0 : index
    %33 = vector.load %arg10[%c2_40, %c1_41, %c0_42] : memref<20x16x12xbf16, #tpu.memory_space<vmem>>, vector<16x15x4xbf16>
    tpu.vector_store %arg10[%c2_40, %c1_41, %c0_42], %32 {strides = array<i32>} : memref<20x16x12xbf16, #tpu.memory_space<vmem>>, vector<16x15x4xbf16>,
    %34 = vector.extract_strided_slice %27 {offsets = [0, 1, 0], sizes = [16, 15, 4], strides = [1, 1, 1]} : vector<16x16x4xbf16> to vector<16x15x4xbf16>
    %c2_43 = arith.constant 2 : index
    %c0_44 = arith.constant 0 : index
    %c8_45 = arith.constant 8 : index
    %35 = vector.load %arg10[%c2_43, %c0_44, %c8_45] : memref<20x16x12xbf16, #tpu.memory_space<vmem>>, vector<16x15x4xbf16>
    tpu.vector_store %arg10[%c2_43, %c0_44, %c8_45], %34 {strides = array<i32>} : memref<20x16x12xbf16, #tpu.memory_space<vmem>>, vector<16x15x4xbf16>,
    %cst_46 = arith.constant 0.000000e+00 : f32
    %36 = vector.broadcast %cst_46 : f32 to vector<2x16x4xf32>
    %37 = arith.maximumf %11, %36 : vector<2x16x4xf32>
    %38 = arith.truncf %37 : vector<2x16x4xf32> to vector<2x16x4xbf16>
    %cst_47 = arith.constant 0.000000e+00 : bf16
    %39 = vector.broadcast %cst_47 : bf16 to vector<2x1x4xbf16>
    %c18 = arith.constant 18 : index
    %c0_48 = arith.constant 0 : index
    %c4_49 = arith.constant 4 : index
    %40 = vector.load %arg10[%c18, %c0_48, %c4_49] : memref<20x16x12xbf16, #tpu.memory_space<vmem>>, vector<2x16x4xbf16>
    tpu.vector_store %arg10[%c18, %c0_48, %c4_49], %38 {strides = array<i32>} : memref<20x16x12xbf16, #tpu.memory_space<vmem>>, vector<2x16x4xbf16>,
    %c18_50 = arith.constant 18 : index
    %c0_51 = arith.constant 0 : index
    %c0_52 = arith.constant 0 : index
    %41 = vector.load %arg10[%c18_50, %c0_51, %c0_52] : memref<20x16x12xbf16, #tpu.memory_space<vmem>>, vector<2x1x4xbf16>
    tpu.vector_store %arg10[%c18_50, %c0_51, %c0_52], %39 {strides = array<i32>} : memref<20x16x12xbf16, #tpu.memory_space<vmem>>, vector<2x1x4xbf16>,
    %c18_53 = arith.constant 18 : index
    %c15_54 = arith.constant 15 : index
    %c8_55 = arith.constant 8 : index
    %42 = vector.load %arg10[%c18_53, %c15_54, %c8_55] : memref<20x16x12xbf16, #tpu.memory_space<vmem>>, vector<2x1x4xbf16>
    tpu.vector_store %arg10[%c18_53, %c15_54, %c8_55], %39 {strides = array<i32>} : memref<20x16x12xbf16, #tpu.memory_space<vmem>>, vector<2x1x4xbf16>,
    %43 = vector.extract_strided_slice %38 {offsets = [0, 0, 0], sizes = [2, 15, 4], strides = [1, 1, 1]} : vector<2x16x4xbf16> to vector<2x15x4xbf16>
    %c18_56 = arith.constant 18 : index
    %c1_57 = arith.constant 1 : index
    %c0_58 = arith.constant 0 : index
    %44 = vector.load %arg10[%c18_56, %c1_57, %c0_58] : memref<20x16x12xbf16, #tpu.memory_space<vmem>>, vector<2x15x4xbf16>
    tpu.vector_store %arg10[%c18_56, %c1_57, %c0_58], %43 {strides = array<i32>} : memref<20x16x12xbf16, #tpu.memory_space<vmem>>, vector<2x15x4xbf16>,
    %45 = vector.extract_strided_slice %38 {offsets = [0, 1, 0], sizes = [2, 15, 4], strides = [1, 1, 1]} : vector<2x16x4xbf16> to vector<2x15x4xbf16>
    %c18_59 = arith.constant 18 : index
    %c0_60 = arith.constant 0 : index
    %c8_61 = arith.constant 8 : index
    %46 = vector.load %arg10[%c18_59, %c0_60, %c8_61] : memref<20x16x12xbf16, #tpu.memory_space<vmem>>, vector<2x15x4xbf16>
    tpu.vector_store %arg10[%c18_59, %c0_60, %c8_61], %45 {strides = array<i32>} : memref<20x16x12xbf16, #tpu.memory_space<vmem>>, vector<2x15x4xbf16>,
    %c0_62 = arith.constant 0 : index
    %c0_63 = arith.constant 0 : index
    %c0_64 = arith.constant 0 : index
    %47 = vector.load %arg10[%c0_62, %c0_63, %c0_64] : memref<20x16x12xbf16, #tpu.memory_space<vmem>>, vector<18x16x12xbf16>
    %48 = vector.shape_cast %47 : vector<18x16x12xbf16> to vector<288x12xbf16>
    %c0_65 = arith.constant 0 : index
    %c0_66 = arith.constant 0 : index
    %c0_67 = arith.constant 0 : index
    %49 = vector.load %arg5[%c0_65, %c0_66, %c0_67] : memref<3x12x4xbf16, #tpu.memory_space<vmem>>, vector<1x12x4xbf16>
    %50 = vector.shape_cast %49 : vector<1x12x4xbf16> to vector<12x4xbf16>
    %cst_68 = arith.constant dense<0.000000e+00> : vector<288x4xf32>
    %51 = tpu.matmul %48, %50, %cst_68 {dimension_numbers = #tpu.dot_dimension_numbers<[1], [0], [0], [1], [0, 0, 1, 1], [], []>} : vector<288x12xbf16>, vector<12x4xbf16>, vector<288x4xf32> -> vector<288x4xf32>
    %c1_69 = arith.constant 1 : index
    %c0_70 = arith.constant 0 : index
    %c0_71 = arith.constant 0 : index
    %52 = vector.load %arg10[%c1_69, %c0_70, %c0_71] : memref<20x16x12xbf16, #tpu.memory_space<vmem>>, vector<18x16x12xbf16>
    %53 = vector.shape_cast %52 : vector<18x16x12xbf16> to vector<288x12xbf16>
    %c1_72 = arith.constant 1 : index
    %c0_73 = arith.constant 0 : index
    %c0_74 = arith.constant 0 : index
    %54 = vector.load %arg5[%c1_72, %c0_73, %c0_74] : memref<3x12x4xbf16, #tpu.memory_space<vmem>>, vector<1x12x4xbf16>
    %55 = vector.shape_cast %54 : vector<1x12x4xbf16> to vector<12x4xbf16>
    %cst_75 = arith.constant dense<0.000000e+00> : vector<288x4xf32>
    %56 = tpu.matmul %53, %55, %cst_75 {dimension_numbers = #tpu.dot_dimension_numbers<[1], [0], [0], [1], [0, 0, 1, 1], [], []>} : vector<288x12xbf16>, vector<12x4xbf16>, vector<288x4xf32> -> vector<288x4xf32>
    %57 = arith.addf %51, %56 : vector<288x4xf32>
    %c2_76 = arith.constant 2 : index
    %c0_77 = arith.constant 0 : index
    %c0_78 = arith.constant 0 : index
    %58 = vector.load %arg10[%c2_76, %c0_77, %c0_78] : memref<20x16x12xbf16, #tpu.memory_space<vmem>>, vector<18x16x12xbf16>
    %59 = vector.shape_cast %58 : vector<18x16x12xbf16> to vector<288x12xbf16>
    %c2_79 = arith.constant 2 : index
    %c0_80 = arith.constant 0 : index
    %c0_81 = arith.constant 0 : index
    %60 = vector.load %arg5[%c2_79, %c0_80, %c0_81] : memref<3x12x4xbf16, #tpu.memory_space<vmem>>, vector<1x12x4xbf16>
    %61 = vector.shape_cast %60 : vector<1x12x4xbf16> to vector<12x4xbf16>
    %cst_82 = arith.constant dense<0.000000e+00> : vector<288x4xf32>
    %62 = tpu.matmul %59, %61, %cst_82 {dimension_numbers = #tpu.dot_dimension_numbers<[1], [0], [0], [1], [0, 0, 1, 1], [], []>} : vector<288x12xbf16>, vector<12x4xbf16>, vector<288x4xf32> -> vector<288x4xf32>
    %63 = arith.addf %57, %62 : vector<288x4xf32>
    %64 = vector.broadcast %0 : vector<1x4xf32> to vector<288x4xf32>
    %65 = arith.addf %63, %64 : vector<288x4xf32>
    %c0_83 = arith.constant 0 : index
    %c0_84 = arith.constant 0 : index
    %66 = vector.load %arg11[%c0_83, %c0_84] : memref<288x4xf32, #tpu.memory_space<vmem>>, vector<288x4xf32>
    tpu.vector_store %arg11[%c0_83, %c0_84], %65 {strides = array<i32>} : memref<288x4xf32, #tpu.memory_space<vmem>>, vector<288x4xf32>,
    %c0_85 = arith.constant 0 : index
    %c0_86 = arith.constant 0 : index
    %67 = vector.load %arg11[%c0_85, %c0_86] : memref<288x4xf32, #tpu.memory_space<vmem>>, vector<288x4xf32>
    %68 = vector.shape_cast %67 : vector<288x4xf32> to vector<18x16x4xf32>
    %c16_i32 = arith.constant 16 : i32
    %69 = arith.muli %arg1, %c16_i32 : i32
    %c1_i32 = arith.constant 1 : i32
    %70 = arith.subi %69, %c1_i32 : i32
    %71 = tpu.iota {dimensions = array<i32: 0>} : vector<18x1x1xi32>
    %72 = vector.broadcast %70 : i32 to vector<18x1x1xi32>
    %73 = arith.addi %72, %71 : vector<18x1x1xi32>
    %c0_i32_87 = arith.constant 0 : i32
    %74 = vector.broadcast %c0_i32_87 : i32 to vector<18x1x1xi32>
    %75 = arith.cmpi sge, %73, %74 : vector<18x1x1xi32>
    %c16_i32_88 = arith.constant 16 : i32
    %76 = vector.broadcast %c16_i32_88 : i32 to vector<18x1x1xi32>
    %77 = arith.cmpi slt, %73, %76 : vector<18x1x1xi32>
    %78 = arith.andi %75, %77 : vector<18x1x1xi1>
    %cst_89 = arith.constant 0.000000e+00 : f32
    %79 = vector.broadcast %cst_89 : f32 to vector<18x16x4xf32>
    %80 = arith.maximumf %68, %79 : vector<18x16x4xf32>
    %cst_90 = arith.constant 0.000000e+00 : f32
    %81 = vector.shape_cast %78 : vector<18x1x1xi1> to vector<18x1x1xi1>
    %82 = vector.broadcast %81 : vector<18x1x1xi1> to vector<18x16x4xi1>
    %83 = vector.broadcast %cst_90 : f32 to vector<18x16x4xf32>
    %84 = arith.select %82, %80, %83 : vector<18x16x4xi1>, vector<18x16x4xf32>
    %85 = arith.truncf %84 : vector<18x16x4xf32> to vector<18x16x4xbf16>
    %cst_91 = arith.constant 0.000000e+00 : bf16
    %86 = vector.broadcast %cst_91 : bf16 to vector<18x1x4xbf16>
    %c0_92 = arith.constant 0 : index
    %c0_93 = arith.constant 0 : index
    %c4_94 = arith.constant 4 : index
    %87 = vector.load %arg10[%c0_92, %c0_93, %c4_94] : memref<20x16x12xbf16, #tpu.memory_space<vmem>>, vector<18x16x4xbf16>
    tpu.vector_store %arg10[%c0_92, %c0_93, %c4_94], %85 {strides = array<i32>} : memref<20x16x12xbf16, #tpu.memory_space<vmem>>, vector<18x16x4xbf16>,
    %c0_95 = arith.constant 0 : index
    %c0_96 = arith.constant 0 : index
    %c0_97 = arith.constant 0 : index
    %88 = vector.load %arg10[%c0_95, %c0_96, %c0_97] : memref<20x16x12xbf16, #tpu.memory_space<vmem>>, vector<18x1x4xbf16>
    tpu.vector_store %arg10[%c0_95, %c0_96, %c0_97], %86 {strides = array<i32>} : memref<20x16x12xbf16, #tpu.memory_space<vmem>>, vector<18x1x4xbf16>,
    %c0_98 = arith.constant 0 : index
    %c15_99 = arith.constant 15 : index
    %c8_100 = arith.constant 8 : index
    %89 = vector.load %arg10[%c0_98, %c15_99, %c8_100] : memref<20x16x12xbf16, #tpu.memory_space<vmem>>, vector<18x1x4xbf16>
    tpu.vector_store %arg10[%c0_98, %c15_99, %c8_100], %86 {strides = array<i32>} : memref<20x16x12xbf16, #tpu.memory_space<vmem>>, vector<18x1x4xbf16>,
    %90 = vector.extract_strided_slice %85 {offsets = [0, 0, 0], sizes = [18, 15, 4], strides = [1, 1, 1]} : vector<18x16x4xbf16> to vector<18x15x4xbf16>
    %c0_101 = arith.constant 0 : index
    %c1_102 = arith.constant 1 : index
    %c0_103 = arith.constant 0 : index
    %91 = vector.load %arg10[%c0_101, %c1_102, %c0_103] : memref<20x16x12xbf16, #tpu.memory_space<vmem>>, vector<18x15x4xbf16>
    tpu.vector_store %arg10[%c0_101, %c1_102, %c0_103], %90 {strides = array<i32>} : memref<20x16x12xbf16, #tpu.memory_space<vmem>>, vector<18x15x4xbf16>,
    %92 = vector.extract_strided_slice %85 {offsets = [0, 1, 0], sizes = [18, 15, 4], strides = [1, 1, 1]} : vector<18x16x4xbf16> to vector<18x15x4xbf16>
    %c0_104 = arith.constant 0 : index
    %c0_105 = arith.constant 0 : index
    %c8_106 = arith.constant 8 : index
    %93 = vector.load %arg10[%c0_104, %c0_105, %c8_106] : memref<20x16x12xbf16, #tpu.memory_space<vmem>>, vector<18x15x4xbf16>
    tpu.vector_store %arg10[%c0_104, %c0_105, %c8_106], %92 {strides = array<i32>} : memref<20x16x12xbf16, #tpu.memory_space<vmem>>, vector<18x15x4xbf16>,
    %c0_107 = arith.constant 0 : index
    %c0_108 = arith.constant 0 : index
    %c0_109 = arith.constant 0 : index
    %94 = vector.load %arg10[%c0_107, %c0_108, %c0_109] : memref<20x16x12xbf16, #tpu.memory_space<vmem>>, vector<16x16x12xbf16>
    %95 = vector.shape_cast %94 : vector<16x16x12xbf16> to vector<256x12xbf16>
    %c0_110 = arith.constant 0 : index
    %c0_111 = arith.constant 0 : index
    %c0_112 = arith.constant 0 : index
    %96 = vector.load %arg7[%c0_110, %c0_111, %c0_112] : memref<3x12x4xbf16, #tpu.memory_space<vmem>>, vector<1x12x4xbf16>
    %97 = vector.shape_cast %96 : vector<1x12x4xbf16> to vector<12x4xbf16>
    %cst_113 = arith.constant dense<0.000000e+00> : vector<256x4xf32>
    %98 = tpu.matmul %95, %97, %cst_113 {dimension_numbers = #tpu.dot_dimension_numbers<[1], [0], [0], [1], [0, 0, 1, 1], [], []>} : vector<256x12xbf16>, vector<12x4xbf16>, vector<256x4xf32> -> vector<256x4xf32>
    %c1_114 = arith.constant 1 : index
    %c0_115 = arith.constant 0 : index
    %c0_116 = arith.constant 0 : index
    %99 = vector.load %arg10[%c1_114, %c0_115, %c0_116] : memref<20x16x12xbf16, #tpu.memory_space<vmem>>, vector<16x16x12xbf16>
    %100 = vector.shape_cast %99 : vector<16x16x12xbf16> to vector<256x12xbf16>
    %c1_117 = arith.constant 1 : index
    %c0_118 = arith.constant 0 : index
    %c0_119 = arith.constant 0 : index
    %101 = vector.load %arg7[%c1_117, %c0_118, %c0_119] : memref<3x12x4xbf16, #tpu.memory_space<vmem>>, vector<1x12x4xbf16>
    %102 = vector.shape_cast %101 : vector<1x12x4xbf16> to vector<12x4xbf16>
    %cst_120 = arith.constant dense<0.000000e+00> : vector<256x4xf32>
    %103 = tpu.matmul %100, %102, %cst_120 {dimension_numbers = #tpu.dot_dimension_numbers<[1], [0], [0], [1], [0, 0, 1, 1], [], []>} : vector<256x12xbf16>, vector<12x4xbf16>, vector<256x4xf32> -> vector<256x4xf32>
    %104 = arith.addf %98, %103 : vector<256x4xf32>
    %c2_121 = arith.constant 2 : index
    %c0_122 = arith.constant 0 : index
    %c0_123 = arith.constant 0 : index
    %105 = vector.load %arg10[%c2_121, %c0_122, %c0_123] : memref<20x16x12xbf16, #tpu.memory_space<vmem>>, vector<16x16x12xbf16>
    %106 = vector.shape_cast %105 : vector<16x16x12xbf16> to vector<256x12xbf16>
    %c2_124 = arith.constant 2 : index
    %c0_125 = arith.constant 0 : index
    %c0_126 = arith.constant 0 : index
    %107 = vector.load %arg7[%c2_124, %c0_125, %c0_126] : memref<3x12x4xbf16, #tpu.memory_space<vmem>>, vector<1x12x4xbf16>
    %108 = vector.shape_cast %107 : vector<1x12x4xbf16> to vector<12x4xbf16>
    %cst_127 = arith.constant dense<0.000000e+00> : vector<256x4xf32>
    %109 = tpu.matmul %106, %108, %cst_127 {dimension_numbers = #tpu.dot_dimension_numbers<[1], [0], [0], [1], [0, 0, 1, 1], [], []>} : vector<256x12xbf16>, vector<12x4xbf16>, vector<256x4xf32> -> vector<256x4xf32>
    %110 = arith.addf %104, %109 : vector<256x4xf32>
    %111 = vector.broadcast %1 : vector<1x4xf32> to vector<256x4xf32>
    %112 = arith.addf %110, %111 : vector<256x4xf32>
    %c0_128 = arith.constant 0 : index
    %c0_129 = arith.constant 0 : index
    %113 = vector.load %arg11[%c0_128, %c0_129] : memref<288x4xf32, #tpu.memory_space<vmem>>, vector<256x4xf32>
    tpu.vector_store %arg11[%c0_128, %c0_129], %112 {strides = array<i32>} : memref<288x4xf32, #tpu.memory_space<vmem>>, vector<256x4xf32>,
    %c0_130 = arith.constant 0 : index
    %c0_131 = arith.constant 0 : index
    %114 = vector.load %arg11[%c0_130, %c0_131] : memref<288x4xf32, #tpu.memory_space<vmem>>, vector<256x4xf32>
    %115 = vector.shape_cast %114 : vector<256x4xf32> to vector<16x16x4xf32>
    %c0_132 = arith.constant 0 : index
    %c0_133 = arith.constant 0 : index
    %c0_134 = arith.constant 0 : index
    %c0_135 = arith.constant 0 : index
    %116 = vector.load %arg3[%c0_132, %c0_133, %c0_134, %c0_135] : memref<1x16x16x4xf32, #tpu.memory_space<vmem>>, vector<1x16x16x4xf32>
    %117 = vector.shape_cast %116 : vector<1x16x16x4xf32> to vector<16x16x4xf32>
    %118 = arith.addf %115, %117 : vector<16x16x4xf32>
    %c0_136 = arith.constant 0 : index
    %c0_137 = arith.constant 0 : index
    %c0_138 = arith.constant 0 : index
    %c0_139 = arith.constant 0 : index
    %119 = vector.load %arg9[%c0_136, %c0_137, %c0_138, %c0_139] : memref<1x16x16x4xf32, #tpu.memory_space<vmem>>, vector<1x16x16x4xf32>
    %120 = vector.shape_cast %119 : vector<1x16x16x4xf32> to vector<16x16x4xf32>
    %121 = vector.shape_cast %118 : vector<16x16x4xf32> to vector<1x16x16x4xf32>
    tpu.vector_store %arg9[%c0_136, %c0_137, %c0_138, %c0_139], %121 {strides = array<i32>} : memref<1x16x16x4xf32, #tpu.memory_space<vmem>>, vector<1x16x16x4xf32>,
    return
  }
  func.func @transform_0(%arg0: i32, %arg1: i32) -> (i32, i32, i32, i32) {
    %c8_i32 = arith.constant 8 : i32
    %0 = arith.muli %arg1, %c8_i32 : i32
    %c1_i32 = arith.constant 1 : i32
    %1 = arith.subi %0, %c1_i32 : i32
    %c0_i32 = arith.constant 0 : i32
    %2 = arith.maxsi %1, %c0_i32 : i32
    %c0_i32_0 = arith.constant 0 : i32
    %c0_i32_1 = arith.constant 0 : i32
    %c0_i32_2 = arith.constant 0 : i32
    return %arg0, %2, %c0_i32_0, %c0_i32_1 : i32, i32, i32, i32
  }
  func.func @transform_1(%arg0: i32, %arg1: i32) -> (i32, i32, i32, i32) {
    %c0_i32 = arith.constant 0 : i32
    %c0_i32_0 = arith.constant 0 : i32
    %c0_i32_1 = arith.constant 0 : i32
    return %arg0, %arg1, %c0_i32, %c0_i32_0 : i32, i32, i32, i32
  }
  func.func @transform_2(%arg0: i32, %arg1: i32) -> (i32, i32, i32, i32) {
    %c1_i32 = arith.constant 1 : i32
    %0 = arith.addi %arg1, %c1_i32 : i32
    %c8_i32 = arith.constant 8 : i32
    %1 = arith.muli %0, %c8_i32 : i32
    %c7_i32 = arith.constant 7 : i32
    %2 = arith.minsi %1, %c7_i32 : i32
    %c0_i32 = arith.constant 0 : i32
    %c0_i32_0 = arith.constant 0 : i32
    %c0_i32_1 = arith.constant 0 : i32
    return %arg0, %2, %c0_i32, %c0_i32_0 : i32, i32, i32, i32
  }
  func.func @transform_3(%arg0: i32, %arg1: i32) -> (i32, i32, i32) {
    %c0_i32 = arith.constant 0 : i32
    %c0_i32_0 = arith.constant 0 : i32
    %c0_i32_1 = arith.constant 0 : i32
    %c0_i32_2 = arith.constant 0 : i32
    return %c0_i32, %c0_i32_0, %c0_i32_1 : i32, i32, i32
  }
  func.func @transform_4(%arg0: i32, %arg1: i32) -> (i32, i32) {
    %c0_i32 = arith.constant 0 : i32
    %c0_i32_0 = arith.constant 0 : i32
    %c0_i32_1 = arith.constant 0 : i32
    return %c0_i32, %c0_i32_0 : i32, i32
  }
  func.func @transform_5(%arg0: i32, %arg1: i32) -> (i32, i32, i32) {
    %c0_i32 = arith.constant 0 : i32
    %c0_i32_0 = arith.constant 0 : i32
    %c0_i32_1 = arith.constant 0 : i32
    %c0_i32_2 = arith.constant 0 : i32
    return %c0_i32, %c0_i32_0, %c0_i32_1 : i32, i32, i32
  }
  func.func @transform_6(%arg0: i32, %arg1: i32) -> (i32, i32) {
    %c0_i32 = arith.constant 0 : i32
    %c0_i32_0 = arith.constant 0 : i32
    %c0_i32_1 = arith.constant 0 : i32
    return %c0_i32, %c0_i32_0 : i32, i32
  }
  func.func @transform_7(%arg0: i32, %arg1: i32) -> (i32, i32, i32, i32) {
    %c0_i32 = arith.constant 0 : i32
    %c0_i32_0 = arith.constant 0 : i32
    %c0_i32_1 = arith.constant 0 : i32
    return %arg0, %arg1, %c0_i32, %c0_i32_0 : i32, i32, i32, i32
  }
}

</mosaic_0001>

<llo_original>
// kernel: residual_conv_unit.1
$region0: #{residual_conv_unit.1}
  #allocation0 [shape = 'u32[]', space=smem, size = 0x4, offset = 0x4, fixed_abs, tag = 'smem constant byte address 0x4 - core index']
  #allocation1 [shape = 'u32[144,128]{1,0:T(1,128)}', space=vmem, size = 0x12000, scoped, tag = 'internal scratch']
  #allocation2 [shape = 'bf16[20,16,12]{2,1,0:T(8,128)(2,1)}', space=vmem, size = 0x14000, scoped, tag = 'scratch operand']
  #allocation3 [shape = 'f32[288,4]{1,0:T(8,128)}', space=vmem, size = 0x24000, scoped, tag = 'scratch operand']
  %s0 = inlined_call_operand.vmem [shape: f32[2,16,16,4], index: 0, kind: input, shape index: {}, may-alias: {0,1,2}]
  %s1 = inlined_call_operand.vmem [shape: f32[2,16,16,4], index: 1, kind: input, shape index: {}, may-alias: {0,1,2}]
  %s2 = inlined_call_operand.vmem [shape: f32[2,16,16,4], index: 2, kind: input, shape index: {}, may-alias: {0,1,2}]
  %s3 = inlined_call_operand.vmem [shape: bf16[3,12,4], index: 3, kind: input, shape index: {}]
  %s4 = inlined_call_operand.vmem [shape: f32[1,4], index: 4, kind: input, shape index: {}]
  %s5 = inlined_call_operand.vmem [shape: bf16[3,12,4], index: 5, kind: input, shape index: {}]
  %s6 = inlined_call_operand.vmem [shape: f32[1,4], index: 6, kind: input, shape index: {}]
  %s7 = inlined_call_operand.vmem [shape: f32[2,16,16,4], index: 7, kind: output, shape index: {}]
  %s8 = sld [smem:[#allocation0]]
  $region61: #{residual_conv_unit.1} parent=0
    _
  %s10 = ssub.s32 1, %s8
  %s11 = scalar_select 0, %s10, %s8
  loop: start=0, step=1, limit=4
  $region2: #{residual_conv_unit.1} parent=0 // loop_pre_header
    _
  $region3: #{residual_conv_unit.1} parent=0 // loop_header
    %s13 = sphi 0, %s17
    %p14 = scmp.ge.s32.totalorder %s13, 4
    %s20 = sphi 0, %s32
    %s21 = sphi 0, %s28
    %s22 = sphi 0, %s20
    %s23 = sphi 0, %s21
    %s24 = sphi 0, %s22
    %s25 = sphi 0, %s23
    %s45 = sphi 0, %s47
    %s48 = sphi 0, %s45
    %s49 = sphi 0, %s48
    %s65 = sphi 0, %s49
    %s73 = sphi 0, %s75
    %s76 = sphi 0, %s73
    %s77 = sphi 0, %s76
    %s93 = sphi 0, %s77
    %s109 = sphi 0, %s111
    %s112 = sphi 0, %s109
    %s113 = sphi 0, %s112
    %s129 = sphi 0, %s113
    %s133 = sphi 0, %s133
    %s135 = sphi 0, %s133
    %s136 = sphi 0, %s135
    %s150 = sphi 0, %s136
    %s154 = sphi 0, %s154
    %s156 = sphi 0, %s154
    %s157 = sphi 0, %s156
    %s171 = sphi 0, %s157
    %s175 = sphi 0, %s175
    %s177 = sphi 0, %s175
    %s178 = sphi 0, %s177
    %s192 = sphi 0, %s178
    %s196 = sphi 0, %s196
    %s198 = sphi 0, %s196
    %s199 = sphi 0, %s198
    %s213 = sphi 0, %s199
    %s221 = sphi 0, %s223
    %s224 = sphi 0, %s221
    %s225 = sphi 0, %s224
    %s241 = sphi 0, %s225
  $region4: #{residual_conv_unit.1} parent=0 // loop_header_branch
    %16 = sbr.rel (%p14) target = $region8
  $region5: #{residual_conv_unit.1} parent=0 // loop_body
    %s18 = ssub.s32 %s13, 1
    %s19 = ssub.s32 %s13, 2
    %s26 = sadd.s32 1, %s21
    %p27 = scmp.ge.s32.totalorder %s26, 1
    %s28 = scalar_select %p27, 0, %s26
    %s29 = sadd.s32 1, %s20
    %s30 = scalar_select %p27, %s29, %s20
    %p31 = scmp.ge.s32.totalorder %s30, 2
    %s32 = scalar_select %p31, 0, %s30
    %s33 = smul.u32 %s21, 8
    %s34 = ssub.s32 %s33, 1
    %p35 = scmp.gt.s32.totalorder %s34, 0
    %s36 = scalar_select %p35, %s34, 0
    %s37 = smul.u32 %s28, 8
    %s38 = ssub.s32 %s37, 1
    %p39 = scmp.gt.s32.totalorder %s38, 0
    %s40 = scalar_select %p39, %s38, 0
    %s41 = ssub.s32 %s20, %s32
    %s42 = ssub.s32 %s36, %s40
    %s43 = sor.u32 %s41, %s42
    %p44 = scmp.eq.s32.totalorder %s43, 0
    %s46 = sadd.s32 %s45, 1
    %s47 = scalar_select %p44, %s45, %s46
    %p50 = pneg %p44
    %p51 = scmp.eq.s32.totalorder %s13, 1
    %p52 = por %p50, %p51
    %p53 = scmp.ne.s32.totalorder %s45, %s48
    %p54 = scmp.eq.s32.totalorder %s13, 0
    %p55 = por %p53, %p54
    %p56 = scmp.ne.s32.totalorder %s45, %s48
    %p57 = scmp.eq.s32.totalorder %s18, 1
    %p58 = por %p56, %p57
    %p59 = scmp.ne.s32.totalorder %s48, %s49
    %p60 = scmp.eq.s32.totalorder %s18, 0
    %p61 = por %p59, %p60
    %p62 = scmp.ne.s32.totalorder %s48, %s49
    %p63 = scmp.eq.s32.totalorder %s19, 1
    %p64 = por %p62, %p63
    %p66 = scmp.ne.s32.totalorder %s49, %s65
    %p67 = scmp.eq.s32.totalorder %s19, 0
    %p68 = por %p66, %p67
    %s69 = ssub.s32 %s20, %s32
    %s70 = ssub.s32 %s21, %s28
    %s71 = sor.u32 %s69, %s70
    %p72 = scmp.eq.s32.totalorder %s71, 0
    %s74 = sadd.s32 %s73, 1
    %s75 = scalar_select %p72, %s73, %s74
    %p78 = pneg %p72
    %p79 = scmp.eq.s32.totalorder %s13, 1
    %p80 = por %p78, %p79
    %p81 = scmp.ne.s32.totalorder %s73, %s76
    %p82 = scmp.eq.s32.totalorder %s13, 0
    %p83 = por %p81, %p82
    %p84 = scmp.ne.s32.totalorder %s73, %s76
    %p85 = scmp.eq.s32.totalorder %s18, 1
    %p86 = por %p84, %p85
    %p87 = scmp.ne.s32.totalorder %s76, %s77
    %p88 = scmp.eq.s32.totalorder %s18, 0
    %p89 = por %p87, %p88
    %p90 = scmp.ne.s32.totalorder %s76, %s77
    %p91 = scmp.eq.s32.totalorder %s19, 1
    %p92 = por %p90, %p91
    %p94 = scmp.ne.s32.totalorder %s77, %s93
    %p95 = scmp.eq.s32.totalorder %s19, 0
    %p96 = por %p94, %p95
    %s97 = sadd.s32 %s21, 1
    %s98 = smul.u32 %s97, 8
    %p99 = scmp.lt.s32.totalorder %s98, 7
    %s100 = scalar_select %p99, %s98, 7
    %s101 = sadd.s32 %s28, 1
    %s102 = smul.u32 %s101, 8
    %p103 = scmp.lt.s32.totalorder %s102, 7
    %s104 = scalar_select %p103, %s102, 7
    %s105 = ssub.s32 %s20, %s32
    %s106 = ssub.s32 %s100, %s104
    %s107 = sor.u32 %s105, %s106
    %p108 = scmp.eq.s32.totalorder %s107, 0
    %s110 = sadd.s32 %s109, 1
    %s111 = scalar_select %p108, %s109, %s110
    %p114 = pneg %p108
    %p115 = scmp.eq.s32.totalorder %s13, 1
    %p116 = por %p114, %p115
    %p117 = scmp.ne.s32.totalorder %s109, %s112
    %p118 = scmp.eq.s32.totalorder %s13, 0
    %p119 = por %p117, %p118
    %p120 = scmp.ne.s32.totalorder %s109, %s112
    %p121 = scmp.eq.s32.totalorder %s18, 1
    %p122 = por %p120, %p121
    %p123 = scmp.ne.s32.totalorder %s112, %s113
    %p124 = scmp.eq.s32.totalorder %s18, 0
    %p125 = por %p123, %p124
    %p126 = scmp.ne.s32.totalorder %s112, %s113
    %p127 = scmp.eq.s32.totalorder %s19, 1
    %p128 = por %p126, %p127
    %p130 = scmp.ne.s32.totalorder %s113, %s129
    %p131 = scmp.eq.s32.totalorder %s19, 0
    %p132 = por %p130, %p131
    %s134 = sadd.s32 %s133, 1
    %p137 = scmp.eq.s32.totalorder %s13, 1
    %p138 = scmp.ne.s32.totalorder %s133, %s135
    %p139 = scmp.eq.s32.totalorder %s13, 0
    %p140 = por %p138, %p139
    %p141 = scmp.ne.s32.totalorder %s133, %s135
    %p142 = scmp.eq.s32.totalorder %s18, 1
    %p143 = por %p141, %p142
    %p144 = scmp.ne.s32.totalorder %s135, %s136
    %p145 = scmp.eq.s32.totalorder %s18, 0
    %p146 = por %p144, %p145
    %p147 = scmp.ne.s32.totalorder %s135, %s136
    %p148 = scmp.eq.s32.totalorder %s19, 1
    %p149 = por %p147, %p148
    %p151 = scmp.ne.s32.totalorder %s136, %s150
    %p152 = scmp.eq.s32.totalorder %s19, 0
    %p153 = por %p151, %p152
    %s155 = sadd.s32 %s154, 1
    %p158 = scmp.eq.s32.totalorder %s13, 1
    %p159 = scmp.ne.s32.totalorder %s154, %s156
    %p160 = scmp.eq.s32.totalorder %s13, 0
    %p161 = por %p159, %p160
    %p162 = scmp.ne.s32.totalorder %s154, %s156
    %p163 = scmp.eq.s32.totalorder %s18, 1
    %p164 = por %p162, %p163
    %p165 = scmp.ne.s32.totalorder %s156, %s157
    %p166 = scmp.eq.s32.totalorder %s18, 0
    %p167 = por %p165, %p166
    %p168 = scmp.ne.s32.totalorder %s156, %s157
    %p169 = scmp.eq.s32.totalorder %s19, 1
    %p170 = por %p168, %p169
    %p172 = scmp.ne.s32.totalorder %s157, %s171
    %p173 = scmp.eq.s32.totalorder %s19, 0
    %p174 = por %p172, %p173
    %s176 = sadd.s32 %s175, 1
    %p179 = scmp.eq.s32.totalorder %s13, 1
    %p180 = scmp.ne.s32.totalorder %s175, %s177
    %p181 = scmp.eq.s32.totalorder %s13, 0
    %p182 = por %p180, %p181
    %p183 = scmp.ne.s32.totalorder %s175, %s177
    %p184 = scmp.eq.s32.totalorder %s18, 1
    %p185 = por %p183, %p184
    %p186 = scmp.ne.s32.totalorder %s177, %s178
    %p187 = scmp.eq.s32.totalorder %s18, 0
    %p188 = por %p186, %p187
    %p189 = scmp.ne.s32.totalorder %s177, %s178
    %p190 = scmp.eq.s32.totalorder %s19, 1
    %p191 = por %p189, %p190
    %p193 = scmp.ne.s32.totalorder %s178, %s192
    %p194 = scmp.eq.s32.totalorder %s19, 0
    %p195 = por %p193, %p194
    %s197 = sadd.s32 %s196, 1
    %p200 = scmp.eq.s32.totalorder %s13, 1
    %p201 = scmp.ne.s32.totalorder %s196, %s198
    %p202 = scmp.eq.s32.totalorder %s13, 0
    %p203 = por %p201, %p202
    %p204 = scmp.ne.s32.totalorder %s196, %s198
    %p205 = scmp.eq.s32.totalorder %s18, 1
    %p206 = por %p204, %p205
    %p207 = scmp.ne.s32.totalorder %s198, %s199
    %p208 = scmp.eq.s32.totalorder %s18, 0
    %p209 = por %p207, %p208
    %p210 = scmp.ne.s32.totalorder %s198, %s199
    %p211 = scmp.eq.s32.totalorder %s19, 1
    %p212 = por %p210, %p211
    %p214 = scmp.ne.s32.totalorder %s199, %s213
    %p215 = scmp.eq.s32.totalorder %s19, 0
    %p216 = por %p214, %p215
    %s217 = ssub.s32 %s20, %s32
    %s218 = ssub.s32 %s21, %s28
    %s219 = sor.u32 %s217, %s218
    %p220 = scmp.eq.s32.totalorder %s219, 0
    %s222 = sadd.s32 %s221, 1
    %s223 = scalar_select %p220, %s221, %s222
    %p226 = pneg %p220
    %p227 = scmp.eq.s32.totalorder %s13, 1
    %p228 = por %p226, %p227
    %p229 = scmp.ne.s32.totalorder %s221, %s224
    %p230 = scmp.eq.s32.totalorder %s13, 0
    %p231 = por %p229, %p230
    %p232 = scmp.ne.s32.totalorder %s221, %s224
    %p233 = scmp.eq.s32.totalorder %s18, 1
    %p234 = por %p232, %p233
    %p235 = scmp.ne.s32.totalorder %s224, %s225
    %p236 = scmp.eq.s32.totalorder %s18, 0
    %p237 = por %p235, %p236
    %p238 = scmp.ne.s32.totalorder %s224, %s225
    %p239 = scmp.eq.s32.totalorder %s19, 1
    %p240 = por %p238, %p239
    %p242 = scmp.ne.s32.totalorder %s225, %s241
    %p243 = scmp.eq.s32.totalorder %s19, 0
    %p244 = por %p242, %p243
    %p245 = scmp.le.s32.totalorder 1, %s13
    %p246 = scmp.lt.s32.totalorder %s13, 3
    %p247 = pnand %p245, %p246
    %p248 = pneg %p247
    // Predicated region
    $region9: #{residual_conv_unit.1} parent=5 // pred_check
      _
    $region10: #{residual_conv_unit.1} parent=5 // pred_check_branch
      %250 = sbr.rel (%p247) target = $region12
    $region11: #{residual_conv_unit.1} parent=5 // pred_region
      %s251 = ssub.s32 %s13, 1
      // Predicated region
      $region13: #{residual_conv_unit.1} parent=11 // pred_check
        %p252 = pneg %p146
      $region14: #{residual_conv_unit.1} parent=11 // pred_check_branch
        %254 = sbr.rel (%p252) target = $region16
      $region15: #{residual_conv_unit.1} parent=11 // pred_region
        _
      $region16: #{residual_conv_unit.1} parent=11 // pred_fallthru
        _
      // Predicated region
      $region17: #{residual_conv_unit.1} parent=11 // pred_check
        %p255 = pneg %p167
      $region18: #{residual_conv_unit.1} parent=11 // pred_check_branch
        %257 = sbr.rel (%p255) target = $region20
      $region19: #{residual_conv_unit.1} parent=11 // pred_region
        _
      $region20: #{residual_conv_unit.1} parent=11 // pred_fallthru
        _
      // Predicated region
      $region21: #{residual_conv_unit.1} parent=11 // pred_check
        %p258 = pneg %p188
      $region22: #{residual_conv_unit.1} parent=11 // pred_check_branch
        %260 = sbr.rel (%p258) target = $region24
      $region23: #{residual_conv_unit.1} parent=11 // pred_region
        _
      $region24: #{residual_conv_unit.1} parent=11 // pred_fallthru
        _
      // Predicated region
      $region25: #{residual_conv_unit.1} parent=11 // pred_check
        %p261 = pneg %p209
      $region26: #{residual_conv_unit.1} parent=11 // pred_check_branch
        %263 = sbr.rel (%p261) target = $region28
      $region27: #{residual_conv_unit.1} parent=11 // pred_region
        _
      $region28: #{residual_conv_unit.1} parent=11 // pred_fallthru
        _
    $region12: #{residual_conv_unit.1} parent=5 // pred_fallthru
      _
    %p264 = scmp.lt.s32.totalorder %s13, 2
    // Predicated region
    $region29: #{residual_conv_unit.1} parent=5 // pred_check
      %p265 = pneg %p264
    $region30: #{residual_conv_unit.1} parent=5 // pred_check_branch
      %267 = sbr.rel (%p265) target = $region32
    $region31: #{residual_conv_unit.1} parent=5 // pred_region
      // Predicated region
      $region33: #{residual_conv_unit.1} parent=31 // pred_check
        %p268 = pneg %p55
      $region34: #{residual_conv_unit.1} parent=31 // pred_check_branch
        %270 = sbr.rel (%p268) target = $region36
      $region35: #{residual_conv_unit.1} parent=31 // pred_region
        %s271 = smul.u32 %s21, 8
        %s272 = ssub.s32 %s271, 1
        %p273 = scmp.gt.s32.totalorder %s272, 0
        %s274 = scalar_select %p273, %s272, 0
        %s275 = smul.u32 2, %s274
        %p276 = scmp.lt.s32.totalorder %s20, 1
        %s277 = scalar_select %p276, %s20, 1
        %p278 = scmp.lt.s32.totalorder %s275, 15
        %s279 = scalar_select %p278, %s275, 15
        %s280 = smul.addr %s279, 2
        %s281 = smul.addr %s277, 32
        %s282 = sadd.s32 %s280, %s281
        %s283 = smul.addr %s282, 8
        %s284 = scalar_lea.vmem %s0, %s283
        %s285 = smul.u32 %s21, 8
        %s286 = ssub.s32 %s285, 1
        %p287 = scmp.gt.s32.totalorder %s286, 0
        %s288 = scalar_select %p287, %s286, 0
        %s289 = smul.u32 2, %s288
      $region36: #{residual_conv_unit.1} parent=31 // pred_fallthru
        _
      // Predicated region
      $region37: #{residual_conv_unit.1} parent=31 // pred_check
        %p290 = pneg %p83
      $region38: #{residual_conv_unit.1} parent=31 // pred_check_branch
        %292 = sbr.rel (%p290) target = $region40
      $region39: #{residual_conv_unit.1} parent=31 // pred_region
        %s293 = smul.u32 16, %s21
        %p294 = scmp.lt.s32.totalorder %s20, 1
        %s295 = scalar_select %p294, %s20, 1
        %p296 = scmp.lt.s32.totalorder %s293, 15
        %s297 = scalar_select %p296, %s293, 15
        %s298 = smul.addr %s297, 2
        %s299 = smul.addr %s295, 32
        %s300 = sadd.s32 %s298, %s299
        %s301 = smul.addr %s300, 8
        %s302 = scalar_lea.vmem %s1, %s301
        %s303 = smul.u32 16, %s21
      $region40: #{residual_conv_unit.1} parent=31 // pred_fallthru
        _
      // Predicated region
      $region41: #{residual_conv_unit.1} parent=31 // pred_check
        %p304 = pneg %p119
      $region42: #{residual_conv_unit.1} parent=31 // pred_check_branch
        %306 = sbr.rel (%p304) target = $region44
      $region43: #{residual_conv_unit.1} parent=31 // pred_region
        %s307 = sadd.s32 %s21, 1
        %s308 = smul.u32 %s307, 8
        %p309 = scmp.lt.s32.totalorder %s308, 7
        %s310 = scalar_select %p309, %s308, 7
        %s311 = smul.u32 2, %s310
        %p312 = scmp.lt.s32.totalorder %s20, 1
        %s313 = scalar_select %p312, %s20, 1
        %p314 = scmp.lt.s32.totalorder %s311, 15
        %s315 = scalar_select %p314, %s311, 15
        %s316 = smul.addr %s315, 2
        %s317 = smul.addr %s313, 32
        %s318 = sadd.s32 %s316, %s317
        %s319 = smul.addr %s318, 8
        %s320 = scalar_lea.vmem %s2, %s319
        %s321 = sadd.s32 %s21, 1
        %s322 = smul.u32 %s321, 8
        %p323 = scmp.lt.s32.totalorder %s322, 7
        %s324 = scalar_select %p323, %s322, 7
        %s325 = smul.u32 2, %s324
      $region44: #{residual_conv_unit.1} parent=31 // pred_fallthru
        _
    $region32: #{residual_conv_unit.1} parent=5 // pred_fallthru
      _
    %p326 = scmp.le.s32.totalorder 1, %s13
    %p327 = scmp.lt.s32.totalorder %s13, 3
    %p328 = pnand %p326, %p327
    %p329 = pneg %p328
    // Predicated region
    $region45: #{residual_conv_unit.1} parent=5 // pred_check
      _
    $region46: #{residual_conv_unit.1} parent=5 // pred_check_branch
      %331 = sbr.rel (%p328) target = $region48
    $region47: #{residual_conv_unit.1} parent=5 // pred_region
      %s332 = ssub.s32 %s13, 1
      %s333 = smul.u32 %s23, 8
      %s334 = ssub.s32 %s333, 1
      %p335 = scmp.gt.s32.totalorder %s334, 0
      %s336 = scalar_select %p335, %s334, 0
      %s337 = smul.u32 2, %s336
      %p338 = scmp.lt.s32.totalorder %s22, 1
      %s339 = scalar_select %p338, %s22, 1
      %p340 = scmp.lt.s32.totalorder %s337, 15
      %s341 = scalar_select %p340, %s337, 15
      %s342 = smul.addr %s341, 2
      %s343 = smul.addr %s339, 32
      %s344 = sadd.s32 %s342, %s343
      %s345 = smul.addr %s344, 8
      %s346 = scalar_lea.vmem %s0, %s345
      %p347 = pneg %p61
      %p348 = pneg %p58
      %s349 = smul.u32 16, %s23
      %p350 = scmp.lt.s32.totalorder %s22, 1
      %s351 = scalar_select %p350, %s22, 1
      %p352 = scmp.lt.s32.totalorder %s349, 15
      %s353 = scalar_select %p352, %s349, 15
      %s354 = smul.addr %s353, 2
      %s355 = smul.addr %s351, 32
      %s356 = sadd.s32 %s354, %s355
      %s357 = smul.addr %s356, 8
      %s358 = scalar_lea.vmem %s1, %s357
      %p359 = pneg %p89
      %p360 = pneg %p86
      %s361 = sadd.s32 %s23, 1
      %s362 = smul.u32 %s361, 8
      %p363 = scmp.lt.s32.totalorder %s362, 7
      %s364 = scalar_select %p363, %s362, 7
      %s365 = smul.u32 2, %s364
      %p366 = scmp.lt.s32.totalorder %s22, 1
      %s367 = scalar_select %p366, %s22, 1
      %p368 = scmp.lt.s32.totalorder %s365, 15
      %s369 = scalar_select %p368, %s365, 15
      %s370 = smul.addr %s369, 2
      %s371 = smul.addr %s367, 32
      %s372 = sadd.s32 %s370, %s371
      %s373 = smul.addr %s372, 8
      %s374 = scalar_lea.vmem %s2, %s373
      %p375 = pneg %p125
      %p376 = pneg %p122
      %p377 = pneg %p146
      %p378 = pneg %p143
      %p379 = pneg %p167
      %p380 = pneg %p164
      %p381 = pneg %p188
      %p382 = pneg %p185
      %p383 = pneg %p209
      %p384 = pneg %p206
      %p385 = pneg %p237
      %p386 = pneg %p234
      %s387 = smul.u32 16, %s23
      %p388 = scmp.lt.s32.totalorder %s22, 1
      %s389 = scalar_select %p388, %s22, 1
      %p390 = scmp.lt.s32.totalorder %s387, 15
      %s391 = scalar_select %p390, %s387, 15
      %s392 = smul.addr %s391, 2
      %s393 = smul.addr %s389, 32
      %s394 = sadd.s32 %s392, %s393
      %s395 = smul.addr %s394, 8
      %s396 = scalar_lea.vmem %s7, %s395
      %s397 = smul.u32 %s23, 8
      %s398 = ssub.s32 %s397, 1
      %p399 = scmp.gt.s32.totalorder %s398, 0
      %s400 = scalar_select %p399, %s398, 0
      %s401 = smul.u32 2, %s400
      %p402 = scmp.lt.s32.totalorder %s22, 1
      %s403 = scalar_select %p402, %s22, 1
      %p404 = scmp.lt.s32.totalorder %s401, 15
      %s405 = scalar_select %p404, %s401, 15
      %s406 = smul.addr %s405, 2
      %s407 = smul.addr %s403, 32
      %s408 = sadd.s32 %s406, %s407
      %s409 = smul.addr %s408, 8
      %s410 = scalar_lea.vmem %s0, %s409
      %s411 = smul.u32 %s23, 8
      %s412 = ssub.s32 %s411, 1
      %p413 = scmp.gt.s32.totalorder %s412, 0
      %s414 = scalar_select %p413, %s412, 0
      %s415 = smul.u32 2, %s414
      %s416 = smul.u32 16, %s23
      %p417 = scmp.lt.s32.totalorder %s22, 1
      %s418 = scalar_select %p417, %s22, 1
      %p419 = scmp.lt.s32.totalorder %s416, 15
      %s420 = scalar_select %p419, %s416, 15
      %s421 = smul.addr %s420, 2
      %s422 = smul.addr %s418, 32
      %s423 = sadd.s32 %s421, %s422
      %s424 = smul.addr %s423, 8
      %s425 = scalar_lea.vmem %s1, %s424
      %s426 = smul.u32 16, %s23
      %s427 = sadd.s32 %s23, 1
      %s428 = smul.u32 %s427, 8
      %p429 = scmp.lt.s32.totalorder %s428, 7
      %s430 = scalar_select %p429, %s428, 7
      %s431 = smul.u32 2, %s430
      %p432 = scmp.lt.s32.totalorder %s22, 1
      %s433 = scalar_select %p432, %s22, 1
      %p434 = scmp.lt.s32.totalorder %s431, 15
      %s435 = scalar_select %p434, %s431, 15
      %s436 = smul.addr %s435, 2
      %s437 = smul.addr %s433, 32
      %s438 = sadd.s32 %s436, %s437
      %s439 = smul.addr %s438, 8
      %s440 = scalar_lea.vmem %s2, %s439
      %s441 = sadd.s32 %s23, 1
      %s442 = smul.u32 %s441, 8
      %p443 = scmp.lt.s32.totalorder %s442, 7
      %s444 = scalar_select %p443, %s442, 7
      %s445 = smul.u32 2, %s444
      %s446 = smul.u32 16, %s23
      %p447 = scmp.lt.s32.totalorder %s22, 1
      %s448 = scalar_select %p447, %s22, 1
      %p449 = scmp.lt.s32.totalorder %s446, 15
      %s450 = scalar_select %p449, %s446, 15
      %s451 = smul.addr %s450, 2
      %s452 = smul.addr %s448, 32
      %s453 = sadd.s32 %s451, %s452
      %s454 = smul.addr %s453, 8
      %s455 = scalar_lea.vmem %s7, %s454
      %s456 = smul.u32 16, %s23
      %v458 = vld [vmem:[%s4] sm:$0x1]
      %v459 = vld [vmem:[%s6] sm:$0x1]
      %p460 = scmp.eq.s32.totalorder %s23, 0
      %v461 = vld [vmem:[%s410] sm:$0xff]
      %v462 = vld [vmem:[%s410 + $0x8] sm:$0xff]
      %v463 = vld [vmem:[%s410 + $0x10] sm:$0xff]
      %v464 = vld [vmem:[%s410 + $0x18] sm:$0xff]
      %s465 = scalar_select %p460, 1, 0
      %v466 = vstv %s465
      %vm467 = vcmp.eq.s32.totalorder %v466, 1
      %v468 = vsel %vm467, 0.0, %v461
      %v469 = vsel %vm467, 0.0, %v462
      %v470 = vsel %vm467, 0.0, %v463
      %v471 = vsel %vm467, 0.0, %v464
      %v472 = vld [vmem:[%s440] sm:$0xff]
      %v473 = vld [vmem:[%s440 + $0x8] sm:$0xff]
      %v474 = vld [vmem:[%s440 + $0x10] sm:$0xff]
      %v475 = vld [vmem:[%s440 + $0x18] sm:$0xff]
      %v476 = vsel %vm467, 0.0, %v472
      %v477 = vsel %vm467, 0.0, %v473
      %v478 = vsel %vm467, 0.0, %v474
      %v479 = vsel %vm467, 0.0, %v475
      %v480 = vmax.f32 %v468, 0.0
      %v481 = vmax.f32 %v469, 0.0
      %v482 = vmax.f32 %v470, 0.0
      %v483 = vmax.f32 %v471, 0.0
      %v484 = vpack.c.bf16 %v481, %v480
      %v485 = vpack.c.bf16 %v483, %v482
      %v488 = vunpack.c.l.b16 %v484
      %v489 = vunpack.c.h.b16 %v484
      %v490 = vunpack.c.l.b16 %v485
      %v491 = vunpack.c.h.b16 %v485
      %v492 = vpack.c.b16 %v488, %v488
      %v493 = vpack.c.b16 %v489, %v489
      %v494 = vpack.c.b16 %v490, %v490
      %v495 = vpack.c.b16 %v491, %v491
      %496 = vrot.lane.b32.xlu0 %v492, 4
      %v497 = vpop.permute.xlu0 %496
      %498 = vrot.lane.b32.xlu0 %v493, 4
      %v499 = vpop.permute.xlu0 %498
      %500 = vrot.lane.b32.xlu0 %v494, 4
      %v501 = vpop.permute.xlu0 %500
      %502 = vrot.lane.b32.xlu0 %v495, 4
      %v503 = vpop.permute.xlu0 %502
      %vm508 = vcmask 60448
      %509 = vst.msk [vmem:[#allocation2] sm:$0xf] %vm508, %v497
      %510 = vst.msk [vmem:[#allocation2 + $0x4] sm:$0xf] %vm508, %v499
      %511 = vst.msk [vmem:[#allocation2 + $0x8] sm:$0xf] %vm508, %v501
      %512 = vst.msk [vmem:[#allocation2 + $0xc] sm:$0xf] %vm508, %v503
      %vm513 = vcmask 24576
      %vm514 = vsmask.f32 256
      %vm515 = vmand %vm513, %vm514
      %v516 = vld [vmem:[#allocation2] sm:$0x1]
      %v517 = vsel %vm515, 0, %v516
      %518 = vst [vmem:[#allocation2] sm:$0x1] %v517
      %v519 = vld [vmem:[#allocation2 + $0x8] sm:$0x1]
      %v520 = vsel %vm515, 0, %v519
      %521 = vst [vmem:[#allocation2 + $0x8] sm:$0x1] %v520
      %vm522 = vcmask 93251
      %vm523 = vsmask.f32 7950
      %vm524 = vmand %vm522, %vm523
      %v525 = vld [vmem:[#allocation2 + $0x4] sm:$0x8]
      %v526 = vsel %vm524, 0, %v525
      %527 = vst [vmem:[#allocation2 + $0x4] sm:$0x8] %v526
      %v528 = vld [vmem:[#allocation2 + $0xc] sm:$0x8]
      %v529 = vsel %vm524, 0, %v528
      %530 = vst [vmem:[#allocation2 + $0xc] sm:$0x8] %v529
      %vm531 = vsmask.f32 4368
      %vm532 = vmor %vm514, %vm531
      %v534 = vshrl.u32 %v492, 16
      %v536 = vrot.slane %v534, 7
      %v537 = vshll.u32 %v492, 16
      %v539 = vor.u32 %v536, %v537
      %v540 = vrot.slane %v536, 4
      %v542 = vshrl.u32 %v493, 16
      %v544 = vrot.slane %v542, 7
      %v545 = vshll.u32 %v493, 16
      %v547 = vor.u32 %v544, %v545
      %v548 = vsel %vm532, %v540, %v547
      %v550 = vshrl.u32 %v494, 16
      %v552 = vrot.slane %v550, 7
      %v553 = vshll.u32 %v494, 16
      %v555 = vor.u32 %v552, %v553
      %v556 = vrot.slane %v552, 4
      %v558 = vshrl.u32 %v495, 16
      %v560 = vrot.slane %v558, 7
      %v561 = vshll.u32 %v495, 16
      %v563 = vor.u32 %v560, %v561
      %v564 = vsel %vm532, %v556, %v563
      %vm569 = vcmask 27648
      %vm570 = vsmask.f32 7938
      %vm571 = vmand %vm569, %vm570
      %v572 = vld [vmem:[#allocation2] sm:$0xf]
      %v573 = vsel %vm571, %v539, %v572
      %574 = vst [vmem:[#allocation2] sm:$0xf] %v573
      %vm575 = vcmask 27648
      %576 = vst.msk [vmem:[#allocation2 + $0x4] sm:$0xf] %vm575, %v548
      %v577 = vld [vmem:[#allocation2 + $0x8] sm:$0xf]
      %v578 = vsel %vm571, %v555, %v577
      %579 = vst [vmem:[#allocation2 + $0x8] sm:$0xf] %v578
      %580 = vst.msk [vmem:[#allocation2 + $0xc] sm:$0xf] %vm575, %v564
      %vm581 = vsmask.f32 3328
      %vm582 = vsmask.f32 7440
      %vm583 = vmor %vm581, %vm582
      %v584 = vrot.slane %v534, 4
      %v585 = vrot.slane %v537, 5
      %v586 = vor.u32 %v584, %v585
      %v587 = vrot.slane %v586, 4
      %v588 = vrot.slane %v545, 5
      %v589 = vsel %vm583, %v587, %v588
      %v590 = vrot.slane %v542, 4
      %v591 = vor.u32 %v590, %v588
      %v592 = vrot.slane %v591, 4
      %v593 = vrot.slane %v550, 4
      %v594 = vrot.slane %v553, 5
      %v595 = vor.u32 %v593, %v594
      %v596 = vrot.slane %v595, 4
      %v597 = vrot.slane %v561, 5
      %v598 = vsel %vm583, %v596, %v597
      %v599 = vrot.slane %v558, 4
      %v600 = vor.u32 %v599, %v597
      %v601 = vrot.slane %v600, 4
      %602 = vrot.lane.b32.xlu0 %v589, 8
      %v603 = vpop.permute.xlu0 %602
      %604 = vrot.lane.b32.xlu0 %v592, 8
      %v605 = vpop.permute.xlu0 %604
      %606 = vrot.lane.b32.xlu0 %v598, 8
      %v607 = vpop.permute.xlu0 %606
      %608 = vrot.lane.b32.xlu0 %v601, 8
      %v609 = vpop.permute.xlu0 %608
      %vm614 = vcmask 93248
      %615 = vst.msk [vmem:[#allocation2] sm:$0xf] %vm614, %v603
      %vm616 = vcmask 93248
      %vm617 = vmand %vm616, %vm581
      %v618 = vld [vmem:[#allocation2 + $0x4] sm:$0xf]
      %v619 = vsel %vm617, %v605, %v618
      %620 = vst [vmem:[#allocation2 + $0x4] sm:$0xf] %v619
      %621 = vst.msk [vmem:[#allocation2 + $0x8] sm:$0xf] %vm614, %v607
      %v622 = vld [vmem:[#allocation2 + $0xc] sm:$0xf]
      %v623 = vsel %vm617, %v609, %v622
      %624 = vst [vmem:[#allocation2 + $0xc] sm:$0xf] %v623
      %v625 = vld [vmem:[%s425] sm:$0xff]
      %v626 = vld [vmem:[%s425 + $0x8] sm:$0xff]
      %v627 = vld [vmem:[%s425 + $0x10] sm:$0xff]
      %v628 = vld [vmem:[%s425 + $0x18] sm:$0xff]
      %v629 = vld [vmem:[%s425 + $0x20] sm:$0xff]
      %v630 = vld [vmem:[%s425 + $0x28] sm:$0xff]
      %v631 = vld [vmem:[%s425 + $0x30] sm:$0xff]
      %v632 = vld [vmem:[%s425 + $0x38] sm:$0xff]
      %v633 = vld [vmem:[%s425 + $0x40] sm:$0xff]
      %v634 = vld [vmem:[%s425 + $0x48] sm:$0xff]
      %v635 = vld [vmem:[%s425 + $0x50] sm:$0xff]
      %v636 = vld [vmem:[%s425 + $0x58] sm:$0xff]
      %v637 = vld [vmem:[%s425 + $0x60] sm:$0xff]
      %v638 = vld [vmem:[%s425 + $0x68] sm:$0xff]
      %v639 = vld [vmem:[%s425 + $0x70] sm:$0xff]
      %v640 = vld [vmem:[%s425 + $0x78] sm:$0xff]
      %v641 = vld [vmem:[%s425 + $0x80] sm:$0xff]
      %v642 = vld [vmem:[%s425 + $0x88] sm:$0xff]
      %v643 = vld [vmem:[%s425 + $0x90] sm:$0xff]
      %v644 = vld [vmem:[%s425 + $0x98] sm:$0xff]
      %v645 = vld [vmem:[%s425 + $0xa0] sm:$0xff]
      %v646 = vld [vmem:[%s425 + $0xa8] sm:$0xff]
      %v647 = vld [vmem:[%s425 + $0xb0] sm:$0xff]
      %v648 = vld [vmem:[%s425 + $0xb8] sm:$0xff]
      %v649 = vld [vmem:[%s425 + $0xc0] sm:$0xff]
      %v650 = vld [vmem:[%s425 + $0xc8] sm:$0xff]
      %v651 = vld [vmem:[%s425 + $0xd0] sm:$0xff]
      %v652 = vld [vmem:[%s425 + $0xd8] sm:$0xff]
      %v653 = vld [vmem:[%s425 + $0xe0] sm:$0xff]
      %v654 = vld [vmem:[%s425 + $0xe8] sm:$0xff]
      %v655 = vld [vmem:[%s425 + $0xf0] sm:$0xff]
      %v656 = vld [vmem:[%s425 + $0xf8] sm:$0xff]
      %v657 = vmax.f32 %v625, 0.0
      %v658 = vmax.f32 %v626, 0.0
      %v659 = vmax.f32 %v627, 0.0
      %v660 = vmax.f32 %v628, 0.0
      %v661 = vmax.f32 %v629, 0.0
      %v662 = vmax.f32 %v630, 0.0
      %v663 = vmax.f32 %v631, 0.0
      %v664 = vmax.f32 %v632, 0.0
      %v665 = vmax.f32 %v633, 0.0
      %v666 = vmax.f32 %v634, 0.0
      %v667 = vmax.f32 %v635, 0.0
      %v668 = vmax.f32 %v636, 0.0
      %v669 = vmax.f32 %v637, 0.0
      %v670 = vmax.f32 %v638, 0.0
      %v671 = vmax.f32 %v639, 0.0
      %v672 = vmax.f32 %v640, 0.0
      %v673 = vmax.f32 %v641, 0.0
      %v674 = vmax.f32 %v642, 0.0
      %v675 = vmax.f32 %v643, 0.0
      %v676 = vmax.f32 %v644, 0.0
      %v677 = vmax.f32 %v645, 0.0
      %v678 = vmax.f32 %v646, 0.0
      %v679 = vmax.f32 %v647, 0.0
      %v680 = vmax.f32 %v648, 0.0
      %v681 = vmax.f32 %v649, 0.0
      %v682 = vmax.f32 %v650, 0.0
      %v683 = vmax.f32 %v651, 0.0
      %v684 = vmax.f32 %v652, 0.0
      %v685 = vmax.f32 %v653, 0.0
      %v686 = vmax.f32 %v654, 0.0
      %v687 = vmax.f32 %v655, 0.0
      %v688 = vmax.f32 %v656, 0.0
      %v689 = vpack.c.bf16 %v658, %v657
      %v690 = vpack.c.bf16 %v660, %v659
      %v691 = vpack.c.bf16 %v662, %v661
      %v692 = vpack.c.bf16 %v664, %v663
      %v693 = vpack.c.bf16 %v666, %v665
      %v694 = vpack.c.bf16 %v668, %v667
      %v695 = vpack.c.bf16 %v670, %v669
      %v696 = vpack.c.bf16 %v672, %v671
      %v697 = vpack.c.bf16 %v674, %v673
      %v698 = vpack.c.bf16 %v676, %v675
      %v699 = vpack.c.bf16 %v678, %v677
      %v700 = vpack.c.bf16 %v680, %v679
      %v701 = vpack.c.bf16 %v682, %v681
      %v702 = vpack.c.bf16 %v684, %v683
      %v703 = vpack.c.bf16 %v686, %v685
      %v704 = vpack.c.bf16 %v688, %v687
      %v721 = vunpack.c.l.b16 %v689
      %v722 = vunpack.c.h.b16 %v689
      %v723 = vunpack.c.l.b16 %v690
      %v724 = vunpack.c.h.b16 %v690
      %v725 = vunpack.c.l.b16 %v691
      %v726 = vunpack.c.h.b16 %v691
      %v727 = vunpack.c.l.b16 %v692
      %v728 = vunpack.c.h.b16 %v692
      %v729 = vunpack.c.l.b16 %v693
      %v730 = vunpack.c.h.b16 %v693
      %v731 = vunpack.c.l.b16 %v694
      %v732 = vunpack.c.h.b16 %v694
      %v733 = vunpack.c.l.b16 %v695
      %v734 = vunpack.c.h.b16 %v695
      %v735 = vunpack.c.l.b16 %v696
      %v736 = vunpack.c.h.b16 %v696
      %v737 = vunpack.c.l.b16 %v697
      %v738 = vunpack.c.h.b16 %v697
      %v739 = vunpack.c.l.b16 %v698
      %v740 = vunpack.c.h.b16 %v698
      %v741 = vunpack.c.l.b16 %v699
      %v742 = vunpack.c.h.b16 %v699
      %v743 = vunpack.c.l.b16 %v700
      %v744 = vunpack.c.h.b16 %v700
      %v745 = vunpack.c.l.b16 %v701
      %v746 = vunpack.c.h.b16 %v701
      %v747 = vunpack.c.l.b16 %v702
      %v748 = vunpack.c.h.b16 %v702
      %v749 = vunpack.c.l.b16 %v703
      %v750 = vunpack.c.h.b16 %v703
      %v751 = vunpack.c.l.b16 %v704
      %v752 = vunpack.c.h.b16 %v704
      %v753 = vpack.c.b16 %v721, %v721
      %v754 = vpack.c.b16 %v722, %v722
      %v755 = vpack.c.b16 %v723, %v723
      %v756 = vpack.c.b16 %v724, %v724
      %v757 = vpack.c.b16 %v725, %v725
      %v758 = vpack.c.b16 %v726, %v726
      %v759 = vpack.c.b16 %v727, %v727
      %v760 = vpack.c.b16 %v728, %v728
      %v761 = vpack.c.b16 %v729, %v729
      %v762 = vpack.c.b16 %v730, %v730
      %v763 = vpack.c.b16 %v731, %v731
      %v764 = vpack.c.b16 %v732, %v732
      %v765 = vpack.c.b16 %v733, %v733
      %v766 = vpack.c.b16 %v734, %v734
      %v767 = vpack.c.b16 %v735, %v735
      %v768 = vpack.c.b16 %v736, %v736
      %v769 = vpack.c.b16 %v737, %v737
      %v770 = vpack.c.b16 %v738, %v738
      %v771 = vpack.c.b16 %v739, %v739
      %v772 = vpack.c.b16 %v740, %v740
      %v773 = vpack.c.b16 %v741, %v741
      %v774 = vpack.c.b16 %v742, %v742
      %v775 = vpack.c.b16 %v743, %v743
      %v776 = vpack.c.b16 %v744, %v744
      %v777 = vpack.c.b16 %v745, %v745
      %v778 = vpack.c.b16 %v746, %v746
      %v779 = vpack.c.b16 %v747, %v747
      %v780 = vpack.c.b16 %v748, %v748
      %v781 = vpack.c.b16 %v749, %v749
      %v782 = vpack.c.b16 %v750, %v750
      %v783 = vpack.c.b16 %v751, %v751
      %v784 = vpack.c.b16 %v752, %v752
      %785 = vrot.lane.b32.xlu0 %v753, 4
      %v786 = vpop.permute.xlu0 %785
      %787 = vrot.lane.b32.xlu0 %v754, 4
      %v788 = vpop.permute.xlu0 %787
      %789 = vrot.lane.b32.xlu0 %v755, 4
      %v790 = vpop.permute.xlu0 %789
      %791 = vrot.lane.b32.xlu0 %v756, 4
      %v792 = vpop.permute.xlu0 %791
      %793 = vrot.lane.b32.xlu0 %v757, 4
      %v794 = vpop.permute.xlu0 %793
      %795 = vrot.lane.b32.xlu0 %v758, 4
      %v796 = vpop.permute.xlu0 %795
      %797 = vrot.lane.b32.xlu0 %v759, 4
      %v798 = vpop.permute.xlu0 %797
      %799 = vrot.lane.b32.xlu0 %v760, 4
      %v800 = vpop.permute.xlu0 %799
      %801 = vrot.lane.b32.xlu0 %v761, 4
      %v802 = vpop.permute.xlu0 %801
      %803 = vrot.lane.b32.xlu0 %v762, 4
      %v804 = vpop.permute.xlu0 %803
      %805 = vrot.lane.b32.xlu0 %v763, 4
      %v806 = vpop.permute.xlu0 %805
      %807 = vrot.lane.b32.xlu0 %v764, 4
      %v808 = vpop.permute.xlu0 %807
      %809 = vrot.lane.b32.xlu0 %v765, 4
      %v810 = vpop.permute.xlu0 %809
      %811 = vrot.lane.b32.xlu0 %v766, 4
      %v812 = vpop.permute.xlu0 %811
      %813 = vrot.lane.b32.xlu0 %v767, 4
      %v814 = vpop.permute.xlu0 %813
      %815 = vrot.lane.b32.xlu0 %v768, 4
      %v816 = vpop.permute.xlu0 %815
      %817 = vrot.lane.b32.xlu0 %v769, 4
      %v818 = vpop.permute.xlu0 %817
      %819 = vrot.lane.b32.xlu0 %v770, 4
      %v820 = vpop.permute.xlu0 %819
      %821 = vrot.lane.b32.xlu0 %v771, 4
      %v822 = vpop.permute.xlu0 %821
      %823 = vrot.lane.b32.xlu0 %v772, 4
      %v824 = vpop.permute.xlu0 %823
      %825 = vrot.lane.b32.xlu0 %v773, 4
      %v826 = vpop.permute.xlu0 %825
      %827 = vrot.lane.b32.xlu0 %v774, 4
      %v828 = vpop.permute.xlu0 %827
      %829 = vrot.lane.b32.xlu0 %v775, 4
      %v830 = vpop.permute.xlu0 %829
      %831 = vrot.lane.b32.xlu0 %v776, 4
      %v832 = vpop.permute.xlu0 %831
      %833 = vrot.lane.b32.xlu0 %v777, 4
      %v834 = vpop.permute.xlu0 %833
      %835 = vrot.lane.b32.xlu0 %v778, 4
      %v836 = vpop.permute.xlu0 %835
      %837 = vrot.lane.b32.xlu0 %v779, 4
      %v838 = vpop.permute.xlu0 %837
      %839 = vrot.lane.b32.xlu0 %v780, 4
      %v840 = vpop.permute.xlu0 %839
      %841 = vrot.lane.b32.xlu0 %v781, 4
      %v842 = vpop.permute.xlu0 %841
      %843 = vrot.lane.b32.xlu0 %v782, 4
      %v844 = vpop.permute.xlu0 %843
      %845 = vrot.lane.b32.xlu0 %v783, 4
      %v846 = vpop.permute.xlu0 %845
      %847 = vrot.lane.b32.xlu0 %v784, 4
      %v848 = vpop.permute.xlu0 %847
      %s881 = scalar_lea.vmem [#allocation2], 16
      %882 = vst.msk [vmem:[%s881] sm:$0xf] %vm508, %v786
      %883 = vst.msk [vmem:[%s881 + $0x4] sm:$0xf] %vm508, %v788
      %884 = vst.msk [vmem:[%s881 + $0x8] sm:$0xf] %vm508, %v790
      %885 = vst.msk [vmem:[%s881 + $0xc] sm:$0xf] %vm508, %v792
      %886 = vst.msk [vmem:[%s881 + $0x10] sm:$0xf] %vm508, %v794
      %887 = vst.msk [vmem:[%s881 + $0x14] sm:$0xf] %vm508, %v796
      %888 = vst.msk [vmem:[%s881 + $0x18] sm:$0xf] %vm508, %v798
      %889 = vst.msk [vmem:[%s881 + $0x1c] sm:$0xf] %vm508, %v800
      %890 = vst.msk [vmem:[%s881 + $0x20] sm:$0xf] %vm508, %v802
      %891 = vst.msk [vmem:[%s881 + $0x24] sm:$0xf] %vm508, %v804
      %892 = vst.msk [vmem:[%s881 + $0x28] sm:$0xf] %vm508, %v806
      %893 = vst.msk [vmem:[%s881 + $0x2c] sm:$0xf] %vm508, %v808
      %894 = vst.msk [vmem:[%s881 + $0x30] sm:$0xf] %vm508, %v810
      %895 = vst.msk [vmem:[%s881 + $0x34] sm:$0xf] %vm508, %v812
      %896 = vst.msk [vmem:[%s881 + $0x38] sm:$0xf] %vm508, %v814
      %897 = vst.msk [vmem:[%s881 + $0x3c] sm:$0xf] %vm508, %v816
      %898 = vst.msk [vmem:[%s881 + $0x40] sm:$0xf] %vm508, %v818
      %899 = vst.msk [vmem:[%s881 + $0x44] sm:$0xf] %vm508, %v820
      %900 = vst.msk [vmem:[%s881 + $0x48] sm:$0xf] %vm508, %v822
      %901 = vst.msk [vmem:[%s881 + $0x4c] sm:$0xf] %vm508, %v824
      %902 = vst.msk [vmem:[%s881 + $0x50] sm:$0xf] %vm508, %v826
      %903 = vst.msk [vmem:[%s881 + $0x54] sm:$0xf] %vm508, %v828
      %904 = vst.msk [vmem:[%s881 + $0x58] sm:$0xf] %vm508, %v830
      %905 = vst.msk [vmem:[%s881 + $0x5c] sm:$0xf] %vm508, %v832
      %906 = vst.msk [vmem:[%s881 + $0x60] sm:$0xf] %vm508, %v834
      %907 = vst.msk [vmem:[%s881 + $0x64] sm:$0xf] %vm508, %v836
      %908 = vst.msk [vmem:[%s881 + $0x68] sm:$0xf] %vm508, %v838
      %909 = vst.msk [vmem:[%s881 + $0x6c] sm:$0xf] %vm508, %v840
      %910 = vst.msk [vmem:[%s881 + $0x70] sm:$0xf] %vm508, %v842
      %911 = vst.msk [vmem:[%s881 + $0x74] sm:$0xf] %vm508, %v844
      %912 = vst.msk [vmem:[%s881 + $0x78] sm:$0xf] %vm508, %v846
      %913 = vst.msk [vmem:[%s881 + $0x7c] sm:$0xf] %vm508, %v848
      %v914 = vld [vmem:[%s881] sm:$0x1]
      %v915 = vsel %vm515, 0, %v914
      %916 = vst [vmem:[%s881] sm:$0x1] %v915
      %v917 = vld [vmem:[%s881 + $0x8] sm:$0x1]
      %v918 = vsel %vm515, 0, %v917
      %919 = vst [vmem:[%s881 + $0x8] sm:$0x1] %v918
      %v920 = vld [vmem:[%s881 + $0x10] sm:$0x1]
      %v921 = vsel %vm515, 0, %v920
      %922 = vst [vmem:[%s881 + $0x10] sm:$0x1] %v921
      %v923 = vld [vmem:[%s881 + $0x18] sm:$0x1]
      %v924 = vsel %vm515, 0, %v923
      %925 = vst [vmem:[%s881 + $0x18] sm:$0x1] %v924
      %v926 = vld [vmem:[%s881 + $0x20] sm:$0x1]
      %v927 = vsel %vm515, 0, %v926
      %928 = vst [vmem:[%s881 + $0x20] sm:$0x1] %v927
      %v929 = vld [vmem:[%s881 + $0x28] sm:$0x1]
      %v930 = vsel %vm515, 0, %v929
      %931 = vst [vmem:[%s881 + $0x28] sm:$0x1] %v930
      %v932 = vld [vmem:[%s881 + $0x30] sm:$0x1]
      %v933 = vsel %vm515, 0, %v932
      %934 = vst [vmem:[%s881 + $0x30] sm:$0x1] %v933
      %v935 = vld [vmem:[%s881 + $0x38] sm:$0x1]
      %v936 = vsel %vm515, 0, %v935
      %937 = vst [vmem:[%s881 + $0x38] sm:$0x1] %v936
      %v938 = vld [vmem:[%s881 + $0x40] sm:$0x1]
      %v939 = vsel %vm515, 0, %v938
      %940 = vst [vmem:[%s881 + $0x40] sm:$0x1] %v939
      %v941 = vld [vmem:[%s881 + $0x48] sm:$0x1]
      %v942 = vsel %vm515, 0, %v941
      %943 = vst [vmem:[%s881 + $0x48] sm:$0x1] %v942
      %v944 = vld [vmem:[%s881 + $0x50] sm:$0x1]
      %v945 = vsel %vm515, 0, %v944
      %946 = vst [vmem:[%s881 + $0x50] sm:$0x1] %v945
      %v947 = vld [vmem:[%s881 + $0x58] sm:$0x1]
      %v948 = vsel %vm515, 0, %v947
      %949 = vst [vmem:[%s881 + $0x58] sm:$0x1] %v948
      %v950 = vld [vmem:[%s881 + $0x60] sm:$0x1]
      %v951 = vsel %vm515, 0, %v950
      %952 = vst [vmem:[%s881 + $0x60] sm:$0x1] %v951
      %v953 = vld [vmem:[%s881 + $0x68] sm:$0x1]
      %v954 = vsel %vm515, 0, %v953
      %955 = vst [vmem:[%s881 + $0x68] sm:$0x1] %v954
      %v956 = vld [vmem:[%s881 + $0x70] sm:$0x1]
      %v957 = vsel %vm515, 0, %v956
      %958 = vst [vmem:[%s881 + $0x70] sm:$0x1] %v957
      %v959 = vld [vmem:[%s881 + $0x78] sm:$0x1]
      %v960 = vsel %vm515, 0, %v959
      %961 = vst [vmem:[%s881 + $0x78] sm:$0x1] %v960
      %v962 = vld [vmem:[%s881 + $0x4] sm:$0x8]
      %v963 = vsel %vm524, 0, %v962
      %964 = vst [vmem:[%s881 + $0x4] sm:$0x8] %v963
      %v965 = vld [vmem:[%s881 + $0xc] sm:$0x8]
      %v966 = vsel %vm524, 0, %v965
      %967 = vst [vmem:[%s881 + $0xc] sm:$0x8] %v966
      %v968 = vld [vmem:[%s881 + $0x14] sm:$0x8]
      %v969 = vsel %vm524, 0, %v968
      %970 = vst [vmem:[%s881 + $0x14] sm:$0x8] %v969
      %v971 = vld [vmem:[%s881 + $0x1c] sm:$0x8]
      %v972 = vsel %vm524, 0, %v971
      %973 = vst [vmem:[%s881 + $0x1c] sm:$0x8] %v972
      %v974 = vld [vmem:[%s881 + $0x24] sm:$0x8]
      %v975 = vsel %vm524, 0, %v974
      %976 = vst [vmem:[%s881 + $0x24] sm:$0x8] %v975
      %v977 = vld [vmem:[%s881 + $0x2c] sm:$0x8]
      %v978 = vsel %vm524, 0, %v977
      %979 = vst [vmem:[%s881 + $0x2c] sm:$0x8] %v978
      %v980 = vld [vmem:[%s881 + $0x34] sm:$0x8]
      %v981 = vsel %vm524, 0, %v980
      %982 = vst [vmem:[%s881 + $0x34] sm:$0x8] %v981
      %v983 = vld [vmem:[%s881 + $0x3c] sm:$0x8]
      %v984 = vsel %vm524, 0, %v983
      %985 = vst [vmem:[%s881 + $0x3c] sm:$0x8] %v984
      %v986 = vld [vmem:[%s881 + $0x44] sm:$0x8]
      %v987 = vsel %vm524, 0, %v986
      %988 = vst [vmem:[%s881 + $0x44] sm:$0x8] %v987
      %v989 = vld [vmem:[%s881 + $0x4c] sm:$0x8]
      %v990 = vsel %vm524, 0, %v989
      %991 = vst [vmem:[%s881 + $0x4c] sm:$0x8] %v990
      %v992 = vld [vmem:[%s881 + $0x54] sm:$0x8]
      %v993 = vsel %vm524, 0, %v992
      %994 = vst [vmem:[%s881 + $0x54] sm:$0x8] %v993
      %v995 = vld [vmem:[%s881 + $0x5c] sm:$0x8]
      %v996 = vsel %vm524, 0, %v995
      %997 = vst [vmem:[%s881 + $0x5c] sm:$0x8] %v996
      %v998 = vld [vmem:[%s881 + $0x64] sm:$0x8]
      %v999 = vsel %vm524, 0, %v998
      %1000 = vst [vmem:[%s881 + $0x64] sm:$0x8] %v999
      %v1001 = vld [vmem:[%s881 + $0x6c] sm:$0x8]
      %v1002 = vsel %vm524, 0, %v1001
      %1003 = vst [vmem:[%s881 + $0x6c] sm:$0x8] %v1002
      %v1004 = vld [vmem:[%s881 + $0x74] sm:$0x8]
      %v1005 = vsel %vm524, 0, %v1004
      %1006 = vst [vmem:[%s881 + $0x74] sm:$0x8] %v1005
      %v1007 = vld [vmem:[%s881 + $0x7c] sm:$0x8]
      %v1008 = vsel %vm524, 0, %v1007
      %1009 = vst [vmem:[%s881 + $0x7c] sm:$0x8] %v1008
      %v1011 = vshrl.u32 %v753, 16
      %v1013 = vrot.slane %v1011, 7
      %v1014 = vshll.u32 %v753, 16
      %v1016 = vor.u32 %v1013, %v1014
      %v1017 = vrot.slane %v1013, 4
      %v1019 = vshrl.u32 %v754, 16
      %v1021 = vrot.slane %v1019, 7
      %v1022 = vshll.u32 %v754, 16
      %v1024 = vor.u32 %v1021, %v1022
      %v1025 = vsel %vm532, %v1017, %v1024
      %v1027 = vshrl.u32 %v755, 16
      %v1029 = vrot.slane %v1027, 7
      %v1030 = vshll.u32 %v755, 16
      %v1032 = vor.u32 %v1029, %v1030
      %v1033 = vrot.slane %v1029, 4
      %v1035 = vshrl.u32 %v756, 16
      %v1037 = vrot.slane %v1035, 7
      %v1038 = vshll.u32 %v756, 16
      %v1040 = vor.u32 %v1037, %v1038
      %v1041 = vsel %vm532, %v1033, %v1040
      %v1043 = vshrl.u32 %v757, 16
      %v1045 = vrot.slane %v1043, 7
      %v1046 = vshll.u32 %v757, 16
      %v1048 = vor.u32 %v1045, %v1046
      %v1049 = vrot.slane %v1045, 4
      %v1051 = vshrl.u32 %v758, 16
      %v1053 = vrot.slane %v1051, 7
      %v1054 = vshll.u32 %v758, 16
      %v1056 = vor.u32 %v1053, %v1054
      %v1057 = vsel %vm532, %v1049, %v1056
      %v1059 = vshrl.u32 %v759, 16
      %v1061 = vrot.slane %v1059, 7
      %v1062 = vshll.u32 %v759, 16
      %v1064 = vor.u32 %v1061, %v1062
      %v1065 = vrot.slane %v1061, 4
      %v1067 = vshrl.u32 %v760, 16
      %v1069 = vrot.slane %v1067, 7
      %v1070 = vshll.u32 %v760, 16
      %v1072 = vor.u32 %v1069, %v1070
      %v1073 = vsel %vm532, %v1065, %v1072
      %v1075 = vshrl.u32 %v761, 16
      %v1077 = vrot.slane %v1075, 7
      %v1078 = vshll.u32 %v761, 16
      %v1080 = vor.u32 %v1077, %v1078
      %v1081 = vrot.slane %v1077, 4
      %v1083 = vshrl.u32 %v762, 16
      %v1085 = vrot.slane %v1083, 7
      %v1086 = vshll.u32 %v762, 16
      %v1088 = vor.u32 %v1085, %v1086
      %v1089 = vsel %vm532, %v1081, %v1088
      %v1091 = vshrl.u32 %v763, 16
      %v1093 = vrot.slane %v1091, 7
      %v1094 = vshll.u32 %v763, 16
      %v1096 = vor.u32 %v1093, %v1094
      %v1097 = vrot.slane %v1093, 4
      %v1099 = vshrl.u32 %v764, 16
      %v1101 = vrot.slane %v1099, 7
      %v1102 = vshll.u32 %v764, 16
      %v1104 = vor.u32 %v1101, %v1102
      %v1105 = vsel %vm532, %v1097, %v1104
      %v1107 = vshrl.u32 %v765, 16
      %v1109 = vrot.slane %v1107, 7
      %v1110 = vshll.u32 %v765, 16
      %v1112 = vor.u32 %v1109, %v1110
      %v1113 = vrot.slane %v1109, 4
      %v1115 = vshrl.u32 %v766, 16
      %v1117 = vrot.slane %v1115, 7
      %v1118 = vshll.u32 %v766, 16
      %v1120 = vor.u32 %v1117, %v1118
      %v1121 = vsel %vm532, %v1113, %v1120
      %v1123 = vshrl.u32 %v767, 16
      %v1125 = vrot.slane %v1123, 7
      %v1126 = vshll.u32 %v767, 16
      %v1128 = vor.u32 %v1125, %v1126
      %v1129 = vrot.slane %v1125, 4
      %v1131 = vshrl.u32 %v768, 16
      %v1133 = vrot.slane %v1131, 7
      %v1134 = vshll.u32 %v768, 16
      %v1136 = vor.u32 %v1133, %v1134
      %v1137 = vsel %vm532, %v1129, %v1136
      %v1139 = vshrl.u32 %v769, 16
      %v1141 = vrot.slane %v1139, 7
      %v1142 = vshll.u32 %v769, 16
      %v1144 = vor.u32 %v1141, %v1142
      %v1145 = vrot.slane %v1141, 4
      %v1147 = vshrl.u32 %v770, 16
      %v1149 = vrot.slane %v1147, 7
      %v1150 = vshll.u32 %v770, 16
      %v1152 = vor.u32 %v1149, %v1150
      %v1153 = vsel %vm532, %v1145, %v1152
      %v1155 = vshrl.u32 %v771, 16
      %v1157 = vrot.slane %v1155, 7
      %v1158 = vshll.u32 %v771, 16
      %v1160 = vor.u32 %v1157, %v1158
      %v1161 = vrot.slane %v1157, 4
      %v1163 = vshrl.u32 %v772, 16
      %v1165 = vrot.slane %v1163, 7
      %v1166 = vshll.u32 %v772, 16
      %v1168 = vor.u32 %v1165, %v1166
      %v1169 = vsel %vm532, %v1161, %v1168
      %v1171 = vshrl.u32 %v773, 16
      %v1173 = vrot.slane %v1171, 7
      %v1174 = vshll.u32 %v773, 16
      %v1176 = vor.u32 %v1173, %v1174
      %v1177 = vrot.slane %v1173, 4
      %v1179 = vshrl.u32 %v774, 16
      %v1181 = vrot.slane %v1179, 7
      %v1182 = vshll.u32 %v774, 16
      %v1184 = vor.u32 %v1181, %v1182
      %v1185 = vsel %vm532, %v1177, %v1184
      %v1187 = vshrl.u32 %v775, 16
      %v1189 = vrot.slane %v1187, 7
      %v1190 = vshll.u32 %v775, 16
      %v1192 = vor.u32 %v1189, %v1190
      %v1193 = vrot.slane %v1189, 4
      %v1195 = vshrl.u32 %v776, 16
      %v1197 = vrot.slane %v1195, 7
      %v1198 = vshll.u32 %v776, 16
      %v1200 = vor.u32 %v1197, %v1198
      %v1201 = vsel %vm532, %v1193, %v1200
      %v1203 = vshrl.u32 %v777, 16
      %v1205 = vrot.slane %v1203, 7
      %v1206 = vshll.u32 %v777, 16
      %v1208 = vor.u32 %v1205, %v1206
      %v1209 = vrot.slane %v1205, 4
      %v1211 = vshrl.u32 %v778, 16
      %v1213 = vrot.slane %v1211, 7
      %v1214 = vshll.u32 %v778, 16
      %v1216 = vor.u32 %v1213, %v1214
      %v1217 = vsel %vm532, %v1209, %v1216
      %v1219 = vshrl.u32 %v779, 16
      %v1221 = vrot.slane %v1219, 7
      %v1222 = vshll.u32 %v779, 16
      %v1224 = vor.u32 %v1221, %v1222
      %v1225 = vrot.slane %v1221, 4
      %v1227 = vshrl.u32 %v780, 16
      %v1229 = vrot.slane %v1227, 7
      %v1230 = vshll.u32 %v780, 16
      %v1232 = vor.u32 %v1229, %v1230
      %v1233 = vsel %vm532, %v1225, %v1232
      %v1235 = vshrl.u32 %v781, 16
      %v1237 = vrot.slane %v1235, 7
      %v1238 = vshll.u32 %v781, 16
      %v1240 = vor.u32 %v1237, %v1238
      %v1241 = vrot.slane %v1237, 4
      %v1243 = vshrl.u32 %v782, 16
      %v1245 = vrot.slane %v1243, 7
      %v1246 = vshll.u32 %v782, 16
      %v1248 = vor.u32 %v1245, %v1246
      %v1249 = vsel %vm532, %v1241, %v1248
      %v1251 = vshrl.u32 %v783, 16
      %v1253 = vrot.slane %v1251, 7
      %v1254 = vshll.u32 %v783, 16
      %v1256 = vor.u32 %v1253, %v1254
      %v1257 = vrot.slane %v1253, 4
      %v1259 = vshrl.u32 %v784, 16
      %v1261 = vrot.slane %v1259, 7
      %v1262 = vshll.u32 %v784, 16
      %v1264 = vor.u32 %v1261, %v1262
      %v1265 = vsel %vm532, %v1257, %v1264
      %v1298 = vld [vmem:[%s881] sm:$0xf]
      %v1299 = vsel %vm571, %v1016, %v1298
      %1300 = vst [vmem:[%s881] sm:$0xf] %v1299
      %1301 = vst.msk [vmem:[%s881 + $0x4] sm:$0xf] %vm575, %v1025
      %v1302 = vld [vmem:[%s881 + $0x8] sm:$0xf]
      %v1303 = vsel %vm571, %v1032, %v1302
      %1304 = vst [vmem:[%s881 + $0x8] sm:$0xf] %v1303
      %1305 = vst.msk [vmem:[%s881 + $0xc] sm:$0xf] %vm575, %v1041
      %v1306 = vld [vmem:[%s881 + $0x10] sm:$0xf]
      %v1307 = vsel %vm571, %v1048, %v1306
      %1308 = vst [vmem:[%s881 + $0x10] sm:$0xf] %v1307
      %1309 = vst.msk [vmem:[%s881 + $0x14] sm:$0xf] %vm575, %v1057
      %v1310 = vld [vmem:[%s881 + $0x18] sm:$0xf]
      %v1311 = vsel %vm571, %v1064, %v1310
      %1312 = vst [vmem:[%s881 + $0x18] sm:$0xf] %v1311
      %1313 = vst.msk [vmem:[%s881 + $0x1c] sm:$0xf] %vm575, %v1073
      %v1314 = vld [vmem:[%s881 + $0x20] sm:$0xf]
      %v1315 = vsel %vm571, %v1080, %v1314
      %1316 = vst [vmem:[%s881 + $0x20] sm:$0xf] %v1315
      %1317 = vst.msk [vmem:[%s881 + $0x24] sm:$0xf] %vm575, %v1089
      %v1318 = vld [vmem:[%s881 + $0x28] sm:$0xf]
      %v1319 = vsel %vm571, %v1096, %v1318
      %1320 = vst [vmem:[%s881 + $0x28] sm:$0xf] %v1319
      %1321 = vst.msk [vmem:[%s881 + $0x2c] sm:$0xf] %vm575, %v1105
      %v1322 = vld [vmem:[%s881 + $0x30] sm:$0xf]
      %v1323 = vsel %vm571, %v1112, %v1322
      %1324 = vst [vmem:[%s881 + $0x30] sm:$0xf] %v1323
      %1325 = vst.msk [vmem:[%s881 + $0x34] sm:$0xf] %vm575, %v1121
      %v1326 = vld [vmem:[%s881 + $0x38] sm:$0xf]
      %v1327 = vsel %vm571, %v1128, %v1326
      %1328 = vst [vmem:[%s881 + $0x38] sm:$0xf] %v1327
      %1329 = vst.msk [vmem:[%s881 + $0x3c] sm:$0xf] %vm575, %v1137
      %v1330 = vld [vmem:[%s881 + $0x40] sm:$0xf]
      %v1331 = vsel %vm571, %v1144, %v1330
      %1332 = vst [vmem:[%s881 + $0x40] sm:$0xf] %v1331
      %1333 = vst.msk [vmem:[%s881 + $0x44] sm:$0xf] %vm575, %v1153
      %v1334 = vld [vmem:[%s881 + $0x48] sm:$0xf]
      %v1335 = vsel %vm571, %v1160, %v1334
      %1336 = vst [vmem:[%s881 + $0x48] sm:$0xf] %v1335
      %1337 = vst.msk [vmem:[%s881 + $0x4c] sm:$0xf] %vm575, %v1169
      %v1338 = vld [vmem:[%s881 + $0x50] sm:$0xf]
      %v1339 = vsel %vm571, %v1176, %v1338
      %1340 = vst [vmem:[%s881 + $0x50] sm:$0xf] %v1339
      %1341 = vst.msk [vmem:[%s881 + $0x54] sm:$0xf] %vm575, %v1185
      %v1342 = vld [vmem:[%s881 + $0x58] sm:$0xf]
      %v1343 = vsel %vm571, %v1192, %v1342
      %1344 = vst [vmem:[%s881 + $0x58] sm:$0xf] %v1343
      %1345 = vst.msk [vmem:[%s881 + $0x5c] sm:$0xf] %vm575, %v1201
      %v1346 = vld [vmem:[%s881 + $0x60] sm:$0xf]
      %v1347 = vsel %vm571, %v1208, %v1346
      %1348 = vst [vmem:[%s881 + $0x60] sm:$0xf] %v1347
      %1349 = vst.msk [vmem:[%s881 + $0x64] sm:$0xf] %vm575, %v1217
      %v1350 = vld [vmem:[%s881 + $0x68] sm:$0xf]
      %v1351 = vsel %vm571, %v1224, %v1350
      %1352 = vst [vmem:[%s881 + $0x68] sm:$0xf] %v1351
      %1353 = vst.msk [vmem:[%s881 + $0x6c] sm:$0xf] %vm575, %v1233
      %v1354 = vld [vmem:[%s881 + $0x70] sm:$0xf]
      %v1355 = vsel %vm571, %v1240, %v1354
      %1356 = vst [vmem:[%s881 + $0x70] sm:$0xf] %v1355
      %1357 = vst.msk [vmem:[%s881 + $0x74] sm:$0xf] %vm575, %v1249
      %v1358 = vld [vmem:[%s881 + $0x78] sm:$0xf]
      %v1359 = vsel %vm571, %v1256, %v1358
      %1360 = vst [vmem:[%s881 + $0x78] sm:$0xf] %v1359
      %1361 = vst.msk [vmem:[%s881 + $0x7c] sm:$0xf] %vm575, %v1265
      %v1362 = vrot.slane %v1011, 4
      %v1363 = vrot.slane %v1014, 5
      %v1364 = vor.u32 %v1362, %v1363
      %v1365 = vrot.slane %v1364, 4
      %v1366 = vrot.slane %v1022, 5
      %v1367 = vsel %vm583, %v1365, %v1366
      %v1368 = vrot.slane %v1019, 4
      %v1369 = vor.u32 %v1368, %v1366
      %v1370 = vrot.slane %v1369, 4
      %v1371 = vrot.slane %v1027, 4
      %v1372 = vrot.slane %v1030, 5
      %v1373 = vor.u32 %v1371, %v1372
      %v1374 = vrot.slane %v1373, 4
      %v1375 = vrot.slane %v1038, 5
      %v1376 = vsel %vm583, %v1374, %v1375
      %v1377 = vrot.slane %v1035, 4
      %v1378 = vor.u32 %v1377, %v1375
      %v1379 = vrot.slane %v1378, 4
      %v1380 = vrot.slane %v1043, 4
      %v1381 = vrot.slane %v1046, 5
      %v1382 = vor.u32 %v1380, %v1381
      %v1383 = vrot.slane %v1382, 4
      %v1384 = vrot.slane %v1054, 5
      %v1385 = vsel %vm583, %v1383, %v1384
      %v1386 = vrot.slane %v1051, 4
      %v1387 = vor.u32 %v1386, %v1384
      %v1388 = vrot.slane %v1387, 4
      %v1389 = vrot.slane %v1059, 4
      %v1390 = vrot.slane %v1062, 5
      %v1391 = vor.u32 %v1389, %v1390
      %v1392 = vrot.slane %v1391, 4
      %v1393 = vrot.slane %v1070, 5
      %v1394 = vsel %vm583, %v1392, %v1393
      %v1395 = vrot.slane %v1067, 4
      %v1396 = vor.u32 %v1395, %v1393
      %v1397 = vrot.slane %v1396, 4
      %v1398 = vrot.slane %v1075, 4
      %v1399 = vrot.slane %v1078, 5
      %v1400 = vor.u32 %v1398, %v1399
      %v1401 = vrot.slane %v1400, 4
      %v1402 = vrot.slane %v1086, 5
      %v1403 = vsel %vm583, %v1401, %v1402
      %v1404 = vrot.slane %v1083, 4
      %v1405 = vor.u32 %v1404, %v1402
      %v1406 = vrot.slane %v1405, 4
      %v1407 = vrot.slane %v1091, 4
      %v1408 = vrot.slane %v1094, 5
      %v1409 = vor.u32 %v1407, %v1408
      %v1410 = vrot.slane %v1409, 4
      %v1411 = vrot.slane %v1102, 5
      %v1412 = vsel %vm583, %v1410, %v1411
      %v1413 = vrot.slane %v1099, 4
      %v1414 = vor.u32 %v1413, %v1411
      %v1415 = vrot.slane %v1414, 4
      %v1416 = vrot.slane %v1107, 4
      %v1417 = vrot.slane %v1110, 5
      %v1418 = vor.u32 %v1416, %v1417
      %v1419 = vrot.slane %v1418, 4
      %v1420 = vrot.slane %v1118, 5
      %v1421 = vsel %vm583, %v1419, %v1420
      %v1422 = vrot.slane %v1115, 4
      %v1423 = vor.u32 %v1422, %v1420
      %v1424 = vrot.slane %v1423, 4
      %v1425 = vrot.slane %v1123, 4
      %v1426 = vrot.slane %v1126, 5
      %v1427 = vor.u32 %v1425, %v1426
      %v1428 = vrot.slane %v1427, 4
      %v1429 = vrot.slane %v1134, 5
      %v1430 = vsel %vm583, %v1428, %v1429
      %v1431 = vrot.slane %v1131, 4
      %v1432 = vor.u32 %v1431, %v1429
      %v1433 = vrot.slane %v1432, 4
      %v1434 = vrot.slane %v1139, 4
      %v1435 = vrot.slane %v1142, 5
      %v1436 = vor.u32 %v1434, %v1435
      %v1437 = vrot.slane %v1436, 4
      %v1438 = vrot.slane %v1150, 5
      %v1439 = vsel %vm583, %v1437, %v1438
      %v1440 = vrot.slane %v1147, 4
      %v1441 = vor.u32 %v1440, %v1438
      %v1442 = vrot.slane %v1441, 4
      %v1443 = vrot.slane %v1155, 4
      %v1444 = vrot.slane %v1158, 5
      %v1445 = vor.u32 %v1443, %v1444
      %v1446 = vrot.slane %v1445, 4
      %v1447 = vrot.slane %v1166, 5
      %v1448 = vsel %vm583, %v1446, %v1447
      %v1449 = vrot.slane %v1163, 4
      %v1450 = vor.u32 %v1449, %v1447
      %v1451 = vrot.slane %v1450, 4
      %v1452 = vrot.slane %v1171, 4
      %v1453 = vrot.slane %v1174, 5
      %v1454 = vor.u32 %v1452, %v1453
      %v1455 = vrot.slane %v1454, 4
      %v1456 = vrot.slane %v1182, 5
      %v1457 = vsel %vm583, %v1455, %v1456
      %v1458 = vrot.slane %v1179, 4
      %v1459 = vor.u32 %v1458, %v1456
      %v1460 = vrot.slane %v1459, 4
      %v1461 = vrot.slane %v1187, 4
      %v1462 = vrot.slane %v1190, 5
      %v1463 = vor.u32 %v1461, %v1462
      %v1464 = vrot.slane %v1463, 4
      %v1465 = vrot.slane %v1198, 5
      %v1466 = vsel %vm583, %v1464, %v1465
      %v1467 = vrot.slane %v1195, 4
      %v1468 = vor.u32 %v1467, %v1465
      %v1469 = vrot.slane %v1468, 4
      %v1470 = vrot.slane %v1203, 4
      %v1471 = vrot.slane %v1206, 5
      %v1472 = vor.u32 %v1470, %v1471
      %v1473 = vrot.slane %v1472, 4
      %v1474 = vrot.slane %v1214, 5
      %v1475 = vsel %vm583, %v1473, %v1474
      %v1476 = vrot.slane %v1211, 4
      %v1477 = vor.u32 %v1476, %v1474
      %v1478 = vrot.slane %v1477, 4
      %v1479 = vrot.slane %v1219, 4
      %v1480 = vrot.slane %v1222, 5
      %v1481 = vor.u32 %v1479, %v1480
      %v1482 = vrot.slane %v1481, 4
      %v1483 = vrot.slane %v1230, 5
      %v1484 = vsel %vm583, %v1482, %v1483
      %v1485 = vrot.slane %v1227, 4
      %v1486 = vor.u32 %v1485, %v1483
      %v1487 = vrot.slane %v1486, 4
      %v1488 = vrot.slane %v1235, 4
      %v1489 = vrot.slane %v1238, 5
      %v1490 = vor.u32 %v1488, %v1489
      %v1491 = vrot.slane %v1490, 4
      %v1492 = vrot.slane %v1246, 5
      %v1493 = vsel %vm583, %v1491, %v1492
      %v1494 = vrot.slane %v1243, 4
      %v1495 = vor.u32 %v1494, %v1492
      %v1496 = vrot.slane %v1495, 4
      %v1497 = vrot.slane %v1251, 4
      %v1498 = vrot.slane %v1254, 5
      %v1499 = vor.u32 %v1497, %v1498
      %v1500 = vrot.slane %v1499, 4
      %v1501 = vrot.slane %v1262, 5
      %v1502 = vsel %vm583, %v1500, %v1501
      %v1503 = vrot.slane %v1259, 4
      %v1504 = vor.u32 %v1503, %v1501
      %v1505 = vrot.slane %v1504, 4
      %1506 = vrot.lane.b32.xlu0 %v1367, 8
      %v1507 = vpop.permute.xlu0 %1506
      %1508 = vrot.lane.b32.xlu0 %v1370, 8
      %v1509 = vpop.permute.xlu0 %1508
      %1510 = vrot.lane.b32.xlu0 %v1376, 8
      %v1511 = vpop.permute.xlu0 %1510
      %1512 = vrot.lane.b32.xlu0 %v1379, 8
      %v1513 = vpop.permute.xlu0 %1512
      %1514 = vrot.lane.b32.xlu0 %v1385, 8
      %v1515 = vpop.permute.xlu0 %1514
      %1516 = vrot.lane.b32.xlu0 %v1388, 8
      %v1517 = vpop.permute.xlu0 %1516
      %1518 = vrot.lane.b32.xlu0 %v1394, 8
      %v1519 = vpop.permute.xlu0 %1518
      %1520 = vrot.lane.b32.xlu0 %v1397, 8
      %v1521 = vpop.permute.xlu0 %1520
      %1522 = vrot.lane.b32.xlu0 %v1403, 8
      %v1523 = vpop.permute.xlu0 %1522
      %1524 = vrot.lane.b32.xlu0 %v1406, 8
      %v1525 = vpop.permute.xlu0 %1524
      %1526 = vrot.lane.b32.xlu0 %v1412, 8
      %v1527 = vpop.permute.xlu0 %1526
      %1528 = vrot.lane.b32.xlu0 %v1415, 8
      %v1529 = vpop.permute.xlu0 %1528
      %1530 = vrot.lane.b32.xlu0 %v1421, 8
      %v1531 = vpop.permute.xlu0 %1530
      %1532 = vrot.lane.b32.xlu0 %v1424, 8
      %v1533 = vpop.permute.xlu0 %1532
      %1534 = vrot.lane.b32.xlu0 %v1430, 8
      %v1535 = vpop.permute.xlu0 %1534
      %1536 = vrot.lane.b32.xlu0 %v1433, 8
      %v1537 = vpop.permute.xlu0 %1536
      %1538 = vrot.lane.b32.xlu0 %v1439, 8
      %v1539 = vpop.permute.xlu0 %1538
      %1540 = vrot.lane.b32.xlu0 %v1442, 8
      %v1541 = vpop.permute.xlu0 %1540
      %1542 = vrot.lane.b32.xlu0 %v1448, 8
      %v1543 = vpop.permute.xlu0 %1542
      %1544 = vrot.lane.b32.xlu0 %v1451, 8
      %v1545 = vpop.permute.xlu0 %1544
      %1546 = vrot.lane.b32.xlu0 %v1457, 8
      %v1547 = vpop.permute.xlu0 %1546
      %1548 = vrot.lane.b32.xlu0 %v1460, 8
      %v1549 = vpop.permute.xlu0 %1548
      %1550 = vrot.lane.b32.xlu0 %v1466, 8
      %v1551 = vpop.permute.xlu0 %1550
      %1552 = vrot.lane.b32.xlu0 %v1469, 8
      %v1553 = vpop.permute.xlu0 %1552
      %1554 = vrot.lane.b32.xlu0 %v1475, 8
      %v1555 = vpop.permute.xlu0 %1554
      %1556 = vrot.lane.b32.xlu0 %v1478, 8
      %v1557 = vpop.permute.xlu0 %1556
      %1558 = vrot.lane.b32.xlu0 %v1484, 8
      %v1559 = vpop.permute.xlu0 %1558
      %1560 = vrot.lane.b32.xlu0 %v1487, 8
      %v1561 = vpop.permute.xlu0 %1560
      %1562 = vrot.lane.b32.xlu0 %v1493, 8
      %v1563 = vpop.permute.xlu0 %1562
      %1564 = vrot.lane.b32.xlu0 %v1496, 8
      %v1565 = vpop.permute.xlu0 %1564
      %1566 = vrot.lane.b32.xlu0 %v1502, 8
      %v1567 = vpop.permute.xlu0 %1566
      %1568 = vrot.lane.b32.xlu0 %v1505, 8
      %v1569 = vpop.permute.xlu0 %1568
      %1602 = vst.msk [vmem:[%s881] sm:$0xf] %vm614, %v1507
      %v1603 = vld [vmem:[%s881 + $0x4] sm:$0xf]
      %v1604 = vsel %vm617, %v1509, %v1603
      %1605 = vst [vmem:[%s881 + $0x4] sm:$0xf] %v1604
      %1606 = vst.msk [vmem:[%s881 + $0x8] sm:$0xf] %vm614, %v1511
      %v1607 = vld [vmem:[%s881 + $0xc] sm:$0xf]
      %v1608 = vsel %vm617, %v1513, %v1607
      %1609 = vst [vmem:[%s881 + $0xc] sm:$0xf] %v1608
      %1610 = vst.msk [vmem:[%s881 + $0x10] sm:$0xf] %vm614, %v1515
      %v1611 = vld [vmem:[%s881 + $0x14] sm:$0xf]
      %v1612 = vsel %vm617, %v1517, %v1611
      %1613 = vst [vmem:[%s881 + $0x14] sm:$0xf] %v1612
      %1614 = vst.msk [vmem:[%s881 + $0x18] sm:$0xf] %vm614, %v1519
      %v1615 = vld [vmem:[%s881 + $0x1c] sm:$0xf]
      %v1616 = vsel %vm617, %v1521, %v1615
      %1617 = vst [vmem:[%s881 + $0x1c] sm:$0xf] %v1616
      %1618 = vst.msk [vmem:[%s881 + $0x20] sm:$0xf] %vm614, %v1523
      %v1619 = vld [vmem:[%s881 + $0x24] sm:$0xf]
      %v1620 = vsel %vm617, %v1525, %v1619
      %1621 = vst [vmem:[%s881 + $0x24] sm:$0xf] %v1620
      %1622 = vst.msk [vmem:[%s881 + $0x28] sm:$0xf] %vm614, %v1527
      %v1623 = vld [vmem:[%s881 + $0x2c] sm:$0xf]
      %v1624 = vsel %vm617, %v1529, %v1623
      %1625 = vst [vmem:[%s881 + $0x2c] sm:$0xf] %v1624
      %1626 = vst.msk [vmem:[%s881 + $0x30] sm:$0xf] %vm614, %v1531
      %v1627 = vld [vmem:[%s881 + $0x34] sm:$0xf]
      %v1628 = vsel %vm617, %v1533, %v1627
      %1629 = vst [vmem:[%s881 + $0x34] sm:$0xf] %v1628
      %1630 = vst.msk [vmem:[%s881 + $0x38] sm:$0xf] %vm614, %v1535
      %v1631 = vld [vmem:[%s881 + $0x3c] sm:$0xf]
      %v1632 = vsel %vm617, %v1537, %v1631
      %1633 = vst [vmem:[%s881 + $0x3c] sm:$0xf] %v1632
      %1634 = vst.msk [vmem:[%s881 + $0x40] sm:$0xf] %vm614, %v1539
      %v1635 = vld [vmem:[%s881 + $0x44] sm:$0xf]
      %v1636 = vsel %vm617, %v1541, %v1635
      %1637 = vst [vmem:[%s881 + $0x44] sm:$0xf] %v1636
      %1638 = vst.msk [vmem:[%s881 + $0x48] sm:$0xf] %vm614, %v1543
      %v1639 = vld [vmem:[%s881 + $0x4c] sm:$0xf]
      %v1640 = vsel %vm617, %v1545, %v1639
      %1641 = vst [vmem:[%s881 + $0x4c] sm:$0xf] %v1640
      %1642 = vst.msk [vmem:[%s881 + $0x50] sm:$0xf] %vm614, %v1547
      %v1643 = vld [vmem:[%s881 + $0x54] sm:$0xf]
      %v1644 = vsel %vm617, %v1549, %v1643
      %1645 = vst [vmem:[%s881 + $0x54] sm:$0xf] %v1644
      %1646 = vst.msk [vmem:[%s881 + $0x58] sm:$0xf] %vm614, %v1551
      %v1647 = vld [vmem:[%s881 + $0x5c] sm:$0xf]
      %v1648 = vsel %vm617, %v1553, %v1647
      %1649 = vst [vmem:[%s881 + $0x5c] sm:$0xf] %v1648
      %1650 = vst.msk [vmem:[%s881 + $0x60] sm:$0xf] %vm614, %v1555
      %v1651 = vld [vmem:[%s881 + $0x64] sm:$0xf]
      %v1652 = vsel %vm617, %v1557, %v1651
      %1653 = vst [vmem:[%s881 + $0x64] sm:$0xf] %v1652
      %1654 = vst.msk [vmem:[%s881 + $0x68] sm:$0xf] %vm614, %v1559
      %v1655 = vld [vmem:[%s881 + $0x6c] sm:$0xf]
      %v1656 = vsel %vm617, %v1561, %v1655
      %1657 = vst [vmem:[%s881 + $0x6c] sm:$0xf] %v1656
      %1658 = vst.msk [vmem:[%s881 + $0x70] sm:$0xf] %vm614, %v1563
      %v1659 = vld [vmem:[%s881 + $0x74] sm:$0xf]
      %v1660 = vsel %vm617, %v1565, %v1659
      %1661 = vst [vmem:[%s881 + $0x74] sm:$0xf] %v1660
      %1662 = vst.msk [vmem:[%s881 + $0x78] sm:$0xf] %vm614, %v1567
      %v1663 = vld [vmem:[%s881 + $0x7c] sm:$0xf]
      %v1664 = vsel %vm617, %v1569, %v1663
      %1665 = vst [vmem:[%s881 + $0x7c] sm:$0xf] %v1664
      %v1666 = vmax.f32 %v476, 0.0
      %v1667 = vmax.f32 %v477, 0.0
      %v1668 = vmax.f32 %v478, 0.0
      %v1669 = vmax.f32 %v479, 0.0
      %v1670 = vpack.c.bf16 %v1667, %v1666
      %v1671 = vpack.c.bf16 %v1669, %v1668
      %v1674 = vunpack.c.l.b16 %v1670
      %v1675 = vunpack.c.h.b16 %v1670
      %v1676 = vunpack.c.l.b16 %v1671
      %v1677 = vunpack.c.h.b16 %v1671
      %v1678 = vpack.c.b16 %v1674, %v1674
      %v1679 = vpack.c.b16 %v1675, %v1675
      %v1680 = vpack.c.b16 %v1676, %v1676
      %v1681 = vpack.c.b16 %v1677, %v1677
      %1682 = vrot.lane.b32.xlu0 %v1678, 4
      %v1683 = vpop.permute.xlu0 %1682
      %1684 = vrot.lane.b32.xlu0 %v1679, 4
      %v1685 = vpop.permute.xlu0 %1684
      %1686 = vrot.lane.b32.xlu0 %v1680, 4
      %v1687 = vpop.permute.xlu0 %1686
      %1688 = vrot.lane.b32.xlu0 %v1681, 4
      %v1689 = vpop.permute.xlu0 %1688
      %s1694 = scalar_lea.vmem [#allocation2], 144
      %1695 = vst.msk [vmem:[%s1694] sm:$0xf] %vm508, %v1683
      %1696 = vst.msk [vmem:[%s1694 + $0x4] sm:$0xf] %vm508, %v1685
      %1697 = vst.msk [vmem:[%s1694 + $0x8] sm:$0xf] %vm508, %v1687
      %1698 = vst.msk [vmem:[%s1694 + $0xc] sm:$0xf] %vm508, %v1689
      %v1699 = vld [vmem:[%s1694] sm:$0x1]
      %v1700 = vsel %vm515, 0, %v1699
      %1701 = vst [vmem:[%s1694] sm:$0x1] %v1700
      %v1702 = vld [vmem:[%s1694 + $0x8] sm:$0x1]
      %v1703 = vsel %vm515, 0, %v1702
      %1704 = vst [vmem:[%s1694 + $0x8] sm:$0x1] %v1703
      %v1705 = vld [vmem:[%s1694 + $0x4] sm:$0x8]
      %v1706 = vsel %vm524, 0, %v1705
      %1707 = vst [vmem:[%s1694 + $0x4] sm:$0x8] %v1706
      %v1708 = vld [vmem:[%s1694 + $0xc] sm:$0x8]
      %v1709 = vsel %vm524, 0, %v1708
      %1710 = vst [vmem:[%s1694 + $0xc] sm:$0x8] %v1709
      %v1712 = vshrl.u32 %v1678, 16
      %v1714 = vrot.slane %v1712, 7
      %v1715 = vshll.u32 %v1678, 16
      %v1717 = vor.u32 %v1714, %v1715
      %v1718 = vrot.slane %v1714, 4
      %v1720 = vshrl.u32 %v1679, 16
      %v1722 = vrot.slane %v1720, 7
      %v1723 = vshll.u32 %v1679, 16
      %v1725 = vor.u32 %v1722, %v1723
      %v1726 = vsel %vm532, %v1718, %v1725
      %v1728 = vshrl.u32 %v1680, 16
      %v1730 = vrot.slane %v1728, 7
      %v1731 = vshll.u32 %v1680, 16
      %v1733 = vor.u32 %v1730, %v1731
      %v1734 = vrot.slane %v1730, 4
      %v1736 = vshrl.u32 %v1681, 16
      %v1738 = vrot.slane %v1736, 7
      %v1739 = vshll.u32 %v1681, 16
      %v1741 = vor.u32 %v1738, %v1739
      %v1742 = vsel %vm532, %v1734, %v1741
      %v1747 = vld [vmem:[%s1694] sm:$0xf]
      %v1748 = vsel %vm571, %v1717, %v1747
      %1749 = vst [vmem:[%s1694] sm:$0xf] %v1748
      %1750 = vst.msk [vmem:[%s1694 + $0x4] sm:$0xf] %vm575, %v1726
      %v1751 = vld [vmem:[%s1694 + $0x8] sm:$0xf]
      %v1752 = vsel %vm571, %v1733, %v1751
      %1753 = vst [vmem:[%s1694 + $0x8] sm:$0xf] %v1752
      %1754 = vst.msk [vmem:[%s1694 + $0xc] sm:$0xf] %vm575, %v1742
      %v1755 = vrot.slane %v1712, 4
      %v1756 = vrot.slane %v1715, 5
      %v1757 = vor.u32 %v1755, %v1756
      %v1758 = vrot.slane %v1757, 4
      %v1759 = vrot.slane %v1723, 5
      %v1760 = vsel %vm583, %v1758, %v1759
      %v1761 = vrot.slane %v1720, 4
      %v1762 = vor.u32 %v1761, %v1759
      %v1763 = vrot.slane %v1762, 4
      %v1764 = vrot.slane %v1728, 4
      %v1765 = vrot.slane %v1731, 5
      %v1766 = vor.u32 %v1764, %v1765
      %v1767 = vrot.slane %v1766, 4
      %v1768 = vrot.slane %v1739, 5
      %v1769 = vsel %vm583, %v1767, %v1768
      %v1770 = vrot.slane %v1736, 4
      %v1771 = vor.u32 %v1770, %v1768
      %v1772 = vrot.slane %v1771, 4
      %1773 = vrot.lane.b32.xlu0 %v1760, 8
      %v1774 = vpop.permute.xlu0 %1773
      %1775 = vrot.lane.b32.xlu0 %v1763, 8
      %v1776 = vpop.permute.xlu0 %1775
      %1777 = vrot.lane.b32.xlu0 %v1769, 8
      %v1778 = vpop.permute.xlu0 %1777
      %1779 = vrot.lane.b32.xlu0 %v1772, 8
      %v1780 = vpop.permute.xlu0 %1779
      %1785 = vst.msk [vmem:[%s1694] sm:$0xf] %vm614, %v1774
      %v1786 = vld [vmem:[%s1694 + $0x4] sm:$0xf]
      %v1787 = vsel %vm617, %v1776, %v1786
      %1788 = vst [vmem:[%s1694 + $0x4] sm:$0xf] %v1787
      %1789 = vst.msk [vmem:[%s1694 + $0x8] sm:$0xf] %vm614, %v1778
      %v1790 = vld [vmem:[%s1694 + $0xc] sm:$0xf]
      %v1791 = vsel %vm617, %v1780, %v1790
      %1792 = vst [vmem:[%s1694 + $0xc] sm:$0xf] %v1791
      %v1793 = vld [vmem:[#allocation2] sm:$0xf]
      %v1794 = vld [vmem:[#allocation2 + $0x4] sm:$0xf]
      %v1795 = vld [vmem:[#allocation2 + $0x8] sm:$0xf]
      %v1796 = vld [vmem:[#allocation2 + $0xc] sm:$0xf]
      %v1797 = vld [vmem:[#allocation2 + $0x10] sm:$0xf]
      %v1798 = vld [vmem:[#allocation2 + $0x14] sm:$0xf]
      %v1799 = vld [vmem:[#allocation2 + $0x18] sm:$0xf]
      %v1800 = vld [vmem:[#allocation2 + $0x1c] sm:$0xf]
      %v1801 = vld [vmem:[#allocation2 + $0x20] sm:$0xf]
      %v1802 = vld [vmem:[#allocation2 + $0x24] sm:$0xf]
      %v1803 = vld [vmem:[#allocation2 + $0x28] sm:$0xf]
      %v1804 = vld [vmem:[#allocation2 + $0x2c] sm:$0xf]
      %v1805 = vld [vmem:[#allocation2 + $0x30] sm:$0xf]
      %v1806 = vld [vmem:[#allocation2 + $0x34] sm:$0xf]
      %v1807 = vld [vmem:[#allocation2 + $0x38] sm:$0xf]
      %v1808 = vld [vmem:[#allocation2 + $0x3c] sm:$0xf]
      %v1809 = vld [vmem:[#allocation2 + $0x40] sm:$0xf]
      %v1810 = vld [vmem:[#allocation2 + $0x44] sm:$0xf]
      %v1811 = vld [vmem:[#allocation2 + $0x48] sm:$0xf]
      %v1812 = vld [vmem:[#allocation2 + $0x4c] sm:$0xf]
      %v1813 = vld [vmem:[#allocation2 + $0x50] sm:$0xf]
      %v1814 = vld [vmem:[#allocation2 + $0x54] sm:$0xf]
      %v1815 = vld [vmem:[#allocation2 + $0x58] sm:$0xf]
      %v1816 = vld [vmem:[#allocation2 + $0x5c] sm:$0xf]
      %v1817 = vld [vmem:[#allocation2 + $0x60] sm:$0xf]
      %v1818 = vld [vmem:[#allocation2 + $0x64] sm:$0xf]
      %v1819 = vld [vmem:[#allocation2 + $0x68] sm:$0xf]
      %v1820 = vld [vmem:[#allocation2 + $0x6c] sm:$0xf]
      %v1821 = vld [vmem:[#allocation2 + $0x70] sm:$0xf]
      %v1822 = vld [vmem:[#allocation2 + $0x74] sm:$0xf]
      %v1823 = vld [vmem:[#allocation2 + $0x78] sm:$0xf]
      %v1824 = vld [vmem:[#allocation2 + $0x7c] sm:$0xf]
      %v1825 = vld [vmem:[#allocation2 + $0x80] sm:$0xf]
      %v1826 = vld [vmem:[#allocation2 + $0x84] sm:$0xf]
      %v1827 = vld [vmem:[#allocation2 + $0x88] sm:$0xf]
      %v1828 = vld [vmem:[#allocation2 + $0x8c] sm:$0xf]
      %v1829 = vld [vmem:[%s3] sm:$0xf]
      %v1830 = vld [vmem:[%s3 + $0x4] sm:$0x3]
      %s1831 = scalar_lea.vmem [#allocation2], 8
      %v1832 = vld [vmem:[%s1831] sm:$0xf]
      %v1833 = vld [vmem:[%s1831 + $0x4] sm:$0xf]
      %v1834 = vld [vmem:[%s1831 + $0x8] sm:$0xf]
      %v1835 = vld [vmem:[%s1831 + $0xc] sm:$0xf]
      %v1836 = vld [vmem:[%s1831 + $0x10] sm:$0xf]
      %v1837 = vld [vmem:[%s1831 + $0x14] sm:$0xf]
      %v1838 = vld [vmem:[%s1831 + $0x18] sm:$0xf]
      %v1839 = vld [vmem:[%s1831 + $0x1c] sm:$0xf]
      %v1840 = vld [vmem:[%s1831 + $0x20] sm:$0xf]
      %v1841 = vld [vmem:[%s1831 + $0x24] sm:$0xf]
      %v1842 = vld [vmem:[%s1831 + $0x28] sm:$0xf]
      %v1843 = vld [vmem:[%s1831 + $0x2c] sm:$0xf]
      %v1844 = vld [vmem:[%s1831 + $0x30] sm:$0xf]
      %v1845 = vld [vmem:[%s1831 + $0x34] sm:$0xf]
      %v1846 = vld [vmem:[%s1831 + $0x38] sm:$0xf]
      %v1847 = vld [vmem:[%s1831 + $0x3c] sm:$0xf]
      %v1848 = vld [vmem:[%s1831 + $0x40] sm:$0xf]
      %v1849 = vld [vmem:[%s1831 + $0x44] sm:$0xf]
      %v1850 = vld [vmem:[%s1831 + $0x48] sm:$0xf]
      %v1851 = vld [vmem:[%s1831 + $0x4c] sm:$0xf]
      %v1852 = vld [vmem:[%s1831 + $0x50] sm:$0xf]
      %v1853 = vld [vmem:[%s1831 + $0x54] sm:$0xf]
      %v1854 = vld [vmem:[%s1831 + $0x58] sm:$0xf]
      %v1855 = vld [vmem:[%s1831 + $0x5c] sm:$0xf]
      %v1856 = vld [vmem:[%s1831 + $0x60] sm:$0xf]
      %v1857 = vld [vmem:[%s1831 + $0x64] sm:$0xf]
      %v1858 = vld [vmem:[%s1831 + $0x68] sm:$0xf]
      %v1859 = vld [vmem:[%s1831 + $0x6c] sm:$0xf]
      %v1860 = vld [vmem:[%s1831 + $0x70] sm:$0xf]
      %v1861 = vld [vmem:[%s1831 + $0x74] sm:$0xf]
      %v1862 = vld [vmem:[%s1831 + $0x78] sm:$0xf]
      %v1863 = vld [vmem:[%s1831 + $0x7c] sm:$0xf]
      %v1864 = vld [vmem:[%s1831 + $0x80] sm:$0xf]
      %v1865 = vld [vmem:[%s1831 + $0x84] sm:$0xf]
      %v1866 = vld [vmem:[%s1831 + $0x88] sm:$0xf]
      %v1867 = vld [vmem:[%s1831 + $0x8c] sm:$0xf]
      %s1868 = scalar_lea.vmem %s3, 8
      %v1869 = vld [vmem:[%s1868] sm:$0xf]
      %v1870 = vld [vmem:[%s1868 + $0x4] sm:$0x3]
      %v1907 = vunpack.c.l.b16 %v1832
      %v1908 = vunpack.c.l.b16 %v1833
      %v1909 = vunpack.c.l.b16 %v1834
      %v1910 = vunpack.c.l.b16 %v1835
      %v1911 = vunpack.c.l.b16 %v1836
      %v1912 = vunpack.c.l.b16 %v1837
      %v1913 = vunpack.c.l.b16 %v1838
      %v1914 = vunpack.c.l.b16 %v1839
      %v1915 = vunpack.c.l.b16 %v1840
      %v1916 = vunpack.c.l.b16 %v1841
      %v1917 = vunpack.c.l.b16 %v1842
      %v1918 = vunpack.c.l.b16 %v1843
      %v1919 = vunpack.c.l.b16 %v1844
      %v1920 = vunpack.c.l.b16 %v1845
      %v1921 = vunpack.c.l.b16 %v1846
      %v1922 = vunpack.c.l.b16 %v1847
      %v1923 = vunpack.c.l.b16 %v1848
      %v1924 = vunpack.c.l.b16 %v1849
      %v1925 = vunpack.c.l.b16 %v1850
      %v1926 = vunpack.c.l.b16 %v1851
      %v1927 = vunpack.c.l.b16 %v1852
      %v1928 = vunpack.c.l.b16 %v1853
      %v1929 = vunpack.c.l.b16 %v1854
      %v1930 = vunpack.c.l.b16 %v1855
      %v1931 = vunpack.c.l.b16 %v1856
      %v1932 = vunpack.c.l.b16 %v1857
      %v1933 = vunpack.c.l.b16 %v1858
      %v1934 = vunpack.c.l.b16 %v1859
      %v1935 = vunpack.c.l.b16 %v1860
      %v1936 = vunpack.c.l.b16 %v1861
      %v1937 = vunpack.c.l.b16 %v1862
      %v1938 = vunpack.c.l.b16 %v1863
      %v1939 = vunpack.c.l.b16 %v1864
      %v1940 = vunpack.c.l.b16 %v1865
      %v1941 = vunpack.c.l.b16 %v1866
      %v1942 = vunpack.c.l.b16 %v1867
      %v1943 = vpack.c.b16 %v1908, %v1907
      %v1944 = vpack.c.b16 %v1910, %v1909
      %v1945 = vpack.c.b16 %v1912, %v1911
      %v1946 = vpack.c.b16 %v1914, %v1913
      %v1947 = vpack.c.b16 %v1916, %v1915
      %v1948 = vpack.c.b16 %v1918, %v1917
      %v1949 = vpack.c.b16 %v1920, %v1919
      %v1950 = vpack.c.b16 %v1922, %v1921
      %v1951 = vpack.c.b16 %v1924, %v1923
      %v1952 = vpack.c.b16 %v1926, %v1925
      %v1953 = vpack.c.b16 %v1928, %v1927
      %v1954 = vpack.c.b16 %v1930, %v1929
      %v1955 = vpack.c.b16 %v1932, %v1931
      %v1956 = vpack.c.b16 %v1934, %v1933
      %v1957 = vpack.c.b16 %v1936, %v1935
      %v1958 = vpack.c.b16 %v1938, %v1937
      %v1959 = vpack.c.b16 %v1940, %v1939
      %v1960 = vpack.c.b16 %v1942, %v1941
      %v1963 = vunpack.c.l.b16 %v1869
      %v1964 = vunpack.c.l.b16 %v1870
      %v1965 = vpack.c.b16 %v1964, %v1963
      %vm1966 = vcmask 97280
      %v1968 = vsel %vm1966, %v1943, 0
      %v1971 = vsel %vm1966, %v1944, 0
      %v1974 = vsel %vm1966, %v1945, 0
      %v1977 = vsel %vm1966, %v1946, 0
      %v1980 = vsel %vm1966, %v1947, 0
      %v1983 = vsel %vm1966, %v1948, 0
      %v1986 = vsel %vm1966, %v1949, 0
      %v1989 = vsel %vm1966, %v1950, 0
      %v1992 = vsel %vm1966, %v1951, 0
      %v1995 = vsel %vm1966, %v1952, 0
      %v1998 = vsel %vm1966, %v1953, 0
      %v2001 = vsel %vm1966, %v1954, 0
      %v2004 = vsel %vm1966, %v1955, 0
      %v2007 = vsel %vm1966, %v1956, 0
      %v2010 = vsel %vm1966, %v1957, 0
      %v2013 = vsel %vm1966, %v1958, 0
      %v2016 = vsel %vm1966, %v1959, 0
      %v2019 = vsel %vm1966, %v1960, 0
      %vm2021 = vcmask 1045504
      %v2023 = vsel %vm2021, %v1965, 0
      %2025 = vmatprep.subr.bf16.mxu0 0
      %2026 = vmatpush1.bf16.msra.mxu0 0
      %2027 = vmatprep.subr.bf16.mxu0 0
      %2028 = vmatpush1.bf16.msra.mxu0 0
      %2029 = vmatprep.subr.bf16.mxu0 0
      %2030 = vmatpush1.bf16.msra.mxu0 0
      %2031 = vmatprep.subr.bf16.mxu0 0
      %2032 = vmatpush1.bf16.msra.mxu0 0
      %2033 = vmatprep.subr.bf16.mxu0 0
      %2034 = vmatpush1.bf16.msra.mxu0 0
      %2035 = vmatprep.subr.bf16.mxu0 0
      %2036 = vmatpush1.bf16.msra.mxu0 0
      %2037 = vmatprep.subr.bf16.mxu0 0
      %2038 = vmatpush1.bf16.msra.mxu0 0
      %2039 = vmatprep.subr.bf16.mxu0 0
      %2040 = vmatpush1.bf16.msra.mxu0 %v2023
      %2041 = vmatprep.subr.bf16.mxu0 0
      %2042 = vmatpush2.bf16.msra.mxu0 0
      %2043 = vmatprep.subr.bf16.mxu0 0
      %2044 = vmatpush2.bf16.msra.mxu0 0
      %2045 = vmatprep.subr.bf16.mxu0 0
      %2046 = vmatpush2.bf16.msra.mxu0 0
      %2047 = vmatprep.subr.bf16.mxu0 0
      %2048 = vmatpush2.bf16.msra.mxu0 0
      %2049 = vmatprep.subr.bf16.mxu0 0
      %2050 = vmatpush2.bf16.msra.mxu0 0
      %2051 = vmatprep.subr.bf16.mxu0 0
      %2052 = vmatpush2.bf16.msra.mxu0 0
      %2053 = vmatprep.subr.bf16.mxu0 0
      %2054 = vmatpush2.bf16.msra.mxu0 0
      %2055 = vmatprep.subr.bf16.mxu0 0
      %2056 = vmatpush2.bf16.msra.mxu0 0
      %2057 = vmatprep.mubr.bf16.mxu0 0
      %2058 = vmatmul.mubr.bf16.gmra.mxu0 %v1968
      %v2059 = vpop.f32.mrf.mxu0
      %v2060 = vadd.f32 0.0, %v2059
      %v2061 = vpop.f32.mrf.mxu0
      %v2062 = vpop.f32.mrf.mxu0
      %v2063 = vadd.f32 0.0, %v2062
      %v2064 = vpop.f32.mrf.mxu0
      %2065 = vmatprep.mubr.bf16.mxu0 0
      %2066 = vmatmul.mubr.bf16.gmra.mxu0 %v1971
      %v2067 = vpop.f32.mrf.mxu0
      %v2068 = vadd.f32 0.0, %v2067
      %v2069 = vpop.f32.mrf.mxu0
      %v2070 = vpop.f32.mrf.mxu0
      %v2071 = vadd.f32 0.0, %v2070
      %v2072 = vpop.f32.mrf.mxu0
      %2073 = vmatprep.mubr.bf16.mxu0 0
      %2074 = vmatmul.mubr.bf16.gmra.mxu0 %v1974
      %v2075 = vpop.f32.mrf.mxu0
      %v2076 = vadd.f32 0.0, %v2075
      %v2077 = vpop.f32.mrf.mxu0
      %v2078 = vpop.f32.mrf.mxu0
      %v2079 = vadd.f32 0.0, %v2078
      %v2080 = vpop.f32.mrf.mxu0
      %2081 = vmatprep.mubr.bf16.mxu0 0
      %2082 = vmatmul.mubr.bf16.gmra.mxu0 %v1977
      %v2083 = vpop.f32.mrf.mxu0
      %v2084 = vadd.f32 0.0, %v2083
      %v2085 = vpop.f32.mrf.mxu0
      %v2086 = vpop.f32.mrf.mxu0
      %v2087 = vadd.f32 0.0, %v2086
      %v2088 = vpop.f32.mrf.mxu0
      %2089 = vmatprep.mubr.bf16.mxu0 0
      %2090 = vmatmul.mubr.bf16.gmra.mxu0 %v1980
      %v2091 = vpop.f32.mrf.mxu0
      %v2092 = vadd.f32 0.0, %v2091
      %v2093 = vpop.f32.mrf.mxu0
      %v2094 = vpop.f32.mrf.mxu0
      %v2095 = vadd.f32 0.0, %v2094
      %v2096 = vpop.f32.mrf.mxu0
      %2097 = vmatprep.mubr.bf16.mxu0 0
      %2098 = vmatmul.mubr.bf16.gmra.mxu0 %v1983
      %v2099 = vpop.f32.mrf.mxu0
      %v2100 = vadd.f32 0.0, %v2099
      %v2101 = vpop.f32.mrf.mxu0
      %v2102 = vpop.f32.mrf.mxu0
      %v2103 = vadd.f32 0.0, %v2102
      %v2104 = vpop.f32.mrf.mxu0
      %2105 = vmatprep.mubr.bf16.mxu0 0
      %2106 = vmatmul.mubr.bf16.gmra.mxu0 %v1986
      %v2107 = vpop.f32.mrf.mxu0
      %v2108 = vadd.f32 0.0, %v2107
      %v2109 = vpop.f32.mrf.mxu0
      %v2110 = vpop.f32.mrf.mxu0
      %v2111 = vadd.f32 0.0, %v2110
      %v2112 = vpop.f32.mrf.mxu0
      %2113 = vmatprep.mubr.bf16.mxu0 0
      %2114 = vmatmul.mubr.bf16.gmra.mxu0 %v1989
      %v2115 = vpop.f32.mrf.mxu0
      %v2116 = vadd.f32 0.0, %v2115
      %v2117 = vpop.f32.mrf.mxu0
      %v2118 = vpop.f32.mrf.mxu0
      %v2119 = vadd.f32 0.0, %v2118
      %v2120 = vpop.f32.mrf.mxu0
      %2121 = vmatprep.mubr.bf16.mxu0 0
      %2122 = vmatmul.mubr.bf16.gmra.mxu0 %v1992
      %v2123 = vpop.f32.mrf.mxu0
      %v2124 = vadd.f32 0.0, %v2123
      %v2125 = vpop.f32.mrf.mxu0
      %v2126 = vpop.f32.mrf.mxu0
      %v2127 = vadd.f32 0.0, %v2126
      %v2128 = vpop.f32.mrf.mxu0
      %2129 = vmatprep.mubr.bf16.mxu0 0
      %2130 = vmatmul.mubr.bf16.gmra.mxu0 %v1995
      %v2131 = vpop.f32.mrf.mxu0
      %v2132 = vadd.f32 0.0, %v2131
      %v2133 = vpop.f32.mrf.mxu0
      %v2134 = vpop.f32.mrf.mxu0
      %v2135 = vadd.f32 0.0, %v2134
      %v2136 = vpop.f32.mrf.mxu0
      %2137 = vmatprep.mubr.bf16.mxu0 0
      %2138 = vmatmul.mubr.bf16.gmra.mxu0 %v1998
      %v2139 = vpop.f32.mrf.mxu0
      %v2140 = vadd.f32 0.0, %v2139
      %v2141 = vpop.f32.mrf.mxu0
      %v2142 = vpop.f32.mrf.mxu0
      %v2143 = vadd.f32 0.0, %v2142
      %v2144 = vpop.f32.mrf.mxu0
      %2145 = vmatprep.mubr.bf16.mxu0 0
      %2146 = vmatmul.mubr.bf16.gmra.mxu0 %v2001
      %v2147 = vpop.f32.mrf.mxu0
      %v2148 = vadd.f32 0.0, %v2147
      %v2149 = vpop.f32.mrf.mxu0
      %v2150 = vpop.f32.mrf.mxu0
      %v2151 = vadd.f32 0.0, %v2150
      %v2152 = vpop.f32.mrf.mxu0
      %2153 = vmatprep.mubr.bf16.mxu0 0
      %2154 = vmatmul.mubr.bf16.gmra.mxu0 %v2004
      %v2155 = vpop.f32.mrf.mxu0
      %v2156 = vadd.f32 0.0, %v2155
      %v2157 = vpop.f32.mrf.mxu0
      %v2158 = vpop.f32.mrf.mxu0
      %v2159 = vadd.f32 0.0, %v2158
      %v2160 = vpop.f32.mrf.mxu0
      %2161 = vmatprep.mubr.bf16.mxu0 0
      %2162 = vmatmul.mubr.bf16.gmra.mxu0 %v2007
      %v2163 = vpop.f32.mrf.mxu0
      %v2164 = vadd.f32 0.0, %v2163
      %v2165 = vpop.f32.mrf.mxu0
      %v2166 = vpop.f32.mrf.mxu0
      %v2167 = vadd.f32 0.0, %v2166
      %v2168 = vpop.f32.mrf.mxu0
      %2169 = vmatprep.mubr.bf16.mxu0 0
      %2170 = vmatmul.mubr.bf16.gmra.mxu0 %v2010
      %v2171 = vpop.f32.mrf.mxu0
      %v2172 = vadd.f32 0.0, %v2171
      %v2173 = vpop.f32.mrf.mxu0
      %v2174 = vpop.f32.mrf.mxu0
      %v2175 = vadd.f32 0.0, %v2174
      %v2176 = vpop.f32.mrf.mxu0
      %2177 = vmatprep.mubr.bf16.mxu0 0
      %2178 = vmatmul.mubr.bf16.gmra.mxu0 %v2013
      %v2179 = vpop.f32.mrf.mxu0
      %v2180 = vadd.f32 0.0, %v2179
      %v2181 = vpop.f32.mrf.mxu0
      %v2182 = vpop.f32.mrf.mxu0
      %v2183 = vadd.f32 0.0, %v2182
      %v2184 = vpop.f32.mrf.mxu0
      %2185 = vmatprep.mubr.bf16.mxu0 0
      %2186 = vmatmul.mubr.bf16.gmra.mxu0 %v2016
      %v2187 = vpop.f32.mrf.mxu0
      %v2188 = vadd.f32 0.0, %v2187
      %v2189 = vpop.f32.mrf.mxu0
      %v2190 = vpop.f32.mrf.mxu0
      %v2191 = vadd.f32 0.0, %v2190
      %v2192 = vpop.f32.mrf.mxu0
      %2193 = vmatprep.mubr.bf16.mxu0 0
      %2194 = vmatmul.mubr.bf16.gmra.mxu0 %v2019
      %v2195 = vpop.f32.mrf.mxu0
      %v2196 = vadd.f32 0.0, %v2195
      %v2197 = vpop.f32.mrf.mxu0
      %v2198 = vpop.f32.mrf.mxu0
      %v2199 = vadd.f32 0.0, %v2198
      %v2200 = vpop.f32.mrf.mxu0
      %2201 = vdwg.mxu0
      %v2238 = vunpack.c.l.b16 %v1793
      %v2239 = vunpack.c.l.b16 %v1794
      %v2240 = vunpack.c.l.b16 %v1795
      %v2241 = vunpack.c.l.b16 %v1796
      %v2242 = vunpack.c.l.b16 %v1797
      %v2243 = vunpack.c.l.b16 %v1798
      %v2244 = vunpack.c.l.b16 %v1799
      %v2245 = vunpack.c.l.b16 %v1800
      %v2246 = vunpack.c.l.b16 %v1801
      %v2247 = vunpack.c.l.b16 %v1802
      %v2248 = vunpack.c.l.b16 %v1803
      %v2249 = vunpack.c.l.b16 %v1804
      %v2250 = vunpack.c.l.b16 %v1805
      %v2251 = vunpack.c.l.b16 %v1806
      %v2252 = vunpack.c.l.b16 %v1807
      %v2253 = vunpack.c.l.b16 %v1808
      %v2254 = vunpack.c.l.b16 %v1809
      %v2255 = vunpack.c.l.b16 %v1810
      %v2256 = vunpack.c.l.b16 %v1811
      %v2257 = vunpack.c.l.b16 %v1812
      %v2258 = vunpack.c.l.b16 %v1813
      %v2259 = vunpack.c.l.b16 %v1814
      %v2260 = vunpack.c.l.b16 %v1815
      %v2261 = vunpack.c.l.b16 %v1816
      %v2262 = vunpack.c.l.b16 %v1817
      %v2263 = vunpack.c.l.b16 %v1818
      %v2264 = vunpack.c.l.b16 %v1819
      %v2265 = vunpack.c.l.b16 %v1820
      %v2266 = vunpack.c.l.b16 %v1821
      %v2267 = vunpack.c.l.b16 %v1822
      %v2268 = vunpack.c.l.b16 %v1823
      %v2269 = vunpack.c.l.b16 %v1824
      %v2270 = vunpack.c.l.b16 %v1825
      %v2271 = vunpack.c.l.b16 %v1826
      %v2272 = vunpack.c.l.b16 %v1827
      %v2273 = vunpack.c.l.b16 %v1828
      %v2274 = vpack.c.b16 %v2239, %v2238
      %v2275 = vpack.c.b16 %v2241, %v2240
      %v2276 = vpack.c.b16 %v2243, %v2242
      %v2277 = vpack.c.b16 %v2245, %v2244
      %v2278 = vpack.c.b16 %v2247, %v2246
      %v2279 = vpack.c.b16 %v2249, %v2248
      %v2280 = vpack.c.b16 %v2251, %v2250
      %v2281 = vpack.c.b16 %v2253, %v2252
      %v2282 = vpack.c.b16 %v2255, %v2254
      %v2283 = vpack.c.b16 %v2257, %v2256
      %v2284 = vpack.c.b16 %v2259, %v2258
      %v2285 = vpack.c.b16 %v2261, %v2260
      %v2286 = vpack.c.b16 %v2263, %v2262
      %v2287 = vpack.c.b16 %v2265, %v2264
      %v2288 = vpack.c.b16 %v2267, %v2266
      %v2289 = vpack.c.b16 %v2269, %v2268
      %v2290 = vpack.c.b16 %v2271, %v2270
      %v2291 = vpack.c.b16 %v2273, %v2272
      %v2294 = vunpack.c.l.b16 %v1829
      %v2295 = vunpack.c.l.b16 %v1830
      %v2296 = vpack.c.b16 %v2295, %v2294
      %v2298 = vsel %vm1966, %v2274, 0
      %v2301 = vsel %vm1966, %v2275, 0
      %v2304 = vsel %vm1966, %v2276, 0
      %v2307 = vsel %vm1966, %v2277, 0
      %v2310 = vsel %vm1966, %v2278, 0
      %v2313 = vsel %vm1966, %v2279, 0
      %v2316 = vsel %vm1966, %v2280, 0
      %v2319 = vsel %vm1966, %v2281, 0
      %v2322 = vsel %vm1966, %v2282, 0
      %v2325 = vsel %vm1966, %v2283, 0
      %v2328 = vsel %vm1966, %v2284, 0
      %v2331 = vsel %vm1966, %v2285, 0
      %v2334 = vsel %vm1966, %v2286, 0
      %v2337 = vsel %vm1966, %v2287, 0
      %v2340 = vsel %vm1966, %v2288, 0
      %v2343 = vsel %vm1966, %v2289, 0
      %v2346 = vsel %vm1966, %v2290, 0
      %v2349 = vsel %vm1966, %v2291, 0
      %v2352 = vsel %vm2021, %v2296, 0
      %2354 = vmatprep.subr.bf16.mxu0 0
      %2355 = vmatpush1.bf16.msra.mxu0 0
      %2356 = vmatprep.subr.bf16.mxu0 0
      %2357 = vmatpush1.bf16.msra.mxu0 0
      %2358 = vmatprep.subr.bf16.mxu0 0
      %2359 = vmatpush1.bf16.msra.mxu0 0
      %2360 = vmatprep.subr.bf16.mxu0 0
      %2361 = vmatpush1.bf16.msra.mxu0 0
      %2362 = vmatprep.subr.bf16.mxu0 0
      %2363 = vmatpush1.bf16.msra.mxu0 0
      %2364 = vmatprep.subr.bf16.mxu0 0
      %2365 = vmatpush1.bf16.msra.mxu0 0
      %2366 = vmatprep.subr.bf16.mxu0 0
      %2367 = vmatpush1.bf16.msra.mxu0 0
      %2368 = vmatprep.subr.bf16.mxu0 0
      %2369 = vmatpush1.bf16.msra.mxu0 %v2352
      %2370 = vmatprep.subr.bf16.mxu0 0
      %2371 = vmatpush2.bf16.msra.mxu0 0
      %2372 = vmatprep.subr.bf16.mxu0 0
      %2373 = vmatpush2.bf16.msra.mxu0 0
      %2374 = vmatprep.subr.bf16.mxu0 0
      %2375 = vmatpush2.bf16.msra.mxu0 0
      %2376 = vmatprep.subr.bf16.mxu0 0
      %2377 = vmatpush2.bf16.msra.mxu0 0
      %2378 = vmatprep.subr.bf16.mxu0 0
      %2379 = vmatpush2.bf16.msra.mxu0 0
      %2380 = vmatprep.subr.bf16.mxu0 0
      %2381 = vmatpush2.bf16.msra.mxu0 0
      %2382 = vmatprep.subr.bf16.mxu0 0
      %2383 = vmatpush2.bf16.msra.mxu0 0
      %2384 = vmatprep.subr.bf16.mxu0 0
      %2385 = vmatpush2.bf16.msra.mxu0 0
      %2386 = vmatprep.mubr.bf16.mxu0 0
      %2387 = vmatmul.mubr.bf16.gmra.mxu0 %v2298
      %v2388 = vpop.f32.mrf.mxu0
      %v2389 = vadd.f32 %v2060, %v2388
      %v2390 = vpop.f32.mrf.mxu0
      %v2391 = vpop.f32.mrf.mxu0
      %v2392 = vadd.f32 %v2063, %v2391
      %v2393 = vpop.f32.mrf.mxu0
      %2394 = vmatprep.mubr.bf16.mxu0 0
      %2395 = vmatmul.mubr.bf16.gmra.mxu0 %v2301
      %v2396 = vpop.f32.mrf.mxu0
      %v2397 = vadd.f32 %v2068, %v2396
      %v2398 = vpop.f32.mrf.mxu0
      %v2399 = vpop.f32.mrf.mxu0
      %v2400 = vadd.f32 %v2071, %v2399
      %v2401 = vpop.f32.mrf.mxu0
      %2402 = vmatprep.mubr.bf16.mxu0 0
      %2403 = vmatmul.mubr.bf16.gmra.mxu0 %v2304
      %v2404 = vpop.f32.mrf.mxu0
      %v2405 = vadd.f32 %v2076, %v2404
      %v2406 = vpop.f32.mrf.mxu0
      %v2407 = vpop.f32.mrf.mxu0
      %v2408 = vadd.f32 %v2079, %v2407
      %v2409 = vpop.f32.mrf.mxu0
      %2410 = vmatprep.mubr.bf16.mxu0 0
      %2411 = vmatmul.mubr.bf16.gmra.mxu0 %v2307
      %v2412 = vpop.f32.mrf.mxu0
      %v2413 = vadd.f32 %v2084, %v2412
      %v2414 = vpop.f32.mrf.mxu0
      %v2415 = vpop.f32.mrf.mxu0
      %v2416 = vadd.f32 %v2087, %v2415
      %v2417 = vpop.f32.mrf.mxu0
      %2418 = vmatprep.mubr.bf16.mxu0 0
      %2419 = vmatmul.mubr.bf16.gmra.mxu0 %v2310
      %v2420 = vpop.f32.mrf.mxu0
      %v2421 = vadd.f32 %v2092, %v2420
      %v2422 = vpop.f32.mrf.mxu0
      %v2423 = vpop.f32.mrf.mxu0
      %v2424 = vadd.f32 %v2095, %v2423
      %v2425 = vpop.f32.mrf.mxu0
      %2426 = vmatprep.mubr.bf16.mxu0 0
      %2427 = vmatmul.mubr.bf16.gmra.mxu0 %v2313
      %v2428 = vpop.f32.mrf.mxu0
      %v2429 = vadd.f32 %v2100, %v2428
      %v2430 = vpop.f32.mrf.mxu0
      %v2431 = vpop.f32.mrf.mxu0
      %v2432 = vadd.f32 %v2103, %v2431
      %v2433 = vpop.f32.mrf.mxu0
      %2434 = vmatprep.mubr.bf16.mxu0 0
      %2435 = vmatmul.mubr.bf16.gmra.mxu0 %v2316
      %v2436 = vpop.f32.mrf.mxu0
      %v2437 = vadd.f32 %v2108, %v2436
      %v2438 = vpop.f32.mrf.mxu0
      %v2439 = vpop.f32.mrf.mxu0
      %v2440 = vadd.f32 %v2111, %v2439
      %v2441 = vpop.f32.mrf.mxu0
      %2442 = vmatprep.mubr.bf16.mxu0 0
      %2443 = vmatmul.mubr.bf16.gmra.mxu0 %v2319
      %v2444 = vpop.f32.mrf.mxu0
      %v2445 = vadd.f32 %v2116, %v2444
      %v2446 = vpop.f32.mrf.mxu0
      %v2447 = vpop.f32.mrf.mxu0
      %v2448 = vadd.f32 %v2119, %v2447
      %v2449 = vpop.f32.mrf.mxu0
      %2450 = vmatprep.mubr.bf16.mxu0 0
      %2451 = vmatmul.mubr.bf16.gmra.mxu0 %v2322
      %v2452 = vpop.f32.mrf.mxu0
      %v2453 = vadd.f32 %v2124, %v2452
      %v2454 = vpop.f32.mrf.mxu0
      %v2455 = vpop.f32.mrf.mxu0
      %v2456 = vadd.f32 %v2127, %v2455
      %v2457 = vpop.f32.mrf.mxu0
      %2458 = vmatprep.mubr.bf16.mxu0 0
      %2459 = vmatmul.mubr.bf16.gmra.mxu0 %v2325
      %v2460 = vpop.f32.mrf.mxu0
      %v2461 = vadd.f32 %v2132, %v2460
      %v2462 = vpop.f32.mrf.mxu0
      %v2463 = vpop.f32.mrf.mxu0
      %v2464 = vadd.f32 %v2135, %v2463
      %v2465 = vpop.f32.mrf.mxu0
      %2466 = vmatprep.mubr.bf16.mxu0 0
      %2467 = vmatmul.mubr.bf16.gmra.mxu0 %v2328
      %v2468 = vpop.f32.mrf.mxu0
      %v2469 = vadd.f32 %v2140, %v2468
      %v2470 = vpop.f32.mrf.mxu0
      %v2471 = vpop.f32.mrf.mxu0
      %v2472 = vadd.f32 %v2143, %v2471
      %v2473 = vpop.f32.mrf.mxu0
      %2474 = vmatprep.mubr.bf16.mxu0 0
      %2475 = vmatmul.mubr.bf16.gmra.mxu0 %v2331
      %v2476 = vpop.f32.mrf.mxu0
      %v2477 = vadd.f32 %v2148, %v2476
      %v2478 = vpop.f32.mrf.mxu0
      %v2479 = vpop.f32.mrf.mxu0
      %v2480 = vadd.f32 %v2151, %v2479
      %v2481 = vpop.f32.mrf.mxu0
      %2482 = vmatprep.mubr.bf16.mxu0 0
      %2483 = vmatmul.mubr.bf16.gmra.mxu0 %v2334
      %v2484 = vpop.f32.mrf.mxu0
      %v2485 = vadd.f32 %v2156, %v2484
      %v2486 = vpop.f32.mrf.mxu0
      %v2487 = vpop.f32.mrf.mxu0
      %v2488 = vadd.f32 %v2159, %v2487
      %v2489 = vpop.f32.mrf.mxu0
      %2490 = vmatprep.mubr.bf16.mxu0 0
      %2491 = vmatmul.mubr.bf16.gmra.mxu0 %v2337
      %v2492 = vpop.f32.mrf.mxu0
      %v2493 = vadd.f32 %v2164, %v2492
      %v2494 = vpop.f32.mrf.mxu0
      %v2495 = vpop.f32.mrf.mxu0
      %v2496 = vadd.f32 %v2167, %v2495
      %v2497 = vpop.f32.mrf.mxu0
      %2498 = vmatprep.mubr.bf16.mxu0 0
      %2499 = vmatmul.mubr.bf16.gmra.mxu0 %v2340
      %v2500 = vpop.f32.mrf.mxu0
      %v2501 = vadd.f32 %v2172, %v2500
      %v2502 = vpop.f32.mrf.mxu0
      %v2503 = vpop.f32.mrf.mxu0
      %v2504 = vadd.f32 %v2175, %v2503
      %v2505 = vpop.f32.mrf.mxu0
      %2506 = vmatprep.mubr.bf16.mxu0 0
      %2507 = vmatmul.mubr.bf16.gmra.mxu0 %v2343
      %v2508 = vpop.f32.mrf.mxu0
      %v2509 = vadd.f32 %v2180, %v2508
      %v2510 = vpop.f32.mrf.mxu0
      %v2511 = vpop.f32.mrf.mxu0
      %v2512 = vadd.f32 %v2183, %v2511
      %v2513 = vpop.f32.mrf.mxu0
      %2514 = vmatprep.mubr.bf16.mxu0 0
      %2515 = vmatmul.mubr.bf16.gmra.mxu0 %v2346
      %v2516 = vpop.f32.mrf.mxu0
      %v2517 = vadd.f32 %v2188, %v2516
      %v2518 = vpop.f32.mrf.mxu0
      %v2519 = vpop.f32.mrf.mxu0
      %v2520 = vadd.f32 %v2191, %v2519
      %v2521 = vpop.f32.mrf.mxu0
      %2522 = vmatprep.mubr.bf16.mxu0 0
      %2523 = vmatmul.mubr.bf16.gmra.mxu0 %v2349
      %v2524 = vpop.f32.mrf.mxu0
      %v2525 = vadd.f32 %v2196, %v2524
      %v2526 = vpop.f32.mrf.mxu0
      %v2527 = vpop.f32.mrf.mxu0
      %v2528 = vadd.f32 %v2199, %v2527
      %v2529 = vpop.f32.mrf.mxu0
      %2530 = vdwg.mxu0
      %v2531 = vld [vmem:[%s881] sm:$0xf]
      %v2532 = vld [vmem:[%s881 + $0x4] sm:$0xf]
      %v2533 = vld [vmem:[%s881 + $0x8] sm:$0xf]
      %v2534 = vld [vmem:[%s881 + $0xc] sm:$0xf]
      %v2535 = vld [vmem:[%s881 + $0x10] sm:$0xf]
      %v2536 = vld [vmem:[%s881 + $0x14] sm:$0xf]
      %v2537 = vld [vmem:[%s881 + $0x18] sm:$0xf]
      %v2538 = vld [vmem:[%s881 + $0x1c] sm:$0xf]
      %v2539 = vld [vmem:[%s881 + $0x20] sm:$0xf]
      %v2540 = vld [vmem:[%s881 + $0x24] sm:$0xf]
      %v2541 = vld [vmem:[%s881 + $0x28] sm:$0xf]
      %v2542 = vld [vmem:[%s881 + $0x2c] sm:$0xf]
      %v2543 = vld [vmem:[%s881 + $0x30] sm:$0xf]
      %v2544 = vld [vmem:[%s881 + $0x34] sm:$0xf]
      %v2545 = vld [vmem:[%s881 + $0x38] sm:$0xf]
      %v2546 = vld [vmem:[%s881 + $0x3c] sm:$0xf]
      %v2547 = vld [vmem:[%s881 + $0x40] sm:$0xf]
      %v2548 = vld [vmem:[%s881 + $0x44] sm:$0xf]
      %v2549 = vld [vmem:[%s881 + $0x48] sm:$0xf]
      %v2550 = vld [vmem:[%s881 + $0x4c] sm:$0xf]
      %v2551 = vld [vmem:[%s881 + $0x50] sm:$0xf]
      %v2552 = vld [vmem:[%s881 + $0x54] sm:$0xf]
      %v2553 = vld [vmem:[%s881 + $0x58] sm:$0xf]
      %v2554 = vld [vmem:[%s881 + $0x5c] sm:$0xf]
      %v2555 = vld [vmem:[%s881 + $0x60] sm:$0xf]
      %v2556 = vld [vmem:[%s881 + $0x64] sm:$0xf]
      %v2557 = vld [vmem:[%s881 + $0x68] sm:$0xf]
      %v2558 = vld [vmem:[%s881 + $0x6c] sm:$0xf]
      %v2559 = vld [vmem:[%s881 + $0x70] sm:$0xf]
      %v2560 = vld [vmem:[%s881 + $0x74] sm:$0xf]
      %v2561 = vld [vmem:[%s881 + $0x78] sm:$0xf]
      %v2562 = vld [vmem:[%s881 + $0x7c] sm:$0xf]
      %v2563 = vld [vmem:[%s881 + $0x80] sm:$0xf]
      %v2564 = vld [vmem:[%s881 + $0x84] sm:$0xf]
      %v2565 = vld [vmem:[%s881 + $0x88] sm:$0xf]
      %v2566 = vld [vmem:[%s881 + $0x8c] sm:$0xf]
      %s2567 = scalar_lea.vmem %s3, 16
      %v2568 = vld [vmem:[%s2567] sm:$0xf]
      %v2569 = vld [vmem:[%s2567 + $0x4] sm:$0x3]
      %v2606 = vunpack.c.l.b16 %v2531
      %v2607 = vunpack.c.l.b16 %v2532
      %v2608 = vunpack.c.l.b16 %v2533
      %v2609 = vunpack.c.l.b16 %v2534
      %v2610 = vunpack.c.l.b16 %v2535
      %v2611 = vunpack.c.l.b16 %v2536
      %v2612 = vunpack.c.l.b16 %v2537
      %v2613 = vunpack.c.l.b16 %v2538
      %v2614 = vunpack.c.l.b16 %v2539
      %v2615 = vunpack.c.l.b16 %v2540
      %v2616 = vunpack.c.l.b16 %v2541
      %v2617 = vunpack.c.l.b16 %v2542
      %v2618 = vunpack.c.l.b16 %v2543
      %v2619 = vunpack.c.l.b16 %v2544
      %v2620 = vunpack.c.l.b16 %v2545
      %v2621 = vunpack.c.l.b16 %v2546
      %v2622 = vunpack.c.l.b16 %v2547
      %v2623 = vunpack.c.l.b16 %v2548
      %v2624 = vunpack.c.l.b16 %v2549
      %v2625 = vunpack.c.l.b16 %v2550
      %v2626 = vunpack.c.l.b16 %v2551
      %v2627 = vunpack.c.l.b16 %v2552
      %v2628 = vunpack.c.l.b16 %v2553
      %v2629 = vunpack.c.l.b16 %v2554
      %v2630 = vunpack.c.l.b16 %v2555
      %v2631 = vunpack.c.l.b16 %v2556
      %v2632 = vunpack.c.l.b16 %v2557
      %v2633 = vunpack.c.l.b16 %v2558
      %v2634 = vunpack.c.l.b16 %v2559
      %v2635 = vunpack.c.l.b16 %v2560
      %v2636 = vunpack.c.l.b16 %v2561
      %v2637 = vunpack.c.l.b16 %v2562
      %v2638 = vunpack.c.l.b16 %v2563
      %v2639 = vunpack.c.l.b16 %v2564
      %v2640 = vunpack.c.l.b16 %v2565
      %v2641 = vunpack.c.l.b16 %v2566
      %v2642 = vpack.c.b16 %v2607, %v2606
      %v2643 = vpack.c.b16 %v2609, %v2608
      %v2644 = vpack.c.b16 %v2611, %v2610
      %v2645 = vpack.c.b16 %v2613, %v2612
      %v2646 = vpack.c.b16 %v2615, %v2614
      %v2647 = vpack.c.b16 %v2617, %v2616
      %v2648 = vpack.c.b16 %v2619, %v2618
      %v2649 = vpack.c.b16 %v2621, %v2620
      %v2650 = vpack.c.b16 %v2623, %v2622
      %v2651 = vpack.c.b16 %v2625, %v2624
      %v2652 = vpack.c.b16 %v2627, %v2626
      %v2653 = vpack.c.b16 %v2629, %v2628
      %v2654 = vpack.c.b16 %v2631, %v2630
      %v2655 = vpack.c.b16 %v2633, %v2632
      %v2656 = vpack.c.b16 %v2635, %v2634
      %v2657 = vpack.c.b16 %v2637, %v2636
      %v2658 = vpack.c.b16 %v2639, %v2638
      %v2659 = vpack.c.b16 %v2641, %v2640
      %v2662 = vunpack.c.l.b16 %v2568
      %v2663 = vunpack.c.l.b16 %v2569
      %v2664 = vpack.c.b16 %v2663, %v2662
      %v2666 = vsel %vm1966, %v2642, 0
      %v2669 = vsel %vm1966, %v2643, 0
      %v2672 = vsel %vm1966, %v2644, 0
      %v2675 = vsel %vm1966, %v2645, 0
      %v2678 = vsel %vm1966, %v2646, 0
      %v2681 = vsel %vm1966, %v2647, 0
      %v2684 = vsel %vm1966, %v2648, 0
      %v2687 = vsel %vm1966, %v2649, 0
      %v2690 = vsel %vm1966, %v2650, 0
      %v2693 = vsel %vm1966, %v2651, 0
      %v2696 = vsel %vm1966, %v2652, 0
      %v2699 = vsel %vm1966, %v2653, 0
      %v2702 = vsel %vm1966, %v2654, 0
      %v2705 = vsel %vm1966, %v2655, 0
      %v2708 = vsel %vm1966, %v2656, 0
      %v2711 = vsel %vm1966, %v2657, 0
      %v2714 = vsel %vm1966, %v2658, 0
      %v2717 = vsel %vm1966, %v2659, 0
      %v2720 = vsel %vm2021, %v2664, 0
      %2722 = vmatprep.subr.bf16.mxu0 0
      %2723 = vmatpush1.bf16.msra.mxu0 0
      %2724 = vmatprep.subr.bf16.mxu0 0
      %2725 = vmatpush1.bf16.msra.mxu0 0
      %2726 = vmatprep.subr.bf16.mxu0 0
      %2727 = vmatpush1.bf16.msra.mxu0 0
      %2728 = vmatprep.subr.bf16.mxu0 0
      %2729 = vmatpush1.bf16.msra.mxu0 0
      %2730 = vmatprep.subr.bf16.mxu0 0
      %2731 = vmatpush1.bf16.msra.mxu0 0
      %2732 = vmatprep.subr.bf16.mxu0 0
      %2733 = vmatpush1.bf16.msra.mxu0 0
      %2734 = vmatprep.subr.bf16.mxu0 0
      %2735 = vmatpush1.bf16.msra.mxu0 0
      %2736 = vmatprep.subr.bf16.mxu0 0
      %2737 = vmatpush1.bf16.msra.mxu0 %v2720
      %2738 = vmatprep.subr.bf16.mxu0 0
      %2739 = vmatpush2.bf16.msra.mxu0 0
      %2740 = vmatprep.subr.bf16.mxu0 0
      %2741 = vmatpush2.bf16.msra.mxu0 0
      %2742 = vmatprep.subr.bf16.mxu0 0
      %2743 = vmatpush2.bf16.msra.mxu0 0
      %2744 = vmatprep.subr.bf16.mxu0 0
      %2745 = vmatpush2.bf16.msra.mxu0 0
      %2746 = vmatprep.subr.bf16.mxu0 0
      %2747 = vmatpush2.bf16.msra.mxu0 0
      %2748 = vmatprep.subr.bf16.mxu0 0
      %2749 = vmatpush2.bf16.msra.mxu0 0
      %2750 = vmatprep.subr.bf16.mxu0 0
      %2751 = vmatpush2.bf16.msra.mxu0 0
      %2752 = vmatprep.subr.bf16.mxu0 0
      %2753 = vmatpush2.bf16.msra.mxu0 0
      %2754 = vmatprep.mubr.bf16.mxu0 0
      %2755 = vmatmul.mubr.bf16.gmra.mxu0 %v2666
      %v2756 = vpop.f32.mrf.mxu0
      %v2757 = vadd.f32 0.0, %v2756
      %v2758 = vpop.f32.mrf.mxu0
      %v2759 = vpop.f32.mrf.mxu0
      %v2760 = vadd.f32 0.0, %v2759
      %v2761 = vpop.f32.mrf.mxu0
      %2762 = vmatprep.mubr.bf16.mxu0 0
      %2763 = vmatmul.mubr.bf16.gmra.mxu0 %v2669
      %v2764 = vpop.f32.mrf.mxu0
      %v2765 = vadd.f32 0.0, %v2764
      %v2766 = vpop.f32.mrf.mxu0
      %v2767 = vpop.f32.mrf.mxu0
      %v2768 = vadd.f32 0.0, %v2767
      %v2769 = vpop.f32.mrf.mxu0
      %2770 = vmatprep.mubr.bf16.mxu0 0
      %2771 = vmatmul.mubr.bf16.gmra.mxu0 %v2672
      %v2772 = vpop.f32.mrf.mxu0
      %v2773 = vadd.f32 0.0, %v2772
      %v2774 = vpop.f32.mrf.mxu0
      %v2775 = vpop.f32.mrf.mxu0
      %v2776 = vadd.f32 0.0, %v2775
      %v2777 = vpop.f32.mrf.mxu0
      %2778 = vmatprep.mubr.bf16.mxu0 0
      %2779 = vmatmul.mubr.bf16.gmra.mxu0 %v2675
      %v2780 = vpop.f32.mrf.mxu0
      %v2781 = vadd.f32 0.0, %v2780
      %v2782 = vpop.f32.mrf.mxu0
      %v2783 = vpop.f32.mrf.mxu0
      %v2784 = vadd.f32 0.0, %v2783
      %v2785 = vpop.f32.mrf.mxu0
      %2786 = vmatprep.mubr.bf16.mxu0 0
      %2787 = vmatmul.mubr.bf16.gmra.mxu0 %v2678
      %v2788 = vpop.f32.mrf.mxu0
      %v2789 = vadd.f32 0.0, %v2788
      %v2790 = vpop.f32.mrf.mxu0
      %v2791 = vpop.f32.mrf.mxu0
      %v2792 = vadd.f32 0.0, %v2791
      %v2793 = vpop.f32.mrf.mxu0
      %2794 = vmatprep.mubr.bf16.mxu0 0
      %2795 = vmatmul.mubr.bf16.gmra.mxu0 %v2681
      %v2796 = vpop.f32.mrf.mxu0
      %v2797 = vadd.f32 0.0, %v2796
      %v2798 = vpop.f32.mrf.mxu0
      %v2799 = vpop.f32.mrf.mxu0
      %v2800 = vadd.f32 0.0, %v2799
      %v2801 = vpop.f32.mrf.mxu0
      %2802 = vmatprep.mubr.bf16.mxu0 0
      %2803 = vmatmul.mubr.bf16.gmra.mxu0 %v2684
      %v2804 = vpop.f32.mrf.mxu0
      %v2805 = vadd.f32 0.0, %v2804
      %v2806 = vpop.f32.mrf.mxu0
      %v2807 = vpop.f32.mrf.mxu0
      %v2808 = vadd.f32 0.0, %v2807
      %v2809 = vpop.f32.mrf.mxu0
      %2810 = vmatprep.mubr.bf16.mxu0 0
      %2811 = vmatmul.mubr.bf16.gmra.mxu0 %v2687
      %v2812 = vpop.f32.mrf.mxu0
      %v2813 = vadd.f32 0.0, %v2812
      %v2814 = vpop.f32.mrf.mxu0
      %v2815 = vpop.f32.mrf.mxu0
      %v2816 = vadd.f32 0.0, %v2815
      %v2817 = vpop.f32.mrf.mxu0
      %2818 = vmatprep.mubr.bf16.mxu0 0
      %2819 = vmatmul.mubr.bf16.gmra.mxu0 %v2690
      %v2820 = vpop.f32.mrf.mxu0
      %v2821 = vadd.f32 0.0, %v2820
      %v2822 = vpop.f32.mrf.mxu0
      %v2823 = vpop.f32.mrf.mxu0
      %v2824 = vadd.f32 0.0, %v2823
      %v2825 = vpop.f32.mrf.mxu0
      %2826 = vmatprep.mubr.bf16.mxu0 0
      %2827 = vmatmul.mubr.bf16.gmra.mxu0 %v2693
      %v2828 = vpop.f32.mrf.mxu0
      %v2829 = vadd.f32 0.0, %v2828
      %v2830 = vpop.f32.mrf.mxu0
      %v2831 = vpop.f32.mrf.mxu0
      %v2832 = vadd.f32 0.0, %v2831
      %v2833 = vpop.f32.mrf.mxu0
      %2834 = vmatprep.mubr.bf16.mxu0 0
      %2835 = vmatmul.mubr.bf16.gmra.mxu0 %v2696
      %v2836 = vpop.f32.mrf.mxu0
      %v2837 = vadd.f32 0.0, %v2836
      %v2838 = vpop.f32.mrf.mxu0
      %v2839 = vpop.f32.mrf.mxu0
      %v2840 = vadd.f32 0.0, %v2839
      %v2841 = vpop.f32.mrf.mxu0
      %2842 = vmatprep.mubr.bf16.mxu0 0
      %2843 = vmatmul.mubr.bf16.gmra.mxu0 %v2699
      %v2844 = vpop.f32.mrf.mxu0
      %v2845 = vadd.f32 0.0, %v2844
      %v2846 = vpop.f32.mrf.mxu0
      %v2847 = vpop.f32.mrf.mxu0
      %v2848 = vadd.f32 0.0, %v2847
      %v2849 = vpop.f32.mrf.mxu0
      %2850 = vmatprep.mubr.bf16.mxu0 0
      %2851 = vmatmul.mubr.bf16.gmra.mxu0 %v2702
      %v2852 = vpop.f32.mrf.mxu0
      %v2853 = vadd.f32 0.0, %v2852
      %v2854 = vpop.f32.mrf.mxu0
      %v2855 = vpop.f32.mrf.mxu0
      %v2856 = vadd.f32 0.0, %v2855
      %v2857 = vpop.f32.mrf.mxu0
      %2858 = vmatprep.mubr.bf16.mxu0 0
      %2859 = vmatmul.mubr.bf16.gmra.mxu0 %v2705
      %v2860 = vpop.f32.mrf.mxu0
      %v2861 = vadd.f32 0.0, %v2860
      %v2862 = vpop.f32.mrf.mxu0
      %v2863 = vpop.f32.mrf.mxu0
      %v2864 = vadd.f32 0.0, %v2863
      %v2865 = vpop.f32.mrf.mxu0
      %2866 = vmatprep.mubr.bf16.mxu0 0
      %2867 = vmatmul.mubr.bf16.gmra.mxu0 %v2708
      %v2868 = vpop.f32.mrf.mxu0
      %v2869 = vadd.f32 0.0, %v2868
      %v2870 = vpop.f32.mrf.mxu0
      %v2871 = vpop.f32.mrf.mxu0
      %v2872 = vadd.f32 0.0, %v2871
      %v2873 = vpop.f32.mrf.mxu0
      %2874 = vmatprep.mubr.bf16.mxu0 0
      %2875 = vmatmul.mubr.bf16.gmra.mxu0 %v2711
      %v2876 = vpop.f32.mrf.mxu0
      %v2877 = vadd.f32 0.0, %v2876
      %v2878 = vpop.f32.mrf.mxu0
      %v2879 = vpop.f32.mrf.mxu0
      %v2880 = vadd.f32 0.0, %v2879
      %v2881 = vpop.f32.mrf.mxu0
      %2882 = vmatprep.mubr.bf16.mxu0 0
      %2883 = vmatmul.mubr.bf16.gmra.mxu0 %v2714
      %v2884 = vpop.f32.mrf.mxu0
      %v2885 = vadd.f32 0.0, %v2884
      %v2886 = vpop.f32.mrf.mxu0
      %v2887 = vpop.f32.mrf.mxu0
      %v2888 = vadd.f32 0.0, %v2887
      %v2889 = vpop.f32.mrf.mxu0
      %2890 = vmatprep.mubr.bf16.mxu0 0
      %2891 = vmatmul.mubr.bf16.gmra.mxu0 %v2717
      %v2892 = vpop.f32.mrf.mxu0
      %v2893 = vadd.f32 0.0, %v2892
      %v2894 = vpop.f32.mrf.mxu0
      %v2895 = vpop.f32.mrf.mxu0
      %v2896 = vadd.f32 0.0, %v2895
      %v2897 = vpop.f32.mrf.mxu0
      %2898 = vdwg.mxu0
      %v2899 = vadd.f32 %v2389, %v2757
      %v2900 = vadd.f32 %v2392, %v2760
      %v2901 = vadd.f32 %v2397, %v2765
      %v2902 = vadd.f32 %v2400, %v2768
      %v2903 = vadd.f32 %v2405, %v2773
      %v2904 = vadd.f32 %v2408, %v2776
      %v2905 = vadd.f32 %v2413, %v2781
      %v2906 = vadd.f32 %v2416, %v2784
      %v2907 = vadd.f32 %v2421, %v2789
      %v2908 = vadd.f32 %v2424, %v2792
      %v2909 = vadd.f32 %v2429, %v2797
      %v2910 = vadd.f32 %v2432, %v2800
      %v2911 = vadd.f32 %v2437, %v2805
      %v2912 = vadd.f32 %v2440, %v2808
      %v2913 = vadd.f32 %v2445, %v2813
      %v2914 = vadd.f32 %v2448, %v2816
      %v2915 = vadd.f32 %v2453, %v2821
      %v2916 = vadd.f32 %v2456, %v2824
      %v2917 = vadd.f32 %v2461, %v2829
      %v2918 = vadd.f32 %v2464, %v2832
      %v2919 = vadd.f32 %v2469, %v2837
      %v2920 = vadd.f32 %v2472, %v2840
      %v2921 = vadd.f32 %v2477, %v2845
      %v2922 = vadd.f32 %v2480, %v2848
      %v2923 = vadd.f32 %v2485, %v2853
      %v2924 = vadd.f32 %v2488, %v2856
      %v2925 = vadd.f32 %v2493, %v2861
      %v2926 = vadd.f32 %v2496, %v2864
      %v2927 = vadd.f32 %v2501, %v2869
      %v2928 = vadd.f32 %v2504, %v2872
      %v2929 = vadd.f32 %v2509, %v2877
      %v2930 = vadd.f32 %v2512, %v2880
      %v2931 = vadd.f32 %v2517, %v2885
      %v2932 = vadd.f32 %v2520, %v2888
      %v2933 = vadd.f32 %v2525, %v2893
      %v2934 = vadd.f32 %v2528, %v2896
      %v2936 = vlaneseq
      %v2937 = vshrl.u32 %v2936, 7
      %v2938 = vsub.s32 0, %v2937
      %v2939 = vrot.slane %v458, %v2938
      %v2941 = vadd.f32 %v2899, %v2939
      %v2942 = vadd.f32 %v2900, %v2939
      %v2943 = vadd.f32 %v2901, %v2939
      %v2944 = vadd.f32 %v2902, %v2939
      %v2945 = vadd.f32 %v2903, %v2939
      %v2946 = vadd.f32 %v2904, %v2939
      %v2947 = vadd.f32 %v2905, %v2939
      %v2948 = vadd.f32 %v2906, %v2939
      %v2949 = vadd.f32 %v2907, %v2939
      %v2950 = vadd.f32 %v2908, %v2939
      %v2951 = vadd.f32 %v2909, %v2939
      %v2952 = vadd.f32 %v2910, %v2939
      %v2953 = vadd.f32 %v2911, %v2939
      %v2954 = vadd.f32 %v2912, %v2939
      %v2955 = vadd.f32 %v2913, %v2939
      %v2956 = vadd.f32 %v2914, %v2939
      %v2957 = vadd.f32 %v2915, %v2939
      %v2958 = vadd.f32 %v2916, %v2939
      %v2959 = vadd.f32 %v2917, %v2939
      %v2960 = vadd.f32 %v2918, %v2939
      %v2961 = vadd.f32 %v2919, %v2939
      %v2962 = vadd.f32 %v2920, %v2939
      %v2963 = vadd.f32 %v2921, %v2939
      %v2964 = vadd.f32 %v2922, %v2939
      %v2965 = vadd.f32 %v2923, %v2939
      %v2966 = vadd.f32 %v2924, %v2939
      %v2967 = vadd.f32 %v2925, %v2939
      %v2968 = vadd.f32 %v2926, %v2939
      %v2969 = vadd.f32 %v2927, %v2939
      %v2970 = vadd.f32 %v2928, %v2939
      %v2971 = vadd.f32 %v2929, %v2939
      %v2972 = vadd.f32 %v2930, %v2939
      %v2973 = vadd.f32 %v2931, %v2939
      %v2974 = vadd.f32 %v2932, %v2939
      %v2975 = vadd.f32 %v2933, %v2939
      %v2976 = vadd.f32 %v2934, %v2939
      %vm2977 = vcmask 31744
      %2978 = vst.msk [vmem:[#allocation3] sm:$0xff] %vm2977, %v2941
      %2979 = vst.msk [vmem:[#allocation3 + $0x8] sm:$0xff] %vm2977, %v2942
      %2980 = vst.msk [vmem:[#allocation3 + $0x10] sm:$0xff] %vm2977, %v2943
      %2981 = vst.msk [vmem:[#allocation3 + $0x18] sm:$0xff] %vm2977, %v2944
      %2982 = vst.msk [vmem:[#allocation3 + $0x20] sm:$0xff] %vm2977, %v2945
      %2983 = vst.msk [vmem:[#allocation3 + $0x28] sm:$0xff] %vm2977, %v2946
      %2984 = vst.msk [vmem:[#allocation3 + $0x30] sm:$0xff] %vm2977, %v2947
      %2985 = vst.msk [vmem:[#allocation3 + $0x38] sm:$0xff] %vm2977, %v2948
      %2986 = vst.msk [vmem:[#allocation3 + $0x40] sm:$0xff] %vm2977, %v2949
      %2987 = vst.msk [vmem:[#allocation3 + $0x48] sm:$0xff] %vm2977, %v2950
      %2988 = vst.msk [vmem:[#allocation3 + $0x50] sm:$0xff] %vm2977, %v2951
      %2989 = vst.msk [vmem:[#allocation3 + $0x58] sm:$0xff] %vm2977, %v2952
      %2990 = vst.msk [vmem:[#allocation3 + $0x60] sm:$0xff] %vm2977, %v2953
      %2991 = vst.msk [vmem:[#allocation3 + $0x68] sm:$0xff] %vm2977, %v2954
      %2992 = vst.msk [vmem:[#allocation3 + $0x70] sm:$0xff] %vm2977, %v2955
      %2993 = vst.msk [vmem:[#allocation3 + $0x78] sm:$0xff] %vm2977, %v2956
      %2994 = vst.msk [vmem:[#allocation3 + $0x80] sm:$0xff] %vm2977, %v2957
      %2995 = vst.msk [vmem:[#allocation3 + $0x88] sm:$0xff] %vm2977, %v2958
      %2996 = vst.msk [vmem:[#allocation3 + $0x90] sm:$0xff] %vm2977, %v2959
      %2997 = vst.msk [vmem:[#allocation3 + $0x98] sm:$0xff] %vm2977, %v2960
      %2998 = vst.msk [vmem:[#allocation3 + $0xa0] sm:$0xff] %vm2977, %v2961
      %2999 = vst.msk [vmem:[#allocation3 + $0xa8] sm:$0xff] %vm2977, %v2962
      %3000 = vst.msk [vmem:[#allocation3 + $0xb0] sm:$0xff] %vm2977, %v2963
      %3001 = vst.msk [vmem:[#allocation3 + $0xb8] sm:$0xff] %vm2977, %v2964
      %3002 = vst.msk [vmem:[#allocation3 + $0xc0] sm:$0xff] %vm2977, %v2965
      %3003 = vst.msk [vmem:[#allocation3 + $0xc8] sm:$0xff] %vm2977, %v2966
      %3004 = vst.msk [vmem:[#allocation3 + $0xd0] sm:$0xff] %vm2977, %v2967
      %3005 = vst.msk [vmem:[#allocation3 + $0xd8] sm:$0xff] %vm2977, %v2968
      %3006 = vst.msk [vmem:[#allocation3 + $0xe0] sm:$0xff] %vm2977, %v2969
      %3007 = vst.msk [vmem:[#allocation3 + $0xe8] sm:$0xff] %vm2977, %v2970
      %3008 = vst.msk [vmem:[#allocation3 + $0xf0] sm:$0xff] %vm2977, %v2971
      %3009 = vst.msk [vmem:[#allocation3 + $0xf8] sm:$0xff] %vm2977, %v2972
      %3010 = vst.msk [vmem:[#allocation3 + $0x100] sm:$0xff] %vm2977, %v2973
      %3011 = vst.msk [vmem:[#allocation3 + $0x108] sm:$0xff] %vm2977, %v2974
      %3012 = vst.msk [vmem:[#allocation3 + $0x110] sm:$0xff] %vm2977, %v2975
      %3013 = vst.msk [vmem:[#allocation3 + $0x118] sm:$0xff] %vm2977, %v2976
      %v3014 = vld [vmem:[#allocation3] sm:$0xff]
      %v3015 = vld [vmem:[#allocation3 + $0x8] sm:$0xff]
      %v3016 = vld [vmem:[#allocation3 + $0x10] sm:$0xff]
      %v3017 = vld [vmem:[#allocation3 + $0x18] sm:$0xff]
      %v3018 = vld [vmem:[#allocation3 + $0x20] sm:$0xff]
      %v3019 = vld [vmem:[#allocation3 + $0x28] sm:$0xff]
      %v3020 = vld [vmem:[#allocation3 + $0x30] sm:$0xff]
      %v3021 = vld [vmem:[#allocation3 + $0x38] sm:$0xff]
      %v3022 = vld [vmem:[#allocation3 + $0x40] sm:$0xff]
      %v3023 = vld [vmem:[#allocation3 + $0x48] sm:$0xff]
      %v3024 = vld [vmem:[#allocation3 + $0x50] sm:$0xff]
      %v3025 = vld [vmem:[#allocation3 + $0x58] sm:$0xff]
      %v3026 = vld [vmem:[#allocation3 + $0x60] sm:$0xff]
      %v3027 = vld [vmem:[#allocation3 + $0x68] sm:$0xff]
      %v3028 = vld [vmem:[#allocation3 + $0x70] sm:$0xff]
      %v3029 = vld [vmem:[#allocation3 + $0x78] sm:$0xff]
      %v3030 = vld [vmem:[#allocation3 + $0x80] sm:$0xff]
      %v3031 = vld [vmem:[#allocation3 + $0x88] sm:$0xff]
      %v3032 = vld [vmem:[#allocation3 + $0x90] sm:$0xff]
      %v3033 = vld [vmem:[#allocation3 + $0x98] sm:$0xff]
      %v3034 = vld [vmem:[#allocation3 + $0xa0] sm:$0xff]
      %v3035 = vld [vmem:[#allocation3 + $0xa8] sm:$0xff]
      %v3036 = vld [vmem:[#allocation3 + $0xb0] sm:$0xff]
      %v3037 = vld [vmem:[#allocation3 + $0xb8] sm:$0xff]
      %v3038 = vld [vmem:[#allocation3 + $0xc0] sm:$0xff]
      %v3039 = vld [vmem:[#allocation3 + $0xc8] sm:$0xff]
      %v3040 = vld [vmem:[#allocation3 + $0xd0] sm:$0xff]
      %v3041 = vld [vmem:[#allocation3 + $0xd8] sm:$0xff]
      %v3042 = vld [vmem:[#allocation3 + $0xe0] sm:$0xff]
      %v3043 = vld [vmem:[#allocation3 + $0xe8] sm:$0xff]
      %v3044 = vld [vmem:[#allocation3 + $0xf0] sm:$0xff]
      %v3045 = vld [vmem:[#allocation3 + $0xf8] sm:$0xff]
      %v3046 = vld [vmem:[#allocation3 + $0x100] sm:$0xff]
      %v3047 = vld [vmem:[#allocation3 + $0x108] sm:$0xff]
      %v3048 = vld [vmem:[#allocation3 + $0x110] sm:$0xff]
      %v3049 = vld [vmem:[#allocation3 + $0x118] sm:$0xff]
      %s3050 = smul.u32 %s23, 16
      %s3051 = ssub.s32 %s3050, 1
      %v3052 = vstv %s3051
      %v3053 = vadd.s32 %v3052, 1
      %v3054 = vadd.s32 %v3052, 2
      %v3055 = vadd.s32 %v3052, 3
      %v3056 = vadd.s32 %v3052, 4
      %v3057 = vadd.s32 %v3052, 5
      %v3058 = vadd.s32 %v3052, 6
      %v3059 = vadd.s32 %v3052, 7
      %v3060 = vadd.s32 %v3052, 8
      %v3061 = vadd.s32 %v3052, 9
      %v3062 = vadd.s32 %v3052, 10
      %v3063 = vadd.s32 %v3052, 11
      %v3064 = vadd.s32 %v3052, 12
      %v3065 = vadd.s32 %v3052, 13
      %v3066 = vadd.s32 %v3052, 14
      %v3067 = vadd.s32 %v3052, 15
      %v3068 = vadd.s32 %v3052, 16
      %v3069 = vadd.s32 %v3052, 17
      %vm3070 = vcmp.ge.s32.totalorder %v3052, 0
      %vm3071 = vcmp.ge.s32.totalorder %v3053, 0
      %vm3072 = vcmp.ge.s32.totalorder %v3054, 0
      %vm3073 = vcmp.ge.s32.totalorder %v3055, 0
      %vm3074 = vcmp.ge.s32.totalorder %v3056, 0
      %vm3075 = vcmp.ge.s32.totalorder %v3057, 0
      %vm3076 = vcmp.ge.s32.totalorder %v3058, 0
      %vm3077 = vcmp.ge.s32.totalorder %v3059, 0
      %vm3078 = vcmp.ge.s32.totalorder %v3060, 0
      %vm3079 = vcmp.ge.s32.totalorder %v3061, 0
      %vm3080 = vcmp.ge.s32.totalorder %v3062, 0
      %vm3081 = vcmp.ge.s32.totalorder %v3063, 0
      %vm3082 = vcmp.ge.s32.totalorder %v3064, 0
      %vm3083 = vcmp.ge.s32.totalorder %v3065, 0
      %vm3084 = vcmp.ge.s32.totalorder %v3066, 0
      %vm3085 = vcmp.ge.s32.totalorder %v3067, 0
      %vm3086 = vcmp.ge.s32.totalorder %v3068, 0
      %vm3087 = vcmp.ge.s32.totalorder %v3069, 0
      %vm3088 = vcmp.lt.s32.totalorder %v3052, 16
      %vm3089 = vcmp.lt.s32.totalorder %v3053, 16
      %vm3090 = vcmp.lt.s32.totalorder %v3054, 16
      %vm3091 = vcmp.lt.s32.totalorder %v3055, 16
      %vm3092 = vcmp.lt.s32.totalorder %v3056, 16
      %vm3093 = vcmp.lt.s32.totalorder %v3057, 16
      %vm3094 = vcmp.lt.s32.totalorder %v3058, 16
      %vm3095 = vcmp.lt.s32.totalorder %v3059, 16
      %vm3096 = vcmp.lt.s32.totalorder %v3060, 16
      %vm3097 = vcmp.lt.s32.totalorder %v3061, 16
      %vm3098 = vcmp.lt.s32.totalorder %v3062, 16
      %vm3099 = vcmp.lt.s32.totalorder %v3063, 16
      %vm3100 = vcmp.lt.s32.totalorder %v3064, 16
      %vm3101 = vcmp.lt.s32.totalorder %v3065, 16
      %vm3102 = vcmp.lt.s32.totalorder %v3066, 16
      %vm3103 = vcmp.lt.s32.totalorder %v3067, 16
      %vm3104 = vcmp.lt.s32.totalorder %v3068, 16
      %vm3105 = vcmp.lt.s32.totalorder %v3069, 16
      %vm3106 = vmand %vm3070, %vm3088
      %vm3107 = vmand %vm3071, %vm3089
      %vm3108 = vmand %vm3072, %vm3090
      %vm3109 = vmand %vm3073, %vm3091
      %vm3110 = vmand %vm3074, %vm3092
      %vm3111 = vmand %vm3075, %vm3093
      %vm3112 = vmand %vm3076, %vm3094
      %vm3113 = vmand %vm3077, %vm3095
      %vm3114 = vmand %vm3078, %vm3096
      %vm3115 = vmand %vm3079, %vm3097
      %vm3116 = vmand %vm3080, %vm3098
      %vm3117 = vmand %vm3081, %vm3099
      %vm3118 = vmand %vm3082, %vm3100
      %vm3119 = vmand %vm3083, %vm3101
      %vm3120 = vmand %vm3084, %vm3102
      %vm3121 = vmand %vm3085, %vm3103
      %vm3122 = vmand %vm3086, %vm3104
      %vm3123 = vmand %vm3087, %vm3105
      %v3124 = vmax.f32 %v3014, 0.0
      %v3125 = vmax.f32 %v3015, 0.0
      %v3126 = vmax.f32 %v3016, 0.0
      %v3127 = vmax.f32 %v3017, 0.0
      %v3128 = vmax.f32 %v3018, 0.0
      %v3129 = vmax.f32 %v3019, 0.0
      %v3130 = vmax.f32 %v3020, 0.0
      %v3131 = vmax.f32 %v3021, 0.0
      %v3132 = vmax.f32 %v3022, 0.0
      %v3133 = vmax.f32 %v3023, 0.0
      %v3134 = vmax.f32 %v3024, 0.0
      %v3135 = vmax.f32 %v3025, 0.0
      %v3136 = vmax.f32 %v3026, 0.0
      %v3137 = vmax.f32 %v3027, 0.0
      %v3138 = vmax.f32 %v3028, 0.0
      %v3139 = vmax.f32 %v3029, 0.0
      %v3140 = vmax.f32 %v3030, 0.0
      %v3141 = vmax.f32 %v3031, 0.0
      %v3142 = vmax.f32 %v3032, 0.0
      %v3143 = vmax.f32 %v3033, 0.0
      %v3144 = vmax.f32 %v3034, 0.0
      %v3145 = vmax.f32 %v3035, 0.0
      %v3146 = vmax.f32 %v3036, 0.0
      %v3147 = vmax.f32 %v3037, 0.0
      %v3148 = vmax.f32 %v3038, 0.0
      %v3149 = vmax.f32 %v3039, 0.0
      %v3150 = vmax.f32 %v3040, 0.0
      %v3151 = vmax.f32 %v3041, 0.0
      %v3152 = vmax.f32 %v3042, 0.0
      %v3153 = vmax.f32 %v3043, 0.0
      %v3154 = vmax.f32 %v3044, 0.0
      %v3155 = vmax.f32 %v3045, 0.0
      %v3156 = vmax.f32 %v3046, 0.0
      %v3157 = vmax.f32 %v3047, 0.0
      %v3158 = vmax.f32 %v3048, 0.0
      %v3159 = vmax.f32 %v3049, 0.0
      %v3160 = vsel %vm3106, 1, 0
      %v3161 = vsel %vm3107, 1, 0
      %v3162 = vsel %vm3108, 1, 0
      %v3163 = vsel %vm3109, 1, 0
      %v3164 = vsel %vm3110, 1, 0
      %v3165 = vsel %vm3111, 1, 0
      %v3166 = vsel %vm3112, 1, 0
      %v3167 = vsel %vm3113, 1, 0
      %v3168 = vsel %vm3114, 1, 0
      %v3169 = vsel %vm3115, 1, 0
      %v3170 = vsel %vm3116, 1, 0
      %v3171 = vsel %vm3117, 1, 0
      %v3172 = vsel %vm3118, 1, 0
      %v3173 = vsel %vm3119, 1, 0
      %v3174 = vsel %vm3120, 1, 0
      %v3175 = vsel %vm3121, 1, 0
      %v3176 = vsel %vm3122, 1, 0
      %v3177 = vsel %vm3123, 1, 0
      %vm3178 = vcmp.eq.s32.totalorder %v3160, 1
      %vm3179 = vcmp.eq.s32.totalorder %v3161, 1
      %vm3180 = vcmp.eq.s32.totalorder %v3162, 1
      %vm3181 = vcmp.eq.s32.totalorder %v3163, 1
      %vm3182 = vcmp.eq.s32.totalorder %v3164, 1
      %vm3183 = vcmp.eq.s32.totalorder %v3165, 1
      %vm3184 = vcmp.eq.s32.totalorder %v3166, 1
      %vm3185 = vcmp.eq.s32.totalorder %v3167, 1
      %vm3186 = vcmp.eq.s32.totalorder %v3168, 1
      %vm3187 = vcmp.eq.s32.totalorder %v3169, 1
      %vm3188 = vcmp.eq.s32.totalorder %v3170, 1
      %vm3189 = vcmp.eq.s32.totalorder %v3171, 1
      %vm3190 = vcmp.eq.s32.totalorder %v3172, 1
      %vm3191 = vcmp.eq.s32.totalorder %v3173, 1
      %vm3192 = vcmp.eq.s32.totalorder %v3174, 1
      %vm3193 = vcmp.eq.s32.totalorder %v3175, 1
      %vm3194 = vcmp.eq.s32.totalorder %v3176, 1
      %vm3195 = vcmp.eq.s32.totalorder %v3177, 1
      %v3196 = vsel %vm3178, %v3124, 0.0
      %v3197 = vsel %vm3178, %v3125, 0.0
      %v3198 = vsel %vm3179, %v3126, 0.0
      %v3199 = vsel %vm3179, %v3127, 0.0
      %v3200 = vsel %vm3180, %v3128, 0.0
      %v3201 = vsel %vm3180, %v3129, 0.0
      %v3202 = vsel %vm3181, %v3130, 0.0
      %v3203 = vsel %vm3181, %v3131, 0.0
      %v3204 = vsel %vm3182, %v3132, 0.0
      %v3205 = vsel %vm3182, %v3133, 0.0
      %v3206 = vsel %vm3183, %v3134, 0.0
      %v3207 = vsel %vm3183, %v3135, 0.0
      %v3208 = vsel %vm3184, %v3136, 0.0
      %v3209 = vsel %vm3184, %v3137, 0.0
      %v3210 = vsel %vm3185, %v3138, 0.0
      %v3211 = vsel %vm3185, %v3139, 0.0
      %v3212 = vsel %vm3186, %v3140, 0.0
      %v3213 = vsel %vm3186, %v3141, 0.0
      %v3214 = vsel %vm3187, %v3142, 0.0
      %v3215 = vsel %vm3187, %v3143, 0.0
      %v3216 = vsel %vm3188, %v3144, 0.0
      %v3217 = vsel %vm3188, %v3145, 0.0
      %v3218 = vsel %vm3189, %v3146, 0.0
      %v3219 = vsel %vm3189, %v3147, 0.0
      %v3220 = vsel %vm3190, %v3148, 0.0
      %v3221 = vsel %vm3190, %v3149, 0.0
      %v3222 = vsel %vm3191, %v3150, 0.0
      %v3223 = vsel %vm3191, %v3151, 0.0
      %v3224 = vsel %vm3192, %v3152, 0.0
      %v3225 = vsel %vm3192, %v3153, 0.0
      %v3226 = vsel %vm3193, %v3154, 0.0
      %v3227 = vsel %vm3193, %v3155, 0.0
      %v3228 = vsel %vm3194, %v3156, 0.0
      %v3229 = vsel %vm3194, %v3157, 0.0
      %v3230 = vsel %vm3195, %v3158, 0.0
      %v3231 = vsel %vm3195, %v3159, 0.0
      %v3232 = vpack.c.bf16 %v3197, %v3196
      %v3233 = vpack.c.bf16 %v3199, %v3198
      %v3234 = vpack.c.bf16 %v3201, %v3200
      %v3235 = vpack.c.bf16 %v3203, %v3202
      %v3236 = vpack.c.bf16 %v3205, %v3204
      %v3237 = vpack.c.bf16 %v3207, %v3206
      %v3238 = vpack.c.bf16 %v3209, %v3208
      %v3239 = vpack.c.bf16 %v3211, %v3210
      %v3240 = vpack.c.bf16 %v3213, %v3212
      %v3241 = vpack.c.bf16 %v3215, %v3214
      %v3242 = vpack.c.bf16 %v3217, %v3216
      %v3243 = vpack.c.bf16 %v3219, %v3218
      %v3244 = vpack.c.bf16 %v3221, %v3220
      %v3245 = vpack.c.bf16 %v3223, %v3222
      %v3246 = vpack.c.bf16 %v3225, %v3224
      %v3247 = vpack.c.bf16 %v3227, %v3226
      %v3248 = vpack.c.bf16 %v3229, %v3228
      %v3249 = vpack.c.bf16 %v3231, %v3230
      %v3268 = vunpack.c.l.b16 %v3232
      %v3269 = vunpack.c.h.b16 %v3232
      %v3270 = vunpack.c.l.b16 %v3233
      %v3271 = vunpack.c.h.b16 %v3233
      %v3272 = vunpack.c.l.b16 %v3234
      %v3273 = vunpack.c.h.b16 %v3234
      %v3274 = vunpack.c.l.b16 %v3235
      %v3275 = vunpack.c.h.b16 %v3235
      %v3276 = vunpack.c.l.b16 %v3236
      %v3277 = vunpack.c.h.b16 %v3236
      %v3278 = vunpack.c.l.b16 %v3237
      %v3279 = vunpack.c.h.b16 %v3237
      %v3280 = vunpack.c.l.b16 %v3238
      %v3281 = vunpack.c.h.b16 %v3238
      %v3282 = vunpack.c.l.b16 %v3239
      %v3283 = vunpack.c.h.b16 %v3239
      %v3284 = vunpack.c.l.b16 %v3240
      %v3285 = vunpack.c.h.b16 %v3240
      %v3286 = vunpack.c.l.b16 %v3241
      %v3287 = vunpack.c.h.b16 %v3241
      %v3288 = vunpack.c.l.b16 %v3242
      %v3289 = vunpack.c.h.b16 %v3242
      %v3290 = vunpack.c.l.b16 %v3243
      %v3291 = vunpack.c.h.b16 %v3243
      %v3292 = vunpack.c.l.b16 %v3244
      %v3293 = vunpack.c.h.b16 %v3244
      %v3294 = vunpack.c.l.b16 %v3245
      %v3295 = vunpack.c.h.b16 %v3245
      %v3296 = vunpack.c.l.b16 %v3246
      %v3297 = vunpack.c.h.b16 %v3246
      %v3298 = vunpack.c.l.b16 %v3247
      %v3299 = vunpack.c.h.b16 %v3247
      %v3300 = vunpack.c.l.b16 %v3248
      %v3301 = vunpack.c.h.b16 %v3248
      %v3302 = vunpack.c.l.b16 %v3249
      %v3303 = vunpack.c.h.b16 %v3249
      %v3304 = vpack.c.b16 %v3268, %v3268
      %v3305 = vpack.c.b16 %v3269, %v3269
      %v3306 = vpack.c.b16 %v3270, %v3270
      %v3307 = vpack.c.b16 %v3271, %v3271
      %v3308 = vpack.c.b16 %v3272, %v3272
      %v3309 = vpack.c.b16 %v3273, %v3273
      %v3310 = vpack.c.b16 %v3274, %v3274
      %v3311 = vpack.c.b16 %v3275, %v3275
      %v3312 = vpack.c.b16 %v3276, %v3276
      %v3313 = vpack.c.b16 %v3277, %v3277
      %v3314 = vpack.c.b16 %v3278, %v3278
      %v3315 = vpack.c.b16 %v3279, %v3279
      %v3316 = vpack.c.b16 %v3280, %v3280
      %v3317 = vpack.c.b16 %v3281, %v3281
      %v3318 = vpack.c.b16 %v3282, %v3282
      %v3319 = vpack.c.b16 %v3283, %v3283
      %v3320 = vpack.c.b16 %v3284, %v3284
      %v3321 = vpack.c.b16 %v3285, %v3285
      %v3322 = vpack.c.b16 %v3286, %v3286
      %v3323 = vpack.c.b16 %v3287, %v3287
      %v3324 = vpack.c.b16 %v3288, %v3288
      %v3325 = vpack.c.b16 %v3289, %v3289
      %v3326 = vpack.c.b16 %v3290, %v3290
      %v3327 = vpack.c.b16 %v3291, %v3291
      %v3328 = vpack.c.b16 %v3292, %v3292
      %v3329 = vpack.c.b16 %v3293, %v3293
      %v3330 = vpack.c.b16 %v3294, %v3294
      %v3331 = vpack.c.b16 %v3295, %v3295
      %v3332 = vpack.c.b16 %v3296, %v3296
      %v3333 = vpack.c.b16 %v3297, %v3297
      %v3334 = vpack.c.b16 %v3298, %v3298
      %v3335 = vpack.c.b16 %v3299, %v3299
      %v3336 = vpack.c.b16 %v3300, %v3300
      %v3337 = vpack.c.b16 %v3301, %v3301
      %v3338 = vpack.c.b16 %v3302, %v3302
      %v3339 = vpack.c.b16 %v3303, %v3303
      %3340 = vrot.lane.b32.xlu0 %v3304, 4
      %v3341 = vpop.permute.xlu0 %3340
      %3342 = vrot.lane.b32.xlu0 %v3305, 4
      %v3343 = vpop.permute.xlu0 %3342
      %3344 = vrot.lane.b32.xlu0 %v3306, 4
      %v3345 = vpop.permute.xlu0 %3344
      %3346 = vrot.lane.b32.xlu0 %v3307, 4
      %v3347 = vpop.permute.xlu0 %3346
      %3348 = vrot.lane.b32.xlu0 %v3308, 4
      %v3349 = vpop.permute.xlu0 %3348
      %3350 = vrot.lane.b32.xlu0 %v3309, 4
      %v3351 = vpop.permute.xlu0 %3350
      %3352 = vrot.lane.b32.xlu0 %v3310, 4
      %v3353 = vpop.permute.xlu0 %3352
      %3354 = vrot.lane.b32.xlu0 %v3311, 4
      %v3355 = vpop.permute.xlu0 %3354
      %3356 = vrot.lane.b32.xlu0 %v3312, 4
      %v3357 = vpop.permute.xlu0 %3356
      %3358 = vrot.lane.b32.xlu0 %v3313, 4
      %v3359 = vpop.permute.xlu0 %3358
      %3360 = vrot.lane.b32.xlu0 %v3314, 4
      %v3361 = vpop.permute.xlu0 %3360
      %3362 = vrot.lane.b32.xlu0 %v3315, 4
      %v3363 = vpop.permute.xlu0 %3362
      %3364 = vrot.lane.b32.xlu0 %v3316, 4
      %v3365 = vpop.permute.xlu0 %3364
      %3366 = vrot.lane.b32.xlu0 %v3317, 4
      %v3367 = vpop.permute.xlu0 %3366
      %3368 = vrot.lane.b32.xlu0 %v3318, 4
      %v3369 = vpop.permute.xlu0 %3368
      %3370 = vrot.lane.b32.xlu0 %v3319, 4
      %v3371 = vpop.permute.xlu0 %3370
      %3372 = vrot.lane.b32.xlu0 %v3320, 4
      %v3373 = vpop.permute.xlu0 %3372
      %3374 = vrot.lane.b32.xlu0 %v3321, 4
      %v3375 = vpop.permute.xlu0 %3374
      %3376 = vrot.lane.b32.xlu0 %v3322, 4
      %v3377 = vpop.permute.xlu0 %3376
      %3378 = vrot.lane.b32.xlu0 %v3323, 4
      %v3379 = vpop.permute.xlu0 %3378
      %3380 = vrot.lane.b32.xlu0 %v3324, 4
      %v3381 = vpop.permute.xlu0 %3380
      %3382 = vrot.lane.b32.xlu0 %v3325, 4
      %v3383 = vpop.permute.xlu0 %3382
      %3384 = vrot.lane.b32.xlu0 %v3326, 4
      %v3385 = vpop.permute.xlu0 %3384
      %3386 = vrot.lane.b32.xlu0 %v3327, 4
      %v3387 = vpop.permute.xlu0 %3386
      %3388 = vrot.lane.b32.xlu0 %v3328, 4
      %v3389 = vpop.permute.xlu0 %3388
      %3390 = vrot.lane.b32.xlu0 %v3329, 4
      %v3391 = vpop.permute.xlu0 %3390
      %3392 = vrot.lane.b32.xlu0 %v3330, 4
      %v3393 = vpop.permute.xlu0 %3392
      %3394 = vrot.lane.b32.xlu0 %v3331, 4
      %v3395 = vpop.permute.xlu0 %3394
      %3396 = vrot.lane.b32.xlu0 %v3332, 4
      %v3397 = vpop.permute.xlu0 %3396
      %3398 = vrot.lane.b32.xlu0 %v3333, 4
      %v3399 = vpop.permute.xlu0 %3398
      %3400 = vrot.lane.b32.xlu0 %v3334, 4
      %v3401 = vpop.permute.xlu0 %3400
      %3402 = vrot.lane.b32.xlu0 %v3335, 4
      %v3403 = vpop.permute.xlu0 %3402
      %3404 = vrot.lane.b32.xlu0 %v3336, 4
      %v3405 = vpop.permute.xlu0 %3404
      %3406 = vrot.lane.b32.xlu0 %v3337, 4
      %v3407 = vpop.permute.xlu0 %3406
      %3408 = vrot.lane.b32.xlu0 %v3338, 4
      %v3409 = vpop.permute.xlu0 %3408
      %3410 = vrot.lane.b32.xlu0 %v3339, 4
      %v3411 = vpop.permute.xlu0 %3410
      %3448 = vst.msk [vmem:[#allocation2] sm:$0xf] %vm508, %v3341
      %3449 = vst.msk [vmem:[#allocation2 + $0x4] sm:$0xf] %vm508, %v3343
      %3450 = vst.msk [vmem:[#allocation2 + $0x8] sm:$0xf] %vm508, %v3345
      %3451 = vst.msk [vmem:[#allocation2 + $0xc] sm:$0xf] %vm508, %v3347
      %3452 = vst.msk [vmem:[#allocation2 + $0x10] sm:$0xf] %vm508, %v3349
      %3453 = vst.msk [vmem:[#allocation2 + $0x14] sm:$0xf] %vm508, %v3351
      %3454 = vst.msk [vmem:[#allocation2 + $0x18] sm:$0xf] %vm508, %v3353
      %3455 = vst.msk [vmem:[#allocation2 + $0x1c] sm:$0xf] %vm508, %v3355
      %3456 = vst.msk [vmem:[#allocation2 + $0x20] sm:$0xf] %vm508, %v3357
      %3457 = vst.msk [vmem:[#allocation2 + $0x24] sm:$0xf] %vm508, %v3359
      %3458 = vst.msk [vmem:[#allocation2 + $0x28] sm:$0xf] %vm508, %v3361
      %3459 = vst.msk [vmem:[#allocation2 + $0x2c] sm:$0xf] %vm508, %v3363
      %3460 = vst.msk [vmem:[#allocation2 + $0x30] sm:$0xf] %vm508, %v3365
      %3461 = vst.msk [vmem:[#allocation2 + $0x34] sm:$0xf] %vm508, %v3367
      %3462 = vst.msk [vmem:[#allocation2 + $0x38] sm:$0xf] %vm508, %v3369
      %3463 = vst.msk [vmem:[#allocation2 + $0x3c] sm:$0xf] %vm508, %v3371
      %3464 = vst.msk [vmem:[#allocation2 + $0x40] sm:$0xf] %vm508, %v3373
      %3465 = vst.msk [vmem:[#allocation2 + $0x44] sm:$0xf] %vm508, %v3375
      %3466 = vst.msk [vmem:[#allocation2 + $0x48] sm:$0xf] %vm508, %v3377
      %3467 = vst.msk [vmem:[#allocation2 + $0x4c] sm:$0xf] %vm508, %v3379
      %3468 = vst.msk [vmem:[#allocation2 + $0x50] sm:$0xf] %vm508, %v3381
      %3469 = vst.msk [vmem:[#allocation2 + $0x54] sm:$0xf] %vm508, %v3383
      %3470 = vst.msk [vmem:[#allocation2 + $0x58] sm:$0xf] %vm508, %v3385
      %3471 = vst.msk [vmem:[#allocation2 + $0x5c] sm:$0xf] %vm508, %v3387
      %3472 = vst.msk [vmem:[#allocation2 + $0x60] sm:$0xf] %vm508, %v3389
      %3473 = vst.msk [vmem:[#allocation2 + $0x64] sm:$0xf] %vm508, %v3391
      %3474 = vst.msk [vmem:[#allocation2 + $0x68] sm:$0xf] %vm508, %v3393
      %3475 = vst.msk [vmem:[#allocation2 + $0x6c] sm:$0xf] %vm508, %v3395
      %3476 = vst.msk [vmem:[#allocation2 + $0x70] sm:$0xf] %vm508, %v3397
      %3477 = vst.msk [vmem:[#allocation2 + $0x74] sm:$0xf] %vm508, %v3399
      %3478 = vst.msk [vmem:[#allocation2 + $0x78] sm:$0xf] %vm508, %v3401
      %3479 = vst.msk [vmem:[#allocation2 + $0x7c] sm:$0xf] %vm508, %v3403
      %3480 = vst.msk [vmem:[#allocation2 + $0x80] sm:$0xf] %vm508, %v3405
      %3481 = vst.msk [vmem:[#allocation2 + $0x84] sm:$0xf] %vm508, %v3407
      %3482 = vst.msk [vmem:[#allocation2 + $0x88] sm:$0xf] %vm508, %v3409
      %3483 = vst.msk [vmem:[#allocation2 + $0x8c] sm:$0xf] %vm508, %v3411
      %v3484 = vld [vmem:[#allocation2] sm:$0x1]
      %v3485 = vsel %vm515, 0, %v3484
      %3486 = vst [vmem:[#allocation2] sm:$0x1] %v3485
      %v3487 = vld [vmem:[#allocation2 + $0x8] sm:$0x1]
      %v3488 = vsel %vm515, 0, %v3487
      %3489 = vst [vmem:[#allocation2 + $0x8] sm:$0x1] %v3488
      %v3490 = vld [vmem:[#allocation2 + $0x10] sm:$0x1]
      %v3491 = vsel %vm515, 0, %v3490
      %3492 = vst [vmem:[#allocation2 + $0x10] sm:$0x1] %v3491
      %v3493 = vld [vmem:[#allocation2 + $0x18] sm:$0x1]
      %v3494 = vsel %vm515, 0, %v3493
      %3495 = vst [vmem:[#allocation2 + $0x18] sm:$0x1] %v3494
      %v3496 = vld [vmem:[#allocation2 + $0x20] sm:$0x1]
      %v3497 = vsel %vm515, 0, %v3496
      %3498 = vst [vmem:[#allocation2 + $0x20] sm:$0x1] %v3497
      %v3499 = vld [vmem:[#allocation2 + $0x28] sm:$0x1]
      %v3500 = vsel %vm515, 0, %v3499
      %3501 = vst [vmem:[#allocation2 + $0x28] sm:$0x1] %v3500
      %v3502 = vld [vmem:[#allocation2 + $0x30] sm:$0x1]
      %v3503 = vsel %vm515, 0, %v3502
      %3504 = vst [vmem:[#allocation2 + $0x30] sm:$0x1] %v3503
      %v3505 = vld [vmem:[#allocation2 + $0x38] sm:$0x1]
      %v3506 = vsel %vm515, 0, %v3505
      %3507 = vst [vmem:[#allocation2 + $0x38] sm:$0x1] %v3506
      %v3508 = vld [vmem:[#allocation2 + $0x40] sm:$0x1]
      %v3509 = vsel %vm515, 0, %v3508
      %3510 = vst [vmem:[#allocation2 + $0x40] sm:$0x1] %v3509
      %v3511 = vld [vmem:[#allocation2 + $0x48] sm:$0x1]
      %v3512 = vsel %vm515, 0, %v3511
      %3513 = vst [vmem:[#allocation2 + $0x48] sm:$0x1] %v3512
      %v3514 = vld [vmem:[#allocation2 + $0x50] sm:$0x1]
      %v3515 = vsel %vm515, 0, %v3514
      %3516 = vst [vmem:[#allocation2 + $0x50] sm:$0x1] %v3515
      %v3517 = vld [vmem:[#allocation2 + $0x58] sm:$0x1]
      %v3518 = vsel %vm515, 0, %v3517
      %3519 = vst [vmem:[#allocation2 + $0x58] sm:$0x1] %v3518
      %v3520 = vld [vmem:[#allocation2 + $0x60] sm:$0x1]
      %v3521 = vsel %vm515, 0, %v3520
      %3522 = vst [vmem:[#allocation2 + $0x60] sm:$0x1] %v3521
      %v3523 = vld [vmem:[#allocation2 + $0x68] sm:$0x1]
      %v3524 = vsel %vm515, 0, %v3523
      %3525 = vst [vmem:[#allocation2 + $0x68] sm:$0x1] %v3524
      %v3526 = vld [vmem:[#allocation2 + $0x70] sm:$0x1]
      %v3527 = vsel %vm515, 0, %v3526
      %3528 = vst [vmem:[#allocation2 + $0x70] sm:$0x1] %v3527
      %v3529 = vld [vmem:[#allocation2 + $0x78] sm:$0x1]
      %v3530 = vsel %vm515, 0, %v3529
      %3531 = vst [vmem:[#allocation2 + $0x78] sm:$0x1] %v3530
      %v3532 = vld [vmem:[#allocation2 + $0x80] sm:$0x1]
      %v3533 = vsel %vm515, 0, %v3532
      %3534 = vst [vmem:[#allocation2 + $0x80] sm:$0x1] %v3533
      %v3535 = vld [vmem:[#allocation2 + $0x88] sm:$0x1]
      %v3536 = vsel %vm515, 0, %v3535
      %3537 = vst [vmem:[#allocation2 + $0x88] sm:$0x1] %v3536
      %v3538 = vld [vmem:[#allocation2 + $0x4] sm:$0x8]
      %v3539 = vsel %vm524, 0, %v3538
      %3540 = vst [vmem:[#allocation2 + $0x4] sm:$0x8] %v3539
      %v3541 = vld [vmem:[#allocation2 + $0xc] sm:$0x8]
      %v3542 = vsel %vm524, 0, %v3541
      %3543 = vst [vmem:[#allocation2 + $0xc] sm:$0x8] %v3542
      %v3544 = vld [vmem:[#allocation2 + $0x14] sm:$0x8]
      %v3545 = vsel %vm524, 0, %v3544
      %3546 = vst [vmem:[#allocation2 + $0x14] sm:$0x8] %v3545
      %v3547 = vld [vmem:[#allocation2 + $0x1c] sm:$0x8]
      %v3548 = vsel %vm524, 0, %v3547
      %3549 = vst [vmem:[#allocation2 + $0x1c] sm:$0x8] %v3548
      %v3550 = vld [vmem:[#allocation2 + $0x24] sm:$0x8]
      %v3551 = vsel %vm524, 0, %v3550
      %3552 = vst [vmem:[#allocation2 + $0x24] sm:$0x8] %v3551
      %v3553 = vld [vmem:[#allocation2 + $0x2c] sm:$0x8]
      %v3554 = vsel %vm524, 0, %v3553
      %3555 = vst [vmem:[#allocation2 + $0x2c] sm:$0x8] %v3554
      %v3556 = vld [vmem:[#allocation2 + $0x34] sm:$0x8]
      %v3557 = vsel %vm524, 0, %v3556
      %3558 = vst [vmem:[#allocation2 + $0x34] sm:$0x8] %v3557
      %v3559 = vld [vmem:[#allocation2 + $0x3c] sm:$0x8]
      %v3560 = vsel %vm524, 0, %v3559
      %3561 = vst [vmem:[#allocation2 + $0x3c] sm:$0x8] %v3560
      %v3562 = vld [vmem:[#allocation2 + $0x44] sm:$0x8]
      %v3563 = vsel %vm524, 0, %v3562
      %3564 = vst [vmem:[#allocation2 + $0x44] sm:$0x8] %v3563
      %v3565 = vld [vmem:[#allocation2 + $0x4c] sm:$0x8]
      %v3566 = vsel %vm524, 0, %v3565
      %3567 = vst [vmem:[#allocation2 + $0x4c] sm:$0x8] %v3566
      %v3568 = vld [vmem:[#allocation2 + $0x54] sm:$0x8]
      %v3569 = vsel %vm524, 0, %v3568
      %3570 = vst [vmem:[#allocation2 + $0x54] sm:$0x8] %v3569
      %v3571 = vld [vmem:[#allocation2 + $0x5c] sm:$0x8]
      %v3572 = vsel %vm524, 0, %v3571
      %3573 = vst [vmem:[#allocation2 + $0x5c] sm:$0x8] %v3572
      %v3574 = vld [vmem:[#allocation2 + $0x64] sm:$0x8]
      %v3575 = vsel %vm524, 0, %v3574
      %3576 = vst [vmem:[#allocation2 + $0x64] sm:$0x8] %v3575
      %v3577 = vld [vmem:[#allocation2 + $0x6c] sm:$0x8]
      %v3578 = vsel %vm524, 0, %v3577
      %3579 = vst [vmem:[#allocation2 + $0x6c] sm:$0x8] %v3578
      %v3580 = vld [vmem:[#allocation2 + $0x74] sm:$0x8]
      %v3581 = vsel %vm524, 0, %v3580
      %3582 = vst [vmem:[#allocation2 + $0x74] sm:$0x8] %v3581
      %v3583 = vld [vmem:[#allocation2 + $0x7c] sm:$0x8]
      %v3584 = vsel %vm524, 0, %v3583
      %3585 = vst [vmem:[#allocation2 + $0x7c] sm:$0x8] %v3584
      %v3586 = vld [vmem:[#allocation2 + $0x84] sm:$0x8]
      %v3587 = vsel %vm524, 0, %v3586
      %3588 = vst [vmem:[#allocation2 + $0x84] sm:$0x8] %v3587
      %v3589 = vld [vmem:[#allocation2 + $0x8c] sm:$0x8]
      %v3590 = vsel %vm524, 0, %v3589
      %3591 = vst [vmem:[#allocation2 + $0x8c] sm:$0x8] %v3590
      %v3593 = vshrl.u32 %v3304, 16
      %v3595 = vrot.slane %v3593, 7
      %v3596 = vshll.u32 %v3304, 16
      %v3598 = vor.u32 %v3595, %v3596
      %v3599 = vrot.slane %v3595, 4
      %v3601 = vshrl.u32 %v3305, 16
      %v3603 = vrot.slane %v3601, 7
      %v3604 = vshll.u32 %v3305, 16
      %v3606 = vor.u32 %v3603, %v3604
      %v3607 = vsel %vm532, %v3599, %v3606
      %v3609 = vshrl.u32 %v3306, 16
      %v3611 = vrot.slane %v3609, 7
      %v3612 = vshll.u32 %v3306, 16
      %v3614 = vor.u32 %v3611, %v3612
      %v3615 = vrot.slane %v3611, 4
      %v3617 = vshrl.u32 %v3307, 16
      %v3619 = vrot.slane %v3617, 7
      %v3620 = vshll.u32 %v3307, 16
      %v3622 = vor.u32 %v3619, %v3620
      %v3623 = vsel %vm532, %v3615, %v3622
      %v3625 = vshrl.u32 %v3308, 16
      %v3627 = vrot.slane %v3625, 7
      %v3628 = vshll.u32 %v3308, 16
      %v3630 = vor.u32 %v3627, %v3628
      %v3631 = vrot.slane %v3627, 4
      %v3633 = vshrl.u32 %v3309, 16
      %v3635 = vrot.slane %v3633, 7
      %v3636 = vshll.u32 %v3309, 16
      %v3638 = vor.u32 %v3635, %v3636
      %v3639 = vsel %vm532, %v3631, %v3638
      %v3641 = vshrl.u32 %v3310, 16
      %v3643 = vrot.slane %v3641, 7
      %v3644 = vshll.u32 %v3310, 16
      %v3646 = vor.u32 %v3643, %v3644
      %v3647 = vrot.slane %v3643, 4
      %v3649 = vshrl.u32 %v3311, 16
      %v3651 = vrot.slane %v3649, 7
      %v3652 = vshll.u32 %v3311, 16
      %v3654 = vor.u32 %v3651, %v3652
      %v3655 = vsel %vm532, %v3647, %v3654
      %v3657 = vshrl.u32 %v3312, 16
      %v3659 = vrot.slane %v3657, 7
      %v3660 = vshll.u32 %v3312, 16
      %v3662 = vor.u32 %v3659, %v3660
      %v3663 = vrot.slane %v3659, 4
      %v3665 = vshrl.u32 %v3313, 16
      %v3667 = vrot.slane %v3665, 7
      %v3668 = vshll.u32 %v3313, 16
      %v3670 = vor.u32 %v3667, %v3668
      %v3671 = vsel %vm532, %v3663, %v3670
      %v3673 = vshrl.u32 %v3314, 16
      %v3675 = vrot.slane %v3673, 7
      %v3676 = vshll.u32 %v3314, 16
      %v3678 = vor.u32 %v3675, %v3676
      %v3679 = vrot.slane %v3675, 4
      %v3681 = vshrl.u32 %v3315, 16
      %v3683 = vrot.slane %v3681, 7
      %v3684 = vshll.u32 %v3315, 16
      %v3686 = vor.u32 %v3683, %v3684
      %v3687 = vsel %vm532, %v3679, %v3686
      %v3689 = vshrl.u32 %v3316, 16
      %v3691 = vrot.slane %v3689, 7
      %v3692 = vshll.u32 %v3316, 16
      %v3694 = vor.u32 %v3691, %v3692
      %v3695 = vrot.slane %v3691, 4
      %v3697 = vshrl.u32 %v3317, 16
      %v3699 = vrot.slane %v3697, 7
      %v3700 = vshll.u32 %v3317, 16
      %v3702 = vor.u32 %v3699, %v3700
      %v3703 = vsel %vm532, %v3695, %v3702
      %v3705 = vshrl.u32 %v3318, 16
      %v3707 = vrot.slane %v3705, 7
      %v3708 = vshll.u32 %v3318, 16
      %v3710 = vor.u32 %v3707, %v3708
      %v3711 = vrot.slane %v3707, 4
      %v3713 = vshrl.u32 %v3319, 16
      %v3715 = vrot.slane %v3713, 7
      %v3716 = vshll.u32 %v3319, 16
      %v3718 = vor.u32 %v3715, %v3716
      %v3719 = vsel %vm532, %v3711, %v3718
      %v3721 = vshrl.u32 %v3320, 16
      %v3723 = vrot.slane %v3721, 7
      %v3724 = vshll.u32 %v3320, 16
      %v3726 = vor.u32 %v3723, %v3724
      %v3727 = vrot.slane %v3723, 4
      %v3729 = vshrl.u32 %v3321, 16
      %v3731 = vrot.slane %v3729, 7
      %v3732 = vshll.u32 %v3321, 16
      %v3734 = vor.u32 %v3731, %v3732
      %v3735 = vsel %vm532, %v3727, %v3734
      %v3737 = vshrl.u32 %v3322, 16
      %v3739 = vrot.slane %v3737, 7
      %v3740 = vshll.u32 %v3322, 16
      %v3742 = vor.u32 %v3739, %v3740
      %v3743 = vrot.slane %v3739, 4
      %v3745 = vshrl.u32 %v3323, 16
      %v3747 = vrot.slane %v3745, 7
      %v3748 = vshll.u32 %v3323, 16
      %v3750 = vor.u32 %v3747, %v3748
      %v3751 = vsel %vm532, %v3743, %v3750
      %v3753 = vshrl.u32 %v3324, 16
      %v3755 = vrot.slane %v3753, 7
      %v3756 = vshll.u32 %v3324, 16
      %v3758 = vor.u32 %v3755, %v3756
      %v3759 = vrot.slane %v3755, 4
      %v3761 = vshrl.u32 %v3325, 16
      %v3763 = vrot.slane %v3761, 7
      %v3764 = vshll.u32 %v3325, 16
      %v3766 = vor.u32 %v3763, %v3764
      %v3767 = vsel %vm532, %v3759, %v3766
      %v3769 = vshrl.u32 %v3326, 16
      %v3771 = vrot.slane %v3769, 7
      %v3772 = vshll.u32 %v3326, 16
      %v3774 = vor.u32 %v3771, %v3772
      %v3775 = vrot.slane %v3771, 4
      %v3777 = vshrl.u32 %v3327, 16
      %v3779 = vrot.slane %v3777, 7
      %v3780 = vshll.u32 %v3327, 16
      %v3782 = vor.u32 %v3779, %v3780
      %v3783 = vsel %vm532, %v3775, %v3782
      %v3785 = vshrl.u32 %v3328, 16
      %v3787 = vrot.slane %v3785, 7
      %v3788 = vshll.u32 %v3328, 16
      %v3790 = vor.u32 %v3787, %v3788
      %v3791 = vrot.slane %v3787, 4
      %v3793 = vshrl.u32 %v3329, 16
      %v3795 = vrot.slane %v3793, 7
      %v3796 = vshll.u32 %v3329, 16
      %v3798 = vor.u32 %v3795, %v3796
      %v3799 = vsel %vm532, %v3791, %v3798
      %v3801 = vshrl.u32 %v3330, 16
      %v3803 = vrot.slane %v3801, 7
      %v3804 = vshll.u32 %v3330, 16
      %v3806 = vor.u32 %v3803, %v3804
      %v3807 = vrot.slane %v3803, 4
      %v3809 = vshrl.u32 %v3331, 16
      %v3811 = vrot.slane %v3809, 7
      %v3812 = vshll.u32 %v3331, 16
      %v3814 = vor.u32 %v3811, %v3812
      %v3815 = vsel %vm532, %v3807, %v3814
      %v3817 = vshrl.u32 %v3332, 16
      %v3819 = vrot.slane %v3817, 7
      %v3820 = vshll.u32 %v3332, 16
      %v3822 = vor.u32 %v3819, %v3820
      %v3823 = vrot.slane %v3819, 4
      %v3825 = vshrl.u32 %v3333, 16
      %v3827 = vrot.slane %v3825, 7
      %v3828 = vshll.u32 %v3333, 16
      %v3830 = vor.u32 %v3827, %v3828
      %v3831 = vsel %vm532, %v3823, %v3830
      %v3833 = vshrl.u32 %v3334, 16
      %v3835 = vrot.slane %v3833, 7
      %v3836 = vshll.u32 %v3334, 16
      %v3838 = vor.u32 %v3835, %v3836
      %v3839 = vrot.slane %v3835, 4
      %v3841 = vshrl.u32 %v3335, 16
      %v3843 = vrot.slane %v3841, 7
      %v3844 = vshll.u32 %v3335, 16
      %v3846 = vor.u32 %v3843, %v3844
      %v3847 = vsel %vm532, %v3839, %v3846
      %v3849 = vshrl.u32 %v3336, 16
      %v3851 = vrot.slane %v3849, 7
      %v3852 = vshll.u32 %v3336, 16
      %v3854 = vor.u32 %v3851, %v3852
      %v3855 = vrot.slane %v3851, 4
      %v3857 = vshrl.u32 %v3337, 16
      %v3859 = vrot.slane %v3857, 7
      %v3860 = vshll.u32 %v3337, 16
      %v3862 = vor.u32 %v3859, %v3860
      %v3863 = vsel %vm532, %v3855, %v3862
      %v3865 = vshrl.u32 %v3338, 16
      %v3867 = vrot.slane %v3865, 7
      %v3868 = vshll.u32 %v3338, 16
      %v3870 = vor.u32 %v3867, %v3868
      %v3871 = vrot.slane %v3867, 4
      %v3873 = vshrl.u32 %v3339, 16
      %v3875 = vrot.slane %v3873, 7
      %v3876 = vshll.u32 %v3339, 16
      %v3878 = vor.u32 %v3875, %v3876
      %v3879 = vsel %vm532, %v3871, %v3878
      %v3916 = vld [vmem:[#allocation2] sm:$0xf]
      %v3917 = vsel %vm571, %v3598, %v3916
      %3918 = vst [vmem:[#allocation2] sm:$0xf] %v3917
      %3919 = vst.msk [vmem:[#allocation2 + $0x4] sm:$0xf] %vm575, %v3607
      %v3920 = vld [vmem:[#allocation2 + $0x8] sm:$0xf]
      %v3921 = vsel %vm571, %v3614, %v3920
      %3922 = vst [vmem:[#allocation2 + $0x8] sm:$0xf] %v3921
      %3923 = vst.msk [vmem:[#allocation2 + $0xc] sm:$0xf] %vm575, %v3623
      %v3924 = vld [vmem:[#allocation2 + $0x10] sm:$0xf]
      %v3925 = vsel %vm571, %v3630, %v3924
      %3926 = vst [vmem:[#allocation2 + $0x10] sm:$0xf] %v3925
      %3927 = vst.msk [vmem:[#allocation2 + $0x14] sm:$0xf] %vm575, %v3639
      %v3928 = vld [vmem:[#allocation2 + $0x18] sm:$0xf]
      %v3929 = vsel %vm571, %v3646, %v3928
      %3930 = vst [vmem:[#allocation2 + $0x18] sm:$0xf] %v3929
      %3931 = vst.msk [vmem:[#allocation2 + $0x1c] sm:$0xf] %vm575, %v3655
      %v3932 = vld [vmem:[#allocation2 + $0x20] sm:$0xf]
      %v3933 = vsel %vm571, %v3662, %v3932
      %3934 = vst [vmem:[#allocation2 + $0x20] sm:$0xf] %v3933
      %3935 = vst.msk [vmem:[#allocation2 + $0x24] sm:$0xf] %vm575, %v3671
      %v3936 = vld [vmem:[#allocation2 + $0x28] sm:$0xf]
      %v3937 = vsel %vm571, %v3678, %v3936
      %3938 = vst [vmem:[#allocation2 + $0x28] sm:$0xf] %v3937
      %3939 = vst.msk [vmem:[#allocation2 + $0x2c] sm:$0xf] %vm575, %v3687
      %v3940 = vld [vmem:[#allocation2 + $0x30] sm:$0xf]
      %v3941 = vsel %vm571, %v3694, %v3940
      %3942 = vst [vmem:[#allocation2 + $0x30] sm:$0xf] %v3941
      %3943 = vst.msk [vmem:[#allocation2 + $0x34] sm:$0xf] %vm575, %v3703
      %v3944 = vld [vmem:[#allocation2 + $0x38] sm:$0xf]
      %v3945 = vsel %vm571, %v3710, %v3944
      %3946 = vst [vmem:[#allocation2 + $0x38] sm:$0xf] %v3945
      %3947 = vst.msk [vmem:[#allocation2 + $0x3c] sm:$0xf] %vm575, %v3719
      %v3948 = vld [vmem:[#allocation2 + $0x40] sm:$0xf]
      %v3949 = vsel %vm571, %v3726, %v3948
      %3950 = vst [vmem:[#allocation2 + $0x40] sm:$0xf] %v3949
      %3951 = vst.msk [vmem:[#allocation2 + $0x44] sm:$0xf] %vm575, %v3735
      %v3952 = vld [vmem:[#allocation2 + $0x48] sm:$0xf]
      %v3953 = vsel %vm571, %v3742, %v3952
      %3954 = vst [vmem:[#allocation2 + $0x48] sm:$0xf] %v3953
      %3955 = vst.msk [vmem:[#allocation2 + $0x4c] sm:$0xf] %vm575, %v3751
      %v3956 = vld [vmem:[#allocation2 + $0x50] sm:$0xf]
      %v3957 = vsel %vm571, %v3758, %v3956
      %3958 = vst [vmem:[#allocation2 + $0x50] sm:$0xf] %v3957
      %3959 = vst.msk [vmem:[#allocation2 + $0x54] sm:$0xf] %vm575, %v3767
      %v3960 = vld [vmem:[#allocation2 + $0x58] sm:$0xf]
      %v3961 = vsel %vm571, %v3774, %v3960
      %3962 = vst [vmem:[#allocation2 + $0x58] sm:$0xf] %v3961
      %3963 = vst.msk [vmem:[#allocation2 + $0x5c] sm:$0xf] %vm575, %v3783
      %v3964 = vld [vmem:[#allocation2 + $0x60] sm:$0xf]
      %v3965 = vsel %vm571, %v3790, %v3964
      %3966 = vst [vmem:[#allocation2 + $0x60] sm:$0xf] %v3965
      %3967 = vst.msk [vmem:[#allocation2 + $0x64] sm:$0xf] %vm575, %v3799
      %v3968 = vld [vmem:[#allocation2 + $0x68] sm:$0xf]
      %v3969 = vsel %vm571, %v3806, %v3968
      %3970 = vst [vmem:[#allocation2 + $0x68] sm:$0xf] %v3969
      %3971 = vst.msk [vmem:[#allocation2 + $0x6c] sm:$0xf] %vm575, %v3815
      %v3972 = vld [vmem:[#allocation2 + $0x70] sm:$0xf]
      %v3973 = vsel %vm571, %v3822, %v3972
      %3974 = vst [vmem:[#allocation2 + $0x70] sm:$0xf] %v3973
      %3975 = vst.msk [vmem:[#allocation2 + $0x74] sm:$0xf] %vm575, %v3831
      %v3976 = vld [vmem:[#allocation2 + $0x78] sm:$0xf]
      %v3977 = vsel %vm571, %v3838, %v3976
      %3978 = vst [vmem:[#allocation2 + $0x78] sm:$0xf] %v3977
      %3979 = vst.msk [vmem:[#allocation2 + $0x7c] sm:$0xf] %vm575, %v3847
      %v3980 = vld [vmem:[#allocation2 + $0x80] sm:$0xf]
      %v3981 = vsel %vm571, %v3854, %v3980
      %3982 = vst [vmem:[#allocation2 + $0x80] sm:$0xf] %v3981
      %3983 = vst.msk [vmem:[#allocation2 + $0x84] sm:$0xf] %vm575, %v3863
      %v3984 = vld [vmem:[#allocation2 + $0x88] sm:$0xf]
      %v3985 = vsel %vm571, %v3870, %v3984
      %3986 = vst [vmem:[#allocation2 + $0x88] sm:$0xf] %v3985
      %3987 = vst.msk [vmem:[#allocation2 + $0x8c] sm:$0xf] %vm575, %v3879
      %v3988 = vrot.slane %v3593, 4
      %v3989 = vrot.slane %v3596, 5
      %v3990 = vor.u32 %v3988, %v3989
      %v3991 = vrot.slane %v3990, 4
      %v3992 = vrot.slane %v3604, 5
      %v3993 = vsel %vm583, %v3991, %v3992
      %v3994 = vrot.slane %v3601, 4
      %v3995 = vor.u32 %v3994, %v3992
      %v3996 = vrot.slane %v3995, 4
      %v3997 = vrot.slane %v3609, 4
      %v3998 = vrot.slane %v3612, 5
      %v3999 = vor.u32 %v3997, %v3998
      %v4000 = vrot.slane %v3999, 4
      %v4001 = vrot.slane %v3620, 5
      %v4002 = vsel %vm583, %v4000, %v4001
      %v4003 = vrot.slane %v3617, 4
      %v4004 = vor.u32 %v4003, %v4001
      %v4005 = vrot.slane %v4004, 4
      %v4006 = vrot.slane %v3625, 4
      %v4007 = vrot.slane %v3628, 5
      %v4008 = vor.u32 %v4006, %v4007
      %v4009 = vrot.slane %v4008, 4
      %v4010 = vrot.slane %v3636, 5
      %v4011 = vsel %vm583, %v4009, %v4010
      %v4012 = vrot.slane %v3633, 4
      %v4013 = vor.u32 %v4012, %v4010
      %v4014 = vrot.slane %v4013, 4
      %v4015 = vrot.slane %v3641, 4
      %v4016 = vrot.slane %v3644, 5
      %v4017 = vor.u32 %v4015, %v4016
      %v4018 = vrot.slane %v4017, 4
      %v4019 = vrot.slane %v3652, 5
      %v4020 = vsel %vm583, %v4018, %v4019
      %v4021 = vrot.slane %v3649, 4
      %v4022 = vor.u32 %v4021, %v4019
      %v4023 = vrot.slane %v4022, 4
      %v4024 = vrot.slane %v3657, 4
      %v4025 = vrot.slane %v3660, 5
      %v4026 = vor.u32 %v4024, %v4025
      %v4027 = vrot.slane %v4026, 4
      %v4028 = vrot.slane %v3668, 5
      %v4029 = vsel %vm583, %v4027, %v4028
      %v4030 = vrot.slane %v3665, 4
      %v4031 = vor.u32 %v4030, %v4028
      %v4032 = vrot.slane %v4031, 4
      %v4033 = vrot.slane %v3673, 4
      %v4034 = vrot.slane %v3676, 5
      %v4035 = vor.u32 %v4033, %v4034
      %v4036 = vrot.slane %v4035, 4
      %v4037 = vrot.slane %v3684, 5
      %v4038 = vsel %vm583, %v4036, %v4037
      %v4039 = vrot.slane %v3681, 4
      %v4040 = vor.u32 %v4039, %v4037
      %v4041 = vrot.slane %v4040, 4
      %v4042 = vrot.slane %v3689, 4
      %v4043 = vrot.slane %v3692, 5
      %v4044 = vor.u32 %v4042, %v4043
      %v4045 = vrot.slane %v4044, 4
      %v4046 = vrot.slane %v3700, 5
      %v4047 = vsel %vm583, %v4045, %v4046
      %v4048 = vrot.slane %v3697, 4
      %v4049 = vor.u32 %v4048, %v4046
      %v4050 = vrot.slane %v4049, 4
      %v4051 = vrot.slane %v3705, 4
      %v4052 = vrot.slane %v3708, 5
      %v4053 = vor.u32 %v4051, %v4052
      %v4054 = vrot.slane %v4053, 4
      %v4055 = vrot.slane %v3716, 5
      %v4056 = vsel %vm583, %v4054, %v4055
      %v4057 = vrot.slane %v3713, 4
      %v4058 = vor.u32 %v4057, %v4055
      %v4059 = vrot.slane %v4058, 4
      %v4060 = vrot.slane %v3721, 4
      %v4061 = vrot.slane %v3724, 5
      %v4062 = vor.u32 %v4060, %v4061
      %v4063 = vrot.slane %v4062, 4
      %v4064 = vrot.slane %v3732, 5
      %v4065 = vsel %vm583, %v4063, %v4064
      %v4066 = vrot.slane %v3729, 4
      %v4067 = vor.u32 %v4066, %v4064
      %v4068 = vrot.slane %v4067, 4
      %v4069 = vrot.slane %v3737, 4
      %v4070 = vrot.slane %v3740, 5
      %v4071 = vor.u32 %v4069, %v4070
      %v4072 = vrot.slane %v4071, 4
      %v4073 = vrot.slane %v3748, 5
      %v4074 = vsel %vm583, %v4072, %v4073
      %v4075 = vrot.slane %v3745, 4
      %v4076 = vor.u32 %v4075, %v4073
      %v4077 = vrot.slane %v4076, 4
      %v4078 = vrot.slane %v3753, 4
      %v4079 = vrot.slane %v3756, 5
      %v4080 = vor.u32 %v4078, %v4079
      %v4081 = vrot.slane %v4080, 4
      %v4082 = vrot.slane %v3764, 5
      %v4083 = vsel %vm583, %v4081, %v4082
      %v4084 = vrot.slane %v3761, 4
      %v4085 = vor.u32 %v4084, %v4082
      %v4086 = vrot.slane %v4085, 4
      %v4087 = vrot.slane %v3769, 4
      %v4088 = vrot.slane %v3772, 5
      %v4089 = vor.u32 %v4087, %v4088
      %v4090 = vrot.slane %v4089, 4
      %v4091 = vrot.slane %v3780, 5
      %v4092 = vsel %vm583, %v4090, %v4091
      %v4093 = vrot.slane %v3777, 4
      %v4094 = vor.u32 %v4093, %v4091
      %v4095 = vrot.slane %v4094, 4
      %v4096 = vrot.slane %v3785, 4
      %v4097 = vrot.slane %v3788, 5
      %v4098 = vor.u32 %v4096, %v4097
      %v4099 = vrot.slane %v4098, 4
      %v4100 = vrot.slane %v3796, 5
      %v4101 = vsel %vm583, %v4099, %v4100
      %v4102 = vrot.slane %v3793, 4
      %v4103 = vor.u32 %v4102, %v4100
      %v4104 = vrot.slane %v4103, 4
      %v4105 = vrot.slane %v3801, 4
      %v4106 = vrot.slane %v3804, 5
      %v4107 = vor.u32 %v4105, %v4106
      %v4108 = vrot.slane %v4107, 4
      %v4109 = vrot.slane %v3812, 5
      %v4110 = vsel %vm583, %v4108, %v4109
      %v4111 = vrot.slane %v3809, 4
      %v4112 = vor.u32 %v4111, %v4109
      %v4113 = vrot.slane %v4112, 4
      %v4114 = vrot.slane %v3817, 4
      %v4115 = vrot.slane %v3820, 5
      %v4116 = vor.u32 %v4114, %v4115
      %v4117 = vrot.slane %v4116, 4
      %v4118 = vrot.slane %v3828, 5
      %v4119 = vsel %vm583, %v4117, %v4118
      %v4120 = vrot.slane %v3825, 4
      %v4121 = vor.u32 %v4120, %v4118
      %v4122 = vrot.slane %v4121, 4
      %v4123 = vrot.slane %v3833, 4
      %v4124 = vrot.slane %v3836, 5
      %v4125 = vor.u32 %v4123, %v4124
      %v4126 = vrot.slane %v4125, 4
      %v4127 = vrot.slane %v3844, 5
      %v4128 = vsel %vm583, %v4126, %v4127
      %v4129 = vrot.slane %v3841, 4
      %v4130 = vor.u32 %v4129, %v4127
      %v4131 = vrot.slane %v4130, 4
      %v4132 = vrot.slane %v3849, 4
      %v4133 = vrot.slane %v3852, 5
      %v4134 = vor.u32 %v4132, %v4133
      %v4135 = vrot.slane %v4134, 4
      %v4136 = vrot.slane %v3860, 5
      %v4137 = vsel %vm583, %v4135, %v4136
      %v4138 = vrot.slane %v3857, 4
      %v4139 = vor.u32 %v4138, %v4136
      %v4140 = vrot.slane %v4139, 4
      %v4141 = vrot.slane %v3865, 4
      %v4142 = vrot.slane %v3868, 5
      %v4143 = vor.u32 %v4141, %v4142
      %v4144 = vrot.slane %v4143, 4
      %v4145 = vrot.slane %v3876, 5
      %v4146 = vsel %vm583, %v4144, %v4145
      %v4147 = vrot.slane %v3873, 4
      %v4148 = vor.u32 %v4147, %v4145
      %v4149 = vrot.slane %v4148, 4
      %4150 = vrot.lane.b32.xlu0 %v3993, 8
      %v4151 = vpop.permute.xlu0 %4150
      %4152 = vrot.lane.b32.xlu0 %v3996, 8
      %v4153 = vpop.permute.xlu0 %4152
      %4154 = vrot.lane.b32.xlu0 %v4002, 8
      %v4155 = vpop.permute.xlu0 %4154
      %4156 = vrot.lane.b32.xlu0 %v4005, 8
      %v4157 = vpop.permute.xlu0 %4156
      %4158 = vrot.lane.b32.xlu0 %v4011, 8
      %v4159 = vpop.permute.xlu0 %4158
      %4160 = vrot.lane.b32.xlu0 %v4014, 8
      %v4161 = vpop.permute.xlu0 %4160
      %4162 = vrot.lane.b32.xlu0 %v4020, 8
      %v4163 = vpop.permute.xlu0 %4162
      %4164 = vrot.lane.b32.xlu0 %v4023, 8
      %v4165 = vpop.permute.xlu0 %4164
      %4166 = vrot.lane.b32.xlu0 %v4029, 8
      %v4167 = vpop.permute.xlu0 %4166
      %4168 = vrot.lane.b32.xlu0 %v4032, 8
      %v4169 = vpop.permute.xlu0 %4168
      %4170 = vrot.lane.b32.xlu0 %v4038, 8
      %v4171 = vpop.permute.xlu0 %4170
      %4172 = vrot.lane.b32.xlu0 %v4041, 8
      %v4173 = vpop.permute.xlu0 %4172
      %4174 = vrot.lane.b32.xlu0 %v4047, 8
      %v4175 = vpop.permute.xlu0 %4174
      %4176 = vrot.lane.b32.xlu0 %v4050, 8
      %v4177 = vpop.permute.xlu0 %4176
      %4178 = vrot.lane.b32.xlu0 %v4056, 8
      %v4179 = vpop.permute.xlu0 %4178
      %4180 = vrot.lane.b32.xlu0 %v4059, 8
      %v4181 = vpop.permute.xlu0 %4180
      %4182 = vrot.lane.b32.xlu0 %v4065, 8
      %v4183 = vpop.permute.xlu0 %4182
      %4184 = vrot.lane.b32.xlu0 %v4068, 8
      %v4185 = vpop.permute.xlu0 %4184
      %4186 = vrot.lane.b32.xlu0 %v4074, 8
      %v4187 = vpop.permute.xlu0 %4186
      %4188 = vrot.lane.b32.xlu0 %v4077, 8
      %v4189 = vpop.permute.xlu0 %4188
      %4190 = vrot.lane.b32.xlu0 %v4083, 8
      %v4191 = vpop.permute.xlu0 %4190
      %4192 = vrot.lane.b32.xlu0 %v4086, 8
      %v4193 = vpop.permute.xlu0 %4192
      %4194 = vrot.lane.b32.xlu0 %v4092, 8
      %v4195 = vpop.permute.xlu0 %4194
      %4196 = vrot.lane.b32.xlu0 %v4095, 8
      %v4197 = vpop.permute.xlu0 %4196
      %4198 = vrot.lane.b32.xlu0 %v4101, 8
      %v4199 = vpop.permute.xlu0 %4198
      %4200 = vrot.lane.b32.xlu0 %v4104, 8
      %v4201 = vpop.permute.xlu0 %4200
      %4202 = vrot.lane.b32.xlu0 %v4110, 8
      %v4203 = vpop.permute.xlu0 %4202
      %4204 = vrot.lane.b32.xlu0 %v4113, 8
      %v4205 = vpop.permute.xlu0 %4204
      %4206 = vrot.lane.b32.xlu0 %v4119, 8
      %v4207 = vpop.permute.xlu0 %4206
      %4208 = vrot.lane.b32.xlu0 %v4122, 8
      %v4209 = vpop.permute.xlu0 %4208
      %4210 = vrot.lane.b32.xlu0 %v4128, 8
      %v4211 = vpop.permute.xlu0 %4210
      %4212 = vrot.lane.b32.xlu0 %v4131, 8
      %v4213 = vpop.permute.xlu0 %4212
      %4214 = vrot.lane.b32.xlu0 %v4137, 8
      %v4215 = vpop.permute.xlu0 %4214
      %4216 = vrot.lane.b32.xlu0 %v4140, 8
      %v4217 = vpop.permute.xlu0 %4216
      %4218 = vrot.lane.b32.xlu0 %v4146, 8
      %v4219 = vpop.permute.xlu0 %4218
      %4220 = vrot.lane.b32.xlu0 %v4149, 8
      %v4221 = vpop.permute.xlu0 %4220
      %4258 = vst.msk [vmem:[#allocation2] sm:$0xf] %vm614, %v4151
      %v4259 = vld [vmem:[#allocation2 + $0x4] sm:$0xf]
      %v4260 = vsel %vm617, %v4153, %v4259
      %4261 = vst [vmem:[#allocation2 + $0x4] sm:$0xf] %v4260
      %4262 = vst.msk [vmem:[#allocation2 + $0x8] sm:$0xf] %vm614, %v4155
      %v4263 = vld [vmem:[#allocation2 + $0xc] sm:$0xf]
      %v4264 = vsel %vm617, %v4157, %v4263
      %4265 = vst [vmem:[#allocation2 + $0xc] sm:$0xf] %v4264
      %4266 = vst.msk [vmem:[#allocation2 + $0x10] sm:$0xf] %vm614, %v4159
      %v4267 = vld [vmem:[#allocation2 + $0x14] sm:$0xf]
      %v4268 = vsel %vm617, %v4161, %v4267
      %4269 = vst [vmem:[#allocation2 + $0x14] sm:$0xf] %v4268
      %4270 = vst.msk [vmem:[#allocation2 + $0x18] sm:$0xf] %vm614, %v4163
      %v4271 = vld [vmem:[#allocation2 + $0x1c] sm:$0xf]
      %v4272 = vsel %vm617, %v4165, %v4271
      %4273 = vst [vmem:[#allocation2 + $0x1c] sm:$0xf] %v4272
      %4274 = vst.msk [vmem:[#allocation2 + $0x20] sm:$0xf] %vm614, %v4167
      %v4275 = vld [vmem:[#allocation2 + $0x24] sm:$0xf]
      %v4276 = vsel %vm617, %v4169, %v4275
      %4277 = vst [vmem:[#allocation2 + $0x24] sm:$0xf] %v4276
      %4278 = vst.msk [vmem:[#allocation2 + $0x28] sm:$0xf] %vm614, %v4171
      %v4279 = vld [vmem:[#allocation2 + $0x2c] sm:$0xf]
      %v4280 = vsel %vm617, %v4173, %v4279
      %4281 = vst [vmem:[#allocation2 + $0x2c] sm:$0xf] %v4280
      %4282 = vst.msk [vmem:[#allocation2 + $0x30] sm:$0xf] %vm614, %v4175
      %v4283 = vld [vmem:[#allocation2 + $0x34] sm:$0xf]
      %v4284 = vsel %vm617, %v4177, %v4283
      %4285 = vst [vmem:[#allocation2 + $0x34] sm:$0xf] %v4284
      %4286 = vst.msk [vmem:[#allocation2 + $0x38] sm:$0xf] %vm614, %v4179
      %v4287 = vld [vmem:[#allocation2 + $0x3c] sm:$0xf]
      %v4288 = vsel %vm617, %v4181, %v4287
      %4289 = vst [vmem:[#allocation2 + $0x3c] sm:$0xf] %v4288
      %4290 = vst.msk [vmem:[#allocation2 + $0x40] sm:$0xf] %vm614, %v4183
      %v4291 = vld [vmem:[#allocation2 + $0x44] sm:$0xf]
      %v4292 = vsel %vm617, %v4185, %v4291
      %4293 = vst [vmem:[#allocation2 + $0x44] sm:$0xf] %v4292
      %4294 = vst.msk [vmem:[#allocation2 + $0x48] sm:$0xf] %vm614, %v4187
      %v4295 = vld [vmem:[#allocation2 + $0x4c] sm:$0xf]
      %v4296 = vsel %vm617, %v4189, %v4295
      %4297 = vst [vmem:[#allocation2 + $0x4c] sm:$0xf] %v4296
      %4298 = vst.msk [vmem:[#allocation2 + $0x50] sm:$0xf] %vm614, %v4191
      %v4299 = vld [vmem:[#allocation2 + $0x54] sm:$0xf]
      %v4300 = vsel %vm617, %v4193, %v4299
      %4301 = vst [vmem:[#allocation2 + $0x54] sm:$0xf] %v4300
      %4302 = vst.msk [vmem:[#allocation2 + $0x58] sm:$0xf] %vm614, %v4195
      %v4303 = vld [vmem:[#allocation2 + $0x5c] sm:$0xf]
      %v4304 = vsel %vm617, %v4197, %v4303
      %4305 = vst [vmem:[#allocation2 + $0x5c] sm:$0xf] %v4304
      %4306 = vst.msk [vmem:[#allocation2 + $0x60] sm:$0xf] %vm614, %v4199
      %v4307 = vld [vmem:[#allocation2 + $0x64] sm:$0xf]
      %v4308 = vsel %vm617, %v4201, %v4307
      %4309 = vst [vmem:[#allocation2 + $0x64] sm:$0xf] %v4308
      %4310 = vst.msk [vmem:[#allocation2 + $0x68] sm:$0xf] %vm614, %v4203
      %v4311 = vld [vmem:[#allocation2 + $0x6c] sm:$0xf]
      %v4312 = vsel %vm617, %v4205, %v4311
      %4313 = vst [vmem:[#allocation2 + $0x6c] sm:$0xf] %v4312
      %4314 = vst.msk [vmem:[#allocation2 + $0x70] sm:$0xf] %vm614, %v4207
      %v4315 = vld [vmem:[#allocation2 + $0x74] sm:$0xf]
      %v4316 = vsel %vm617, %v4209, %v4315
      %4317 = vst [vmem:[#allocation2 + $0x74] sm:$0xf] %v4316
      %4318 = vst.msk [vmem:[#allocation2 + $0x78] sm:$0xf] %vm614, %v4211
      %v4319 = vld [vmem:[#allocation2 + $0x7c] sm:$0xf]
      %v4320 = vsel %vm617, %v4213, %v4319
      %4321 = vst [vmem:[#allocation2 + $0x7c] sm:$0xf] %v4320
      %4322 = vst.msk [vmem:[#allocation2 + $0x80] sm:$0xf] %vm614, %v4215
      %v4323 = vld [vmem:[#allocation2 + $0x84] sm:$0xf]
      %v4324 = vsel %vm617, %v4217, %v4323
      %4325 = vst [vmem:[#allocation2 + $0x84] sm:$0xf] %v4324
      %4326 = vst.msk [vmem:[#allocation2 + $0x88] sm:$0xf] %vm614, %v4219
      %v4327 = vld [vmem:[#allocation2 + $0x8c] sm:$0xf]
      %v4328 = vsel %vm617, %v4221, %v4327
      %4329 = vst [vmem:[#allocation2 + $0x8c] sm:$0xf] %v4328
      %v4330 = vld [vmem:[#allocation2] sm:$0xf]
      %v4331 = vld [vmem:[#allocation2 + $0x4] sm:$0xf]
      %v4332 = vld [vmem:[#allocation2 + $0x8] sm:$0xf]
      %v4333 = vld [vmem:[#allocation2 + $0xc] sm:$0xf]
      %v4334 = vld [vmem:[#allocation2 + $0x10] sm:$0xf]
      %v4335 = vld [vmem:[#allocation2 + $0x14] sm:$0xf]
      %v4336 = vld [vmem:[#allocation2 + $0x18] sm:$0xf]
      %v4337 = vld [vmem:[#allocation2 + $0x1c] sm:$0xf]
      %v4338 = vld [vmem:[#allocation2 + $0x20] sm:$0xf]
      %v4339 = vld [vmem:[#allocation2 + $0x24] sm:$0xf]
      %v4340 = vld [vmem:[#allocation2 + $0x28] sm:$0xf]
      %v4341 = vld [vmem:[#allocation2 + $0x2c] sm:$0xf]
      %v4342 = vld [vmem:[#allocation2 + $0x30] sm:$0xf]
      %v4343 = vld [vmem:[#allocation2 + $0x34] sm:$0xf]
      %v4344 = vld [vmem:[#allocation2 + $0x38] sm:$0xf]
      %v4345 = vld [vmem:[#allocation2 + $0x3c] sm:$0xf]
      %v4346 = vld [vmem:[#allocation2 + $0x40] sm:$0xf]
      %v4347 = vld [vmem:[#allocation2 + $0x44] sm:$0xf]
      %v4348 = vld [vmem:[#allocation2 + $0x48] sm:$0xf]
      %v4349 = vld [vmem:[#allocation2 + $0x4c] sm:$0xf]
      %v4350 = vld [vmem:[#allocation2 + $0x50] sm:$0xf]
      %v4351 = vld [vmem:[#allocation2 + $0x54] sm:$0xf]
      %v4352 = vld [vmem:[#allocation2 + $0x58] sm:$0xf]
      %v4353 = vld [vmem:[#allocation2 + $0x5c] sm:$0xf]
      %v4354 = vld [vmem:[#allocation2 + $0x60] sm:$0xf]
      %v4355 = vld [vmem:[#allocation2 + $0x64] sm:$0xf]
      %v4356 = vld [vmem:[#allocation2 + $0x68] sm:$0xf]
      %v4357 = vld [vmem:[#allocation2 + $0x6c] sm:$0xf]
      %v4358 = vld [vmem:[#allocation2 + $0x70] sm:$0xf]
      %v4359 = vld [vmem:[#allocation2 + $0x74] sm:$0xf]
      %v4360 = vld [vmem:[#allocation2 + $0x78] sm:$0xf]
      %v4361 = vld [vmem:[#allocation2 + $0x7c] sm:$0xf]
      %v4362 = vld [vmem:[%s5] sm:$0xf]
      %v4363 = vld [vmem:[%s5 + $0x4] sm:$0x3]
      %v4364 = vld [vmem:[%s1831] sm:$0xf]
      %v4365 = vld [vmem:[%s1831 + $0x4] sm:$0xf]
      %v4366 = vld [vmem:[%s1831 + $0x8] sm:$0xf]
      %v4367 = vld [vmem:[%s1831 + $0xc] sm:$0xf]
      %v4368 = vld [vmem:[%s1831 + $0x10] sm:$0xf]
      %v4369 = vld [vmem:[%s1831 + $0x14] sm:$0xf]
      %v4370 = vld [vmem:[%s1831 + $0x18] sm:$0xf]
      %v4371 = vld [vmem:[%s1831 + $0x1c] sm:$0xf]
      %v4372 = vld [vmem:[%s1831 + $0x20] sm:$0xf]
      %v4373 = vld [vmem:[%s1831 + $0x24] sm:$0xf]
      %v4374 = vld [vmem:[%s1831 + $0x28] sm:$0xf]
      %v4375 = vld [vmem:[%s1831 + $0x2c] sm:$0xf]
      %v4376 = vld [vmem:[%s1831 + $0x30] sm:$0xf]
      %v4377 = vld [vmem:[%s1831 + $0x34] sm:$0xf]
      %v4378 = vld [vmem:[%s1831 + $0x38] sm:$0xf]
      %v4379 = vld [vmem:[%s1831 + $0x3c] sm:$0xf]
      %v4380 = vld [vmem:[%s1831 + $0x40] sm:$0xf]
      %v4381 = vld [vmem:[%s1831 + $0x44] sm:$0xf]
      %v4382 = vld [vmem:[%s1831 + $0x48] sm:$0xf]
      %v4383 = vld [vmem:[%s1831 + $0x4c] sm:$0xf]
      %v4384 = vld [vmem:[%s1831 + $0x50] sm:$0xf]
      %v4385 = vld [vmem:[%s1831 + $0x54] sm:$0xf]
      %v4386 = vld [vmem:[%s1831 + $0x58] sm:$0xf]
      %v4387 = vld [vmem:[%s1831 + $0x5c] sm:$0xf]
      %v4388 = vld [vmem:[%s1831 + $0x60] sm:$0xf]
      %v4389 = vld [vmem:[%s1831 + $0x64] sm:$0xf]
      %v4390 = vld [vmem:[%s1831 + $0x68] sm:$0xf]
      %v4391 = vld [vmem:[%s1831 + $0x6c] sm:$0xf]
      %v4392 = vld [vmem:[%s1831 + $0x70] sm:$0xf]
      %v4393 = vld [vmem:[%s1831 + $0x74] sm:$0xf]
      %v4394 = vld [vmem:[%s1831 + $0x78] sm:$0xf]
      %v4395 = vld [vmem:[%s1831 + $0x7c] sm:$0xf]
      %s4396 = scalar_lea.vmem %s5, 8
      %v4397 = vld [vmem:[%s4396] sm:$0xf]
      %v4398 = vld [vmem:[%s4396 + $0x4] sm:$0x3]
      %v4431 = vunpack.c.l.b16 %v4364
      %v4432 = vunpack.c.l.b16 %v4365
      %v4433 = vunpack.c.l.b16 %v4366
      %v4434 = vunpack.c.l.b16 %v4367
      %v4435 = vunpack.c.l.b16 %v4368
      %v4436 = vunpack.c.l.b16 %v4369
      %v4437 = vunpack.c.l.b16 %v4370
      %v4438 = vunpack.c.l.b16 %v4371
      %v4439 = vunpack.c.l.b16 %v4372
      %v4440 = vunpack.c.l.b16 %v4373
      %v4441 = vunpack.c.l.b16 %v4374
      %v4442 = vunpack.c.l.b16 %v4375
      %v4443 = vunpack.c.l.b16 %v4376
      %v4444 = vunpack.c.l.b16 %v4377
      %v4445 = vunpack.c.l.b16 %v4378
      %v4446 = vunpack.c.l.b16 %v4379
      %v4447 = vunpack.c.l.b16 %v4380
      %v4448 = vunpack.c.l.b16 %v4381
      %v4449 = vunpack.c.l.b16 %v4382
      %v4450 = vunpack.c.l.b16 %v4383
      %v4451 = vunpack.c.l.b16 %v4384
      %v4452 = vunpack.c.l.b16 %v4385
      %v4453 = vunpack.c.l.b16 %v4386
      %v4454 = vunpack.c.l.b16 %v4387
      %v4455 = vunpack.c.l.b16 %v4388
      %v4456 = vunpack.c.l.b16 %v4389
      %v4457 = vunpack.c.l.b16 %v4390
      %v4458 = vunpack.c.l.b16 %v4391
      %v4459 = vunpack.c.l.b16 %v4392
      %v4460 = vunpack.c.l.b16 %v4393
      %v4461 = vunpack.c.l.b16 %v4394
      %v4462 = vunpack.c.l.b16 %v4395
      %v4463 = vpack.c.b16 %v4432, %v4431
      %v4464 = vpack.c.b16 %v4434, %v4433
      %v4465 = vpack.c.b16 %v4436, %v4435
      %v4466 = vpack.c.b16 %v4438, %v4437
      %v4467 = vpack.c.b16 %v4440, %v4439
      %v4468 = vpack.c.b16 %v4442, %v4441
      %v4469 = vpack.c.b16 %v4444, %v4443
      %v4470 = vpack.c.b16 %v4446, %v4445
      %v4471 = vpack.c.b16 %v4448, %v4447
      %v4472 = vpack.c.b16 %v4450, %v4449
      %v4473 = vpack.c.b16 %v4452, %v4451
      %v4474 = vpack.c.b16 %v4454, %v4453
      %v4475 = vpack.c.b16 %v4456, %v4455
      %v4476 = vpack.c.b16 %v4458, %v4457
      %v4477 = vpack.c.b16 %v4460, %v4459
      %v4478 = vpack.c.b16 %v4462, %v4461
      %v4481 = vunpack.c.l.b16 %v4397
      %v4482 = vunpack.c.l.b16 %v4398
      %v4483 = vpack.c.b16 %v4482, %v4481
      %v4485 = vsel %vm1966, %v4463, 0
      %v4488 = vsel %vm1966, %v4464, 0
      %v4491 = vsel %vm1966, %v4465, 0
      %v4494 = vsel %vm1966, %v4466, 0
      %v4497 = vsel %vm1966, %v4467, 0
      %v4500 = vsel %vm1966, %v4468, 0
      %v4503 = vsel %vm1966, %v4469, 0
      %v4506 = vsel %vm1966, %v4470, 0
      %v4509 = vsel %vm1966, %v4471, 0
      %v4512 = vsel %vm1966, %v4472, 0
      %v4515 = vsel %vm1966, %v4473, 0
      %v4518 = vsel %vm1966, %v4474, 0
      %v4521 = vsel %vm1966, %v4475, 0
      %v4524 = vsel %vm1966, %v4476, 0
      %v4527 = vsel %vm1966, %v4477, 0
      %v4530 = vsel %vm1966, %v4478, 0
      %v4533 = vsel %vm2021, %v4483, 0
      %4535 = vmatprep.subr.bf16.mxu0 0
      %4536 = vmatpush1.bf16.msra.mxu0 0
      %4537 = vmatprep.subr.bf16.mxu0 0
      %4538 = vmatpush1.bf16.msra.mxu0 0
      %4539 = vmatprep.subr.bf16.mxu0 0
      %4540 = vmatpush1.bf16.msra.mxu0 0
      %4541 = vmatprep.subr.bf16.mxu0 0
      %4542 = vmatpush1.bf16.msra.mxu0 0
      %4543 = vmatprep.subr.bf16.mxu0 0
      %4544 = vmatpush1.bf16.msra.mxu0 0
      %4545 = vmatprep.subr.bf16.mxu0 0
      %4546 = vmatpush1.bf16.msra.mxu0 0
      %4547 = vmatprep.subr.bf16.mxu0 0
      %4548 = vmatpush1.bf16.msra.mxu0 0
      %4549 = vmatprep.subr.bf16.mxu0 0
      %4550 = vmatpush1.bf16.msra.mxu0 %v4533
      %4551 = vmatprep.subr.bf16.mxu0 0
      %4552 = vmatpush2.bf16.msra.mxu0 0
      %4553 = vmatprep.subr.bf16.mxu0 0
      %4554 = vmatpush2.bf16.msra.mxu0 0
      %4555 = vmatprep.subr.bf16.mxu0 0
      %4556 = vmatpush2.bf16.msra.mxu0 0
      %4557 = vmatprep.subr.bf16.mxu0 0
      %4558 = vmatpush2.bf16.msra.mxu0 0
      %4559 = vmatprep.subr.bf16.mxu0 0
      %4560 = vmatpush2.bf16.msra.mxu0 0
      %4561 = vmatprep.subr.bf16.mxu0 0
      %4562 = vmatpush2.bf16.msra.mxu0 0
      %4563 = vmatprep.subr.bf16.mxu0 0
      %4564 = vmatpush2.bf16.msra.mxu0 0
      %4565 = vmatprep.subr.bf16.mxu0 0
      %4566 = vmatpush2.bf16.msra.mxu0 0
      %4567 = vmatprep.mubr.bf16.mxu0 0
      %4568 = vmatmul.mubr.bf16.gmra.mxu0 %v4485
      %v4569 = vpop.f32.mrf.mxu0
      %v4570 = vadd.f32 0.0, %v4569
      %v4571 = vpop.f32.mrf.mxu0
      %v4572 = vpop.f32.mrf.mxu0
      %v4573 = vadd.f32 0.0, %v4572
      %v4574 = vpop.f32.mrf.mxu0
      %4575 = vmatprep.mubr.bf16.mxu0 0
      %4576 = vmatmul.mubr.bf16.gmra.mxu0 %v4488
      %v4577 = vpop.f32.mrf.mxu0
      %v4578 = vadd.f32 0.0, %v4577
      %v4579 = vpop.f32.mrf.mxu0
      %v4580 = vpop.f32.mrf.mxu0
      %v4581 = vadd.f32 0.0, %v4580
      %v4582 = vpop.f32.mrf.mxu0
      %4583 = vmatprep.mubr.bf16.mxu0 0
      %4584 = vmatmul.mubr.bf16.gmra.mxu0 %v4491
      %v4585 = vpop.f32.mrf.mxu0
      %v4586 = vadd.f32 0.0, %v4585
      %v4587 = vpop.f32.mrf.mxu0
      %v4588 = vpop.f32.mrf.mxu0
      %v4589 = vadd.f32 0.0, %v4588
      %v4590 = vpop.f32.mrf.mxu0
      %4591 = vmatprep.mubr.bf16.mxu0 0
      %4592 = vmatmul.mubr.bf16.gmra.mxu0 %v4494
      %v4593 = vpop.f32.mrf.mxu0
      %v4594 = vadd.f32 0.0, %v4593
      %v4595 = vpop.f32.mrf.mxu0
      %v4596 = vpop.f32.mrf.mxu0
      %v4597 = vadd.f32 0.0, %v4596
      %v4598 = vpop.f32.mrf.mxu0
      %4599 = vmatprep.mubr.bf16.mxu0 0
      %4600 = vmatmul.mubr.bf16.gmra.mxu0 %v4497
      %v4601 = vpop.f32.mrf.mxu0
      %v4602 = vadd.f32 0.0, %v4601
      %v4603 = vpop.f32.mrf.mxu0
      %v4604 = vpop.f32.mrf.mxu0
      %v4605 = vadd.f32 0.0, %v4604
      %v4606 = vpop.f32.mrf.mxu0
      %4607 = vmatprep.mubr.bf16.mxu0 0
      %4608 = vmatmul.mubr.bf16.gmra.mxu0 %v4500
      %v4609 = vpop.f32.mrf.mxu0
      %v4610 = vadd.f32 0.0, %v4609
      %v4611 = vpop.f32.mrf.mxu0
      %v4612 = vpop.f32.mrf.mxu0
      %v4613 = vadd.f32 0.0, %v4612
      %v4614 = vpop.f32.mrf.mxu0
      %4615 = vmatprep.mubr.bf16.mxu0 0
      %4616 = vmatmul.mubr.bf16.gmra.mxu0 %v4503
      %v4617 = vpop.f32.mrf.mxu0
      %v4618 = vadd.f32 0.0, %v4617
      %v4619 = vpop.f32.mrf.mxu0
      %v4620 = vpop.f32.mrf.mxu0
      %v4621 = vadd.f32 0.0, %v4620
      %v4622 = vpop.f32.mrf.mxu0
      %4623 = vmatprep.mubr.bf16.mxu0 0
      %4624 = vmatmul.mubr.bf16.gmra.mxu0 %v4506
      %v4625 = vpop.f32.mrf.mxu0
      %v4626 = vadd.f32 0.0, %v4625
      %v4627 = vpop.f32.mrf.mxu0
      %v4628 = vpop.f32.mrf.mxu0
      %v4629 = vadd.f32 0.0, %v4628
      %v4630 = vpop.f32.mrf.mxu0
      %4631 = vmatprep.mubr.bf16.mxu0 0
      %4632 = vmatmul.mubr.bf16.gmra.mxu0 %v4509
      %v4633 = vpop.f32.mrf.mxu0
      %v4634 = vadd.f32 0.0, %v4633
      %v4635 = vpop.f32.mrf.mxu0
      %v4636 = vpop.f32.mrf.mxu0
      %v4637 = vadd.f32 0.0, %v4636
      %v4638 = vpop.f32.mrf.mxu0
      %4639 = vmatprep.mubr.bf16.mxu0 0
      %4640 = vmatmul.mubr.bf16.gmra.mxu0 %v4512
      %v4641 = vpop.f32.mrf.mxu0
      %v4642 = vadd.f32 0.0, %v4641
      %v4643 = vpop.f32.mrf.mxu0
      %v4644 = vpop.f32.mrf.mxu0
      %v4645 = vadd.f32 0.0, %v4644
      %v4646 = vpop.f32.mrf.mxu0
      %4647 = vmatprep.mubr.bf16.mxu0 0
      %4648 = vmatmul.mubr.bf16.gmra.mxu0 %v4515
      %v4649 = vpop.f32.mrf.mxu0
      %v4650 = vadd.f32 0.0, %v4649
      %v4651 = vpop.f32.mrf.mxu0
      %v4652 = vpop.f32.mrf.mxu0
      %v4653 = vadd.f32 0.0, %v4652
      %v4654 = vpop.f32.mrf.mxu0
      %4655 = vmatprep.mubr.bf16.mxu0 0
      %4656 = vmatmul.mubr.bf16.gmra.mxu0 %v4518
      %v4657 = vpop.f32.mrf.mxu0
      %v4658 = vadd.f32 0.0, %v4657
      %v4659 = vpop.f32.mrf.mxu0
      %v4660 = vpop.f32.mrf.mxu0
      %v4661 = vadd.f32 0.0, %v4660
      %v4662 = vpop.f32.mrf.mxu0
      %4663 = vmatprep.mubr.bf16.mxu0 0
      %4664 = vmatmul.mubr.bf16.gmra.mxu0 %v4521
      %v4665 = vpop.f32.mrf.mxu0
      %v4666 = vadd.f32 0.0, %v4665
      %v4667 = vpop.f32.mrf.mxu0
      %v4668 = vpop.f32.mrf.mxu0
      %v4669 = vadd.f32 0.0, %v4668
      %v4670 = vpop.f32.mrf.mxu0
      %4671 = vmatprep.mubr.bf16.mxu0 0
      %4672 = vmatmul.mubr.bf16.gmra.mxu0 %v4524
      %v4673 = vpop.f32.mrf.mxu0
      %v4674 = vadd.f32 0.0, %v4673
      %v4675 = vpop.f32.mrf.mxu0
      %v4676 = vpop.f32.mrf.mxu0
      %v4677 = vadd.f32 0.0, %v4676
      %v4678 = vpop.f32.mrf.mxu0
      %4679 = vmatprep.mubr.bf16.mxu0 0
      %4680 = vmatmul.mubr.bf16.gmra.mxu0 %v4527
      %v4681 = vpop.f32.mrf.mxu0
      %v4682 = vadd.f32 0.0, %v4681
      %v4683 = vpop.f32.mrf.mxu0
      %v4684 = vpop.f32.mrf.mxu0
      %v4685 = vadd.f32 0.0, %v4684
      %v4686 = vpop.f32.mrf.mxu0
      %4687 = vmatprep.mubr.bf16.mxu0 0
      %4688 = vmatmul.mubr.bf16.gmra.mxu0 %v4530
      %v4689 = vpop.f32.mrf.mxu0
      %v4690 = vadd.f32 0.0, %v4689
      %v4691 = vpop.f32.mrf.mxu0
      %v4692 = vpop.f32.mrf.mxu0
      %v4693 = vadd.f32 0.0, %v4692
      %v4694 = vpop.f32.mrf.mxu0
      %4695 = vdwg.mxu0
      %v4728 = vunpack.c.l.b16 %v4330
      %v4729 = vunpack.c.l.b16 %v4331
      %v4730 = vunpack.c.l.b16 %v4332
      %v4731 = vunpack.c.l.b16 %v4333
      %v4732 = vunpack.c.l.b16 %v4334
      %v4733 = vunpack.c.l.b16 %v4335
      %v4734 = vunpack.c.l.b16 %v4336
      %v4735 = vunpack.c.l.b16 %v4337
      %v4736 = vunpack.c.l.b16 %v4338
      %v4737 = vunpack.c.l.b16 %v4339
      %v4738 = vunpack.c.l.b16 %v4340
      %v4739 = vunpack.c.l.b16 %v4341
      %v4740 = vunpack.c.l.b16 %v4342
      %v4741 = vunpack.c.l.b16 %v4343
      %v4742 = vunpack.c.l.b16 %v4344
      %v4743 = vunpack.c.l.b16 %v4345
      %v4744 = vunpack.c.l.b16 %v4346
      %v4745 = vunpack.c.l.b16 %v4347
      %v4746 = vunpack.c.l.b16 %v4348
      %v4747 = vunpack.c.l.b16 %v4349
      %v4748 = vunpack.c.l.b16 %v4350
      %v4749 = vunpack.c.l.b16 %v4351
      %v4750 = vunpack.c.l.b16 %v4352
      %v4751 = vunpack.c.l.b16 %v4353
      %v4752 = vunpack.c.l.b16 %v4354
      %v4753 = vunpack.c.l.b16 %v4355
      %v4754 = vunpack.c.l.b16 %v4356
      %v4755 = vunpack.c.l.b16 %v4357
      %v4756 = vunpack.c.l.b16 %v4358
      %v4757 = vunpack.c.l.b16 %v4359
      %v4758 = vunpack.c.l.b16 %v4360
      %v4759 = vunpack.c.l.b16 %v4361
      %v4760 = vpack.c.b16 %v4729, %v4728
      %v4761 = vpack.c.b16 %v4731, %v4730
      %v4762 = vpack.c.b16 %v4733, %v4732
      %v4763 = vpack.c.b16 %v4735, %v4734
      %v4764 = vpack.c.b16 %v4737, %v4736
      %v4765 = vpack.c.b16 %v4739, %v4738
      %v4766 = vpack.c.b16 %v4741, %v4740
      %v4767 = vpack.c.b16 %v4743, %v4742
      %v4768 = vpack.c.b16 %v4745, %v4744
      %v4769 = vpack.c.b16 %v4747, %v4746
      %v4770 = vpack.c.b16 %v4749, %v4748
      %v4771 = vpack.c.b16 %v4751, %v4750
      %v4772 = vpack.c.b16 %v4753, %v4752
      %v4773 = vpack.c.b16 %v4755, %v4754
      %v4774 = vpack.c.b16 %v4757, %v4756
      %v4775 = vpack.c.b16 %v4759, %v4758
      %v4778 = vunpack.c.l.b16 %v4362
      %v4779 = vunpack.c.l.b16 %v4363
      %v4780 = vpack.c.b16 %v4779, %v4778
      %v4782 = vsel %vm1966, %v4760, 0
      %v4785 = vsel %vm1966, %v4761, 0
      %v4788 = vsel %vm1966, %v4762, 0
      %v4791 = vsel %vm1966, %v4763, 0
      %v4794 = vsel %vm1966, %v4764, 0
      %v4797 = vsel %vm1966, %v4765, 0
      %v4800 = vsel %vm1966, %v4766, 0
      %v4803 = vsel %vm1966, %v4767, 0
      %v4806 = vsel %vm1966, %v4768, 0
      %v4809 = vsel %vm1966, %v4769, 0
      %v4812 = vsel %vm1966, %v4770, 0
      %v4815 = vsel %vm1966, %v4771, 0
      %v4818 = vsel %vm1966, %v4772, 0
      %v4821 = vsel %vm1966, %v4773, 0
      %v4824 = vsel %vm1966, %v4774, 0
      %v4827 = vsel %vm1966, %v4775, 0
      %v4830 = vsel %vm2021, %v4780, 0
      %4832 = vmatprep.subr.bf16.mxu0 0
      %4833 = vmatpush1.bf16.msra.mxu0 0
      %4834 = vmatprep.subr.bf16.mxu0 0
      %4835 = vmatpush1.bf16.msra.mxu0 0
      %4836 = vmatprep.subr.bf16.mxu0 0
      %4837 = vmatpush1.bf16.msra.mxu0 0
      %4838 = vmatprep.subr.bf16.mxu0 0
      %4839 = vmatpush1.bf16.msra.mxu0 0
      %4840 = vmatprep.subr.bf16.mxu0 0
      %4841 = vmatpush1.bf16.msra.mxu0 0
      %4842 = vmatprep.subr.bf16.mxu0 0
      %4843 = vmatpush1.bf16.msra.mxu0 0
      %4844 = vmatprep.subr.bf16.mxu0 0
      %4845 = vmatpush1.bf16.msra.mxu0 0
      %4846 = vmatprep.subr.bf16.mxu0 0
      %4847 = vmatpush1.bf16.msra.mxu0 %v4830
      %4848 = vmatprep.subr.bf16.mxu0 0
      %4849 = vmatpush2.bf16.msra.mxu0 0
      %4850 = vmatprep.subr.bf16.mxu0 0
      %4851 = vmatpush2.bf16.msra.mxu0 0
      %4852 = vmatprep.subr.bf16.mxu0 0
      %4853 = vmatpush2.bf16.msra.mxu0 0
      %4854 = vmatprep.subr.bf16.mxu0 0
      %4855 = vmatpush2.bf16.msra.mxu0 0
      %4856 = vmatprep.subr.bf16.mxu0 0
      %4857 = vmatpush2.bf16.msra.mxu0 0
      %4858 = vmatprep.subr.bf16.mxu0 0
      %4859 = vmatpush2.bf16.msra.mxu0 0
      %4860 = vmatprep.subr.bf16.mxu0 0
      %4861 = vmatpush2.bf16.msra.mxu0 0
      %4862 = vmatprep.subr.bf16.mxu0 0
      %4863 = vmatpush2.bf16.msra.mxu0 0
      %4864 = vmatprep.mubr.bf16.mxu0 0
      %4865 = vmatmul.mubr.bf16.gmra.mxu0 %v4782
      %v4866 = vpop.f32.mrf.mxu0
      %v4867 = vadd.f32 %v4570, %v4866
      %v4868 = vpop.f32.mrf.mxu0
      %v4869 = vpop.f32.mrf.mxu0
      %v4870 = vadd.f32 %v4573, %v4869
      %v4871 = vpop.f32.mrf.mxu0
      %4872 = vmatprep.mubr.bf16.mxu0 0
      %4873 = vmatmul.mubr.bf16.gmra.mxu0 %v4785
      %v4874 = vpop.f32.mrf.mxu0
      %v4875 = vadd.f32 %v4578, %v4874
      %v4876 = vpop.f32.mrf.mxu0
      %v4877 = vpop.f32.mrf.mxu0
      %v4878 = vadd.f32 %v4581, %v4877
      %v4879 = vpop.f32.mrf.mxu0
      %4880 = vmatprep.mubr.bf16.mxu0 0
      %4881 = vmatmul.mubr.bf16.gmra.mxu0 %v4788
      %v4882 = vpop.f32.mrf.mxu0
      %v4883 = vadd.f32 %v4586, %v4882
      %v4884 = vpop.f32.mrf.mxu0
      %v4885 = vpop.f32.mrf.mxu0
      %v4886 = vadd.f32 %v4589, %v4885
      %v4887 = vpop.f32.mrf.mxu0
      %4888 = vmatprep.mubr.bf16.mxu0 0
      %4889 = vmatmul.mubr.bf16.gmra.mxu0 %v4791
      %v4890 = vpop.f32.mrf.mxu0
      %v4891 = vadd.f32 %v4594, %v4890
      %v4892 = vpop.f32.mrf.mxu0
      %v4893 = vpop.f32.mrf.mxu0
      %v4894 = vadd.f32 %v4597, %v4893
      %v4895 = vpop.f32.mrf.mxu0
      %4896 = vmatprep.mubr.bf16.mxu0 0
      %4897 = vmatmul.mubr.bf16.gmra.mxu0 %v4794
      %v4898 = vpop.f32.mrf.mxu0
      %v4899 = vadd.f32 %v4602, %v4898
      %v4900 = vpop.f32.mrf.mxu0
      %v4901 = vpop.f32.mrf.mxu0
      %v4902 = vadd.f32 %v4605, %v4901
      %v4903 = vpop.f32.mrf.mxu0
      %4904 = vmatprep.mubr.bf16.mxu0 0
      %4905 = vmatmul.mubr.bf16.gmra.mxu0 %v4797
      %v4906 = vpop.f32.mrf.mxu0
      %v4907 = vadd.f32 %v4610, %v4906
      %v4908 = vpop.f32.mrf.mxu0
      %v4909 = vpop.f32.mrf.mxu0
      %v4910 = vadd.f32 %v4613, %v4909
      %v4911 = vpop.f32.mrf.mxu0
      %4912 = vmatprep.mubr.bf16.mxu0 0
      %4913 = vmatmul.mubr.bf16.gmra.mxu0 %v4800
      %v4914 = vpop.f32.mrf.mxu0
      %v4915 = vadd.f32 %v4618, %v4914
      %v4916 = vpop.f32.mrf.mxu0
      %v4917 = vpop.f32.mrf.mxu0
      %v4918 = vadd.f32 %v4621, %v4917
      %v4919 = vpop.f32.mrf.mxu0
      %4920 = vmatprep.mubr.bf16.mxu0 0
      %4921 = vmatmul.mubr.bf16.gmra.mxu0 %v4803
      %v4922 = vpop.f32.mrf.mxu0
      %v4923 = vadd.f32 %v4626, %v4922
      %v4924 = vpop.f32.mrf.mxu0
      %v4925 = vpop.f32.mrf.mxu0
      %v4926 = vadd.f32 %v4629, %v4925
      %v4927 = vpop.f32.mrf.mxu0
      %4928 = vmatprep.mubr.bf16.mxu0 0
      %4929 = vmatmul.mubr.bf16.gmra.mxu0 %v4806
      %v4930 = vpop.f32.mrf.mxu0
      %v4931 = vadd.f32 %v4634, %v4930
      %v4932 = vpop.f32.mrf.mxu0
      %v4933 = vpop.f32.mrf.mxu0
      %v4934 = vadd.f32 %v4637, %v4933
      %v4935 = vpop.f32.mrf.mxu0
      %4936 = vmatprep.mubr.bf16.mxu0 0
      %4937 = vmatmul.mubr.bf16.gmra.mxu0 %v4809
      %v4938 = vpop.f32.mrf.mxu0
      %v4939 = vadd.f32 %v4642, %v4938
      %v4940 = vpop.f32.mrf.mxu0
      %v4941 = vpop.f32.mrf.mxu0
      %v4942 = vadd.f32 %v4645, %v4941
      %v4943 = vpop.f32.mrf.mxu0
      %4944 = vmatprep.mubr.bf16.mxu0 0
      %4945 = vmatmul.mubr.bf16.gmra.mxu0 %v4812
      %v4946 = vpop.f32.mrf.mxu0
      %v4947 = vadd.f32 %v4650, %v4946
      %v4948 = vpop.f32.mrf.mxu0
      %v4949 = vpop.f32.mrf.mxu0
      %v4950 = vadd.f32 %v4653, %v4949
      %v4951 = vpop.f32.mrf.mxu0
      %4952 = vmatprep.mubr.bf16.mxu0 0
      %4953 = vmatmul.mubr.bf16.gmra.mxu0 %v4815
      %v4954 = vpop.f32.mrf.mxu0
      %v4955 = vadd.f32 %v4658, %v4954
      %v4956 = vpop.f32.mrf.mxu0
      %v4957 = vpop.f32.mrf.mxu0
      %v4958 = vadd.f32 %v4661, %v4957
      %v4959 = vpop.f32.mrf.mxu0
      %4960 = vmatprep.mubr.bf16.mxu0 0
      %4961 = vmatmul.mubr.bf16.gmra.mxu0 %v4818
      %v4962 = vpop.f32.mrf.mxu0
      %v4963 = vadd.f32 %v4666, %v4962
      %v4964 = vpop.f32.mrf.mxu0
      %v4965 = vpop.f32.mrf.mxu0
      %v4966 = vadd.f32 %v4669, %v4965
      %v4967 = vpop.f32.mrf.mxu0
      %4968 = vmatprep.mubr.bf16.mxu0 0
      %4969 = vmatmul.mubr.bf16.gmra.mxu0 %v4821
      %v4970 = vpop.f32.mrf.mxu0
      %v4971 = vadd.f32 %v4674, %v4970
      %v4972 = vpop.f32.mrf.mxu0
      %v4973 = vpop.f32.mrf.mxu0
      %v4974 = vadd.f32 %v4677, %v4973
      %v4975 = vpop.f32.mrf.mxu0
      %4976 = vmatprep.mubr.bf16.mxu0 0
      %4977 = vmatmul.mubr.bf16.gmra.mxu0 %v4824
      %v4978 = vpop.f32.mrf.mxu0
      %v4979 = vadd.f32 %v4682, %v4978
      %v4980 = vpop.f32.mrf.mxu0
      %v4981 = vpop.f32.mrf.mxu0
      %v4982 = vadd.f32 %v4685, %v4981
      %v4983 = vpop.f32.mrf.mxu0
      %4984 = vmatprep.mubr.bf16.mxu0 0
      %4985 = vmatmul.mubr.bf16.gmra.mxu0 %v4827
      %v4986 = vpop.f32.mrf.mxu0
      %v4987 = vadd.f32 %v4690, %v4986
      %v4988 = vpop.f32.mrf.mxu0
      %v4989 = vpop.f32.mrf.mxu0
      %v4990 = vadd.f32 %v4693, %v4989
      %v4991 = vpop.f32.mrf.mxu0
      %4992 = vdwg.mxu0
      %v4993 = vld [vmem:[%s881] sm:$0xf]
      %v4994 = vld [vmem:[%s881 + $0x4] sm:$0xf]
      %v4995 = vld [vmem:[%s881 + $0x8] sm:$0xf]
      %v4996 = vld [vmem:[%s881 + $0xc] sm:$0xf]
      %v4997 = vld [vmem:[%s881 + $0x10] sm:$0xf]
      %v4998 = vld [vmem:[%s881 + $0x14] sm:$0xf]
      %v4999 = vld [vmem:[%s881 + $0x18] sm:$0xf]
      %v5000 = vld [vmem:[%s881 + $0x1c] sm:$0xf]
      %v5001 = vld [vmem:[%s881 + $0x20] sm:$0xf]
      %v5002 = vld [vmem:[%s881 + $0x24] sm:$0xf]
      %v5003 = vld [vmem:[%s881 + $0x28] sm:$0xf]
      %v5004 = vld [vmem:[%s881 + $0x2c] sm:$0xf]
      %v5005 = vld [vmem:[%s881 + $0x30] sm:$0xf]
      %v5006 = vld [vmem:[%s881 + $0x34] sm:$0xf]
      %v5007 = vld [vmem:[%s881 + $0x38] sm:$0xf]
      %v5008 = vld [vmem:[%s881 + $0x3c] sm:$0xf]
      %v5009 = vld [vmem:[%s881 + $0x40] sm:$0xf]
      %v5010 = vld [vmem:[%s881 + $0x44] sm:$0xf]
      %v5011 = vld [vmem:[%s881 + $0x48] sm:$0xf]
      %v5012 = vld [vmem:[%s881 + $0x4c] sm:$0xf]
      %v5013 = vld [vmem:[%s881 + $0x50] sm:$0xf]
      %v5014 = vld [vmem:[%s881 + $0x54] sm:$0xf]
      %v5015 = vld [vmem:[%s881 + $0x58] sm:$0xf]
      %v5016 = vld [vmem:[%s881 + $0x5c] sm:$0xf]
      %v5017 = vld [vmem:[%s881 + $0x60] sm:$0xf]
      %v5018 = vld [vmem:[%s881 + $0x64] sm:$0xf]
      %v5019 = vld [vmem:[%s881 + $0x68] sm:$0xf]
      %v5020 = vld [vmem:[%s881 + $0x6c] sm:$0xf]
      %v5021 = vld [vmem:[%s881 + $0x70] sm:$0xf]
      %v5022 = vld [vmem:[%s881 + $0x74] sm:$0xf]
      %v5023 = vld [vmem:[%s881 + $0x78] sm:$0xf]
      %v5024 = vld [vmem:[%s881 + $0x7c] sm:$0xf]
      %s5025 = scalar_lea.vmem %s5, 16
      %v5026 = vld [vmem:[%s5025] sm:$0xf]
      %v5027 = vld [vmem:[%s5025 + $0x4] sm:$0x3]
      %v5060 = vunpack.c.l.b16 %v4993
      %v5061 = vunpack.c.l.b16 %v4994
      %v5062 = vunpack.c.l.b16 %v4995
      %v5063 = vunpack.c.l.b16 %v4996
      %v5064 = vunpack.c.l.b16 %v4997
      %v5065 = vunpack.c.l.b16 %v4998
      %v5066 = vunpack.c.l.b16 %v4999
      %v5067 = vunpack.c.l.b16 %v5000
      %v5068 = vunpack.c.l.b16 %v5001
      %v5069 = vunpack.c.l.b16 %v5002
      %v5070 = vunpack.c.l.b16 %v5003
      %v5071 = vunpack.c.l.b16 %v5004
      %v5072 = vunpack.c.l.b16 %v5005
      %v5073 = vunpack.c.l.b16 %v5006
      %v5074 = vunpack.c.l.b16 %v5007
      %v5075 = vunpack.c.l.b16 %v5008
      %v5076 = vunpack.c.l.b16 %v5009
      %v5077 = vunpack.c.l.b16 %v5010
      %v5078 = vunpack.c.l.b16 %v5011
      %v5079 = vunpack.c.l.b16 %v5012
      %v5080 = vunpack.c.l.b16 %v5013
      %v5081 = vunpack.c.l.b16 %v5014
      %v5082 = vunpack.c.l.b16 %v5015
      %v5083 = vunpack.c.l.b16 %v5016
      %v5084 = vunpack.c.l.b16 %v5017
      %v5085 = vunpack.c.l.b16 %v5018
      %v5086 = vunpack.c.l.b16 %v5019
      %v5087 = vunpack.c.l.b16 %v5020
      %v5088 = vunpack.c.l.b16 %v5021
      %v5089 = vunpack.c.l.b16 %v5022
      %v5090 = vunpack.c.l.b16 %v5023
      %v5091 = vunpack.c.l.b16 %v5024
      %v5092 = vpack.c.b16 %v5061, %v5060
      %v5093 = vpack.c.b16 %v5063, %v5062
      %v5094 = vpack.c.b16 %v5065, %v5064
      %v5095 = vpack.c.b16 %v5067, %v5066
      %v5096 = vpack.c.b16 %v5069, %v5068
      %v5097 = vpack.c.b16 %v5071, %v5070
      %v5098 = vpack.c.b16 %v5073, %v5072
      %v5099 = vpack.c.b16 %v5075, %v5074
      %v5100 = vpack.c.b16 %v5077, %v5076
      %v5101 = vpack.c.b16 %v5079, %v5078
      %v5102 = vpack.c.b16 %v5081, %v5080
      %v5103 = vpack.c.b16 %v5083, %v5082
      %v5104 = vpack.c.b16 %v5085, %v5084
      %v5105 = vpack.c.b16 %v5087, %v5086
      %v5106 = vpack.c.b16 %v5089, %v5088
      %v5107 = vpack.c.b16 %v5091, %v5090
      %v5110 = vunpack.c.l.b16 %v5026
      %v5111 = vunpack.c.l.b16 %v5027
      %v5112 = vpack.c.b16 %v5111, %v5110
      %v5114 = vsel %vm1966, %v5092, 0
      %v5117 = vsel %vm1966, %v5093, 0
      %v5120 = vsel %vm1966, %v5094, 0
      %v5123 = vsel %vm1966, %v5095, 0
      %v5126 = vsel %vm1966, %v5096, 0
      %v5129 = vsel %vm1966, %v5097, 0
      %v5132 = vsel %vm1966, %v5098, 0
      %v5135 = vsel %vm1966, %v5099, 0
      %v5138 = vsel %vm1966, %v5100, 0
      %v5141 = vsel %vm1966, %v5101, 0
      %v5144 = vsel %vm1966, %v5102, 0
      %v5147 = vsel %vm1966, %v5103, 0
      %v5150 = vsel %vm1966, %v5104, 0
      %v5153 = vsel %vm1966, %v5105, 0
      %v5156 = vsel %vm1966, %v5106, 0
      %v5159 = vsel %vm1966, %v5107, 0
      %v5162 = vsel %vm2021, %v5112, 0
      %5164 = vmatprep.subr.bf16.mxu0 0
      %5165 = vmatpush1.bf16.msra.mxu0 0
      %5166 = vmatprep.subr.bf16.mxu0 0
      %5167 = vmatpush1.bf16.msra.mxu0 0
      %5168 = vmatprep.subr.bf16.mxu0 0
      %5169 = vmatpush1.bf16.msra.mxu0 0
      %5170 = vmatprep.subr.bf16.mxu0 0
      %5171 = vmatpush1.bf16.msra.mxu0 0
      %5172 = vmatprep.subr.bf16.mxu0 0
      %5173 = vmatpush1.bf16.msra.mxu0 0
      %5174 = vmatprep.subr.bf16.mxu0 0
      %5175 = vmatpush1.bf16.msra.mxu0 0
      %5176 = vmatprep.subr.bf16.mxu0 0
      %5177 = vmatpush1.bf16.msra.mxu0 0
      %5178 = vmatprep.subr.bf16.mxu0 0
      %5179 = vmatpush1.bf16.msra.mxu0 %v5162
      %5180 = vmatprep.subr.bf16.mxu0 0
      %5181 = vmatpush2.bf16.msra.mxu0 0
      %5182 = vmatprep.subr.bf16.mxu0 0
      %5183 = vmatpush2.bf16.msra.mxu0 0
      %5184 = vmatprep.subr.bf16.mxu0 0
      %5185 = vmatpush2.bf16.msra.mxu0 0
      %5186 = vmatprep.subr.bf16.mxu0 0
      %5187 = vmatpush2.bf16.msra.mxu0 0
      %5188 = vmatprep.subr.bf16.mxu0 0
      %5189 = vmatpush2.bf16.msra.mxu0 0
      %5190 = vmatprep.subr.bf16.mxu0 0
      %5191 = vmatpush2.bf16.msra.mxu0 0
      %5192 = vmatprep.subr.bf16.mxu0 0
      %5193 = vmatpush2.bf16.msra.mxu0 0
      %5194 = vmatprep.subr.bf16.mxu0 0
      %5195 = vmatpush2.bf16.msra.mxu0 0
      %5196 = vmatprep.mubr.bf16.mxu0 0
      %5197 = vmatmul.mubr.bf16.gmra.mxu0 %v5114
      %v5198 = vpop.f32.mrf.mxu0
      %v5199 = vadd.f32 0.0, %v5198
      %v5200 = vpop.f32.mrf.mxu0
      %v5201 = vpop.f32.mrf.mxu0
      %v5202 = vadd.f32 0.0, %v5201
      %v5203 = vpop.f32.mrf.mxu0
      %5204 = vmatprep.mubr.bf16.mxu0 0
      %5205 = vmatmul.mubr.bf16.gmra.mxu0 %v5117
      %v5206 = vpop.f32.mrf.mxu0
      %v5207 = vadd.f32 0.0, %v5206
      %v5208 = vpop.f32.mrf.mxu0
      %v5209 = vpop.f32.mrf.mxu0
      %v5210 = vadd.f32 0.0, %v5209
      %v5211 = vpop.f32.mrf.mxu0
      %5212 = vmatprep.mubr.bf16.mxu0 0
      %5213 = vmatmul.mubr.bf16.gmra.mxu0 %v5120
      %v5214 = vpop.f32.mrf.mxu0
      %v5215 = vadd.f32 0.0, %v5214
      %v5216 = vpop.f32.mrf.mxu0
      %v5217 = vpop.f32.mrf.mxu0
      %v5218 = vadd.f32 0.0, %v5217
      %v5219 = vpop.f32.mrf.mxu0
      %5220 = vmatprep.mubr.bf16.mxu0 0
      %5221 = vmatmul.mubr.bf16.gmra.mxu0 %v5123
      %v5222 = vpop.f32.mrf.mxu0
      %v5223 = vadd.f32 0.0, %v5222
      %v5224 = vpop.f32.mrf.mxu0
      %v5225 = vpop.f32.mrf.mxu0
      %v5226 = vadd.f32 0.0, %v5225
      %v5227 = vpop.f32.mrf.mxu0
      %5228 = vmatprep.mubr.bf16.mxu0 0
      %5229 = vmatmul.mubr.bf16.gmra.mxu0 %v5126
      %v5230 = vpop.f32.mrf.mxu0
      %v5231 = vadd.f32 0.0, %v5230
      %v5232 = vpop.f32.mrf.mxu0
      %v5233 = vpop.f32.mrf.mxu0
      %v5234 = vadd.f32 0.0, %v5233
      %v5235 = vpop.f32.mrf.mxu0
      %5236 = vmatprep.mubr.bf16.mxu0 0
      %5237 = vmatmul.mubr.bf16.gmra.mxu0 %v5129
      %v5238 = vpop.f32.mrf.mxu0
      %v5239 = vadd.f32 0.0, %v5238
      %v5240 = vpop.f32.mrf.mxu0
      %v5241 = vpop.f32.mrf.mxu0
      %v5242 = vadd.f32 0.0, %v5241
      %v5243 = vpop.f32.mrf.mxu0
      %5244 = vmatprep.mubr.bf16.mxu0 0
      %5245 = vmatmul.mubr.bf16.gmra.mxu0 %v5132
      %v5246 = vpop.f32.mrf.mxu0
      %v5247 = vadd.f32 0.0, %v5246
      %v5248 = vpop.f32.mrf.mxu0
      %v5249 = vpop.f32.mrf.mxu0
      %v5250 = vadd.f32 0.0, %v5249
      %v5251 = vpop.f32.mrf.mxu0
      %5252 = vmatprep.mubr.bf16.mxu0 0
      %5253 = vmatmul.mubr.bf16.gmra.mxu0 %v5135
      %v5254 = vpop.f32.mrf.mxu0
      %v5255 = vadd.f32 0.0, %v5254
      %v5256 = vpop.f32.mrf.mxu0
      %v5257 = vpop.f32.mrf.mxu0
      %v5258 = vadd.f32 0.0, %v5257
      %v5259 = vpop.f32.mrf.mxu0
      %5260 = vmatprep.mubr.bf16.mxu0 0
      %5261 = vmatmul.mubr.bf16.gmra.mxu0 %v5138
      %v5262 = vpop.f32.mrf.mxu0
      %v5263 = vadd.f32 0.0, %v5262
      %v5264 = vpop.f32.mrf.mxu0
      %v5265 = vpop.f32.mrf.mxu0
      %v5266 = vadd.f32 0.0, %v5265
      %v5267 = vpop.f32.mrf.mxu0
      %5268 = vmatprep.mubr.bf16.mxu0 0
      %5269 = vmatmul.mubr.bf16.gmra.mxu0 %v5141
      %v5270 = vpop.f32.mrf.mxu0
      %v5271 = vadd.f32 0.0, %v5270
      %v5272 = vpop.f32.mrf.mxu0
      %v5273 = vpop.f32.mrf.mxu0
      %v5274 = vadd.f32 0.0, %v5273
      %v5275 = vpop.f32.mrf.mxu0
      %5276 = vmatprep.mubr.bf16.mxu0 0
      %5277 = vmatmul.mubr.bf16.gmra.mxu0 %v5144
      %v5278 = vpop.f32.mrf.mxu0
      %v5279 = vadd.f32 0.0, %v5278
      %v5280 = vpop.f32.mrf.mxu0
      %v5281 = vpop.f32.mrf.mxu0
      %v5282 = vadd.f32 0.0, %v5281
      %v5283 = vpop.f32.mrf.mxu0
      %5284 = vmatprep.mubr.bf16.mxu0 0
      %5285 = vmatmul.mubr.bf16.gmra.mxu0 %v5147
      %v5286 = vpop.f32.mrf.mxu0
      %v5287 = vadd.f32 0.0, %v5286
      %v5288 = vpop.f32.mrf.mxu0
      %v5289 = vpop.f32.mrf.mxu0
      %v5290 = vadd.f32 0.0, %v5289
      %v5291 = vpop.f32.mrf.mxu0
      %5292 = vmatprep.mubr.bf16.mxu0 0
      %5293 = vmatmul.mubr.bf16.gmra.mxu0 %v5150
      %v5294 = vpop.f32.mrf.mxu0
      %v5295 = vadd.f32 0.0, %v5294
      %v5296 = vpop.f32.mrf.mxu0
      %v5297 = vpop.f32.mrf.mxu0
      %v5298 = vadd.f32 0.0, %v5297
      %v5299 = vpop.f32.mrf.mxu0
      %5300 = vmatprep.mubr.bf16.mxu0 0
      %5301 = vmatmul.mubr.bf16.gmra.mxu0 %v5153
      %v5302 = vpop.f32.mrf.mxu0
      %v5303 = vadd.f32 0.0, %v5302
      %v5304 = vpop.f32.mrf.mxu0
      %v5305 = vpop.f32.mrf.mxu0
      %v5306 = vadd.f32 0.0, %v5305
      %v5307 = vpop.f32.mrf.mxu0
      %5308 = vmatprep.mubr.bf16.mxu0 0
      %5309 = vmatmul.mubr.bf16.gmra.mxu0 %v5156
      %v5310 = vpop.f32.mrf.mxu0
      %v5311 = vadd.f32 0.0, %v5310
      %v5312 = vpop.f32.mrf.mxu0
      %v5313 = vpop.f32.mrf.mxu0
      %v5314 = vadd.f32 0.0, %v5313
      %v5315 = vpop.f32.mrf.mxu0
      %5316 = vmatprep.mubr.bf16.mxu0 0
      %5317 = vmatmul.mubr.bf16.gmra.mxu0 %v5159
      %v5318 = vpop.f32.mrf.mxu0
      %v5319 = vadd.f32 0.0, %v5318
      %v5320 = vpop.f32.mrf.mxu0
      %v5321 = vpop.f32.mrf.mxu0
      %v5322 = vadd.f32 0.0, %v5321
      %v5323 = vpop.f32.mrf.mxu0
      %5324 = vdwg.mxu0
      %v5325 = vadd.f32 %v4867, %v5199
      %v5326 = vadd.f32 %v4870, %v5202
      %v5327 = vadd.f32 %v4875, %v5207
      %v5328 = vadd.f32 %v4878, %v5210
      %v5329 = vadd.f32 %v4883, %v5215
      %v5330 = vadd.f32 %v4886, %v5218
      %v5331 = vadd.f32 %v4891, %v5223
      %v5332 = vadd.f32 %v4894, %v5226
      %v5333 = vadd.f32 %v4899, %v5231
      %v5334 = vadd.f32 %v4902, %v5234
      %v5335 = vadd.f32 %v4907, %v5239
      %v5336 = vadd.f32 %v4910, %v5242
      %v5337 = vadd.f32 %v4915, %v5247
      %v5338 = vadd.f32 %v4918, %v5250
      %v5339 = vadd.f32 %v4923, %v5255
      %v5340 = vadd.f32 %v4926, %v5258
      %v5341 = vadd.f32 %v4931, %v5263
      %v5342 = vadd.f32 %v4934, %v5266
      %v5343 = vadd.f32 %v4939, %v5271
      %v5344 = vadd.f32 %v4942, %v5274
      %v5345 = vadd.f32 %v4947, %v5279
      %v5346 = vadd.f32 %v4950, %v5282
      %v5347 = vadd.f32 %v4955, %v5287
      %v5348 = vadd.f32 %v4958, %v5290
      %v5349 = vadd.f32 %v4963, %v5295
      %v5350 = vadd.f32 %v4966, %v5298
      %v5351 = vadd.f32 %v4971, %v5303
      %v5352 = vadd.f32 %v4974, %v5306
      %v5353 = vadd.f32 %v4979, %v5311
      %v5354 = vadd.f32 %v4982, %v5314
      %v5355 = vadd.f32 %v4987, %v5319
      %v5356 = vadd.f32 %v4990, %v5322
      %v5358 = vlaneseq
      %v5359 = vshrl.u32 %v5358, 7
      %v5360 = vsub.s32 0, %v5359
      %v5361 = vrot.slane %v459, %v5360
      %v5363 = vadd.f32 %v5325, %v5361
      %v5364 = vadd.f32 %v5326, %v5361
      %v5365 = vadd.f32 %v5327, %v5361
      %v5366 = vadd.f32 %v5328, %v5361
      %v5367 = vadd.f32 %v5329, %v5361
      %v5368 = vadd.f32 %v5330, %v5361
      %v5369 = vadd.f32 %v5331, %v5361
      %v5370 = vadd.f32 %v5332, %v5361
      %v5371 = vadd.f32 %v5333, %v5361
      %v5372 = vadd.f32 %v5334, %v5361
      %v5373 = vadd.f32 %v5335, %v5361
      %v5374 = vadd.f32 %v5336, %v5361
      %v5375 = vadd.f32 %v5337, %v5361
      %v5376 = vadd.f32 %v5338, %v5361
      %v5377 = vadd.f32 %v5339, %v5361
      %v5378 = vadd.f32 %v5340, %v5361
      %v5379 = vadd.f32 %v5341, %v5361
      %v5380 = vadd.f32 %v5342, %v5361
      %v5381 = vadd.f32 %v5343, %v5361
      %v5382 = vadd.f32 %v5344, %v5361
      %v5383 = vadd.f32 %v5345, %v5361
      %v5384 = vadd.f32 %v5346, %v5361
      %v5385 = vadd.f32 %v5347, %v5361
      %v5386 = vadd.f32 %v5348, %v5361
      %v5387 = vadd.f32 %v5349, %v5361
      %v5388 = vadd.f32 %v5350, %v5361
      %v5389 = vadd.f32 %v5351, %v5361
      %v5390 = vadd.f32 %v5352, %v5361
      %v5391 = vadd.f32 %v5353, %v5361
      %v5392 = vadd.f32 %v5354, %v5361
      %v5393 = vadd.f32 %v5355, %v5361
      %v5394 = vadd.f32 %v5356, %v5361
      %5395 = vst.msk [vmem:[#allocation3] sm:$0xff] %vm2977, %v5363
      %5396 = vst.msk [vmem:[#allocation3 + $0x8] sm:$0xff] %vm2977, %v5364
      %5397 = vst.msk [vmem:[#allocation3 + $0x10] sm:$0xff] %vm2977, %v5365
      %5398 = vst.msk [vmem:[#allocation3 + $0x18] sm:$0xff] %vm2977, %v5366
      %5399 = vst.msk [vmem:[#allocation3 + $0x20] sm:$0xff] %vm2977, %v5367
      %5400 = vst.msk [vmem:[#allocation3 + $0x28] sm:$0xff] %vm2977, %v5368
      %5401 = vst.msk [vmem:[#allocation3 + $0x30] sm:$0xff] %vm2977, %v5369
      %5402 = vst.msk [vmem:[#allocation3 + $0x38] sm:$0xff] %vm2977, %v5370
      %5403 = vst.msk [vmem:[#allocation3 + $0x40] sm:$0xff] %vm2977, %v5371
      %5404 = vst.msk [vmem:[#allocation3 + $0x48] sm:$0xff] %vm2977, %v5372
      %5405 = vst.msk [vmem:[#allocation3 + $0x50] sm:$0xff] %vm2977, %v5373
      %5406 = vst.msk [vmem:[#allocation3 + $0x58] sm:$0xff] %vm2977, %v5374
      %5407 = vst.msk [vmem:[#allocation3 + $0x60] sm:$0xff] %vm2977, %v5375
      %5408 = vst.msk [vmem:[#allocation3 + $0x68] sm:$0xff] %vm2977, %v5376
      %5409 = vst.msk [vmem:[#allocation3 + $0x70] sm:$0xff] %vm2977, %v5377
      %5410 = vst.msk [vmem:[#allocation3 + $0x78] sm:$0xff] %vm2977, %v5378
      %5411 = vst.msk [vmem:[#allocation3 + $0x80] sm:$0xff] %vm2977, %v5379
      %5412 = vst.msk [vmem:[#allocation3 + $0x88] sm:$0xff] %vm2977, %v5380
      %5413 = vst.msk [vmem:[#allocation3 + $0x90] sm:$0xff] %vm2977, %v5381
      %5414 = vst.msk [vmem:[#allocation3 + $0x98] sm:$0xff] %vm2977, %v5382
      %5415 = vst.msk [vmem:[#allocation3 + $0xa0] sm:$0xff] %vm2977, %v5383
      %5416 = vst.msk [vmem:[#allocation3 + $0xa8] sm:$0xff] %vm2977, %v5384
      %5417 = vst.msk [vmem:[#allocation3 + $0xb0] sm:$0xff] %vm2977, %v5385
      %5418 = vst.msk [vmem:[#allocation3 + $0xb8] sm:$0xff] %vm2977, %v5386
      %5419 = vst.msk [vmem:[#allocation3 + $0xc0] sm:$0xff] %vm2977, %v5387
      %5420 = vst.msk [vmem:[#allocation3 + $0xc8] sm:$0xff] %vm2977, %v5388
      %5421 = vst.msk [vmem:[#allocation3 + $0xd0] sm:$0xff] %vm2977, %v5389
      %5422 = vst.msk [vmem:[#allocation3 + $0xd8] sm:$0xff] %vm2977, %v5390
      %5423 = vst.msk [vmem:[#allocation3 + $0xe0] sm:$0xff] %vm2977, %v5391
      %5424 = vst.msk [vmem:[#allocation3 + $0xe8] sm:$0xff] %vm2977, %v5392
      %5425 = vst.msk [vmem:[#allocation3 + $0xf0] sm:$0xff] %vm2977, %v5393
      %5426 = vst.msk [vmem:[#allocation3 + $0xf8] sm:$0xff] %vm2977, %v5394
      %v5427 = vld [vmem:[#allocation3] sm:$0xff]
      %v5428 = vld [vmem:[#allocation3 + $0x8] sm:$0xff]
      %v5429 = vld [vmem:[#allocation3 + $0x10] sm:$0xff]
      %v5430 = vld [vmem:[#allocation3 + $0x18] sm:$0xff]
      %v5431 = vld [vmem:[#allocation3 + $0x20] sm:$0xff]
      %v5432 = vld [vmem:[#allocation3 + $0x28] sm:$0xff]
      %v5433 = vld [vmem:[#allocation3 + $0x30] sm:$0xff]
      %v5434 = vld [vmem:[#allocation3 + $0x38] sm:$0xff]
      %v5435 = vld [vmem:[#allocation3 + $0x40] sm:$0xff]
      %v5436 = vld [vmem:[#allocation3 + $0x48] sm:$0xff]
      %v5437 = vld [vmem:[#allocation3 + $0x50] sm:$0xff]
      %v5438 = vld [vmem:[#allocation3 + $0x58] sm:$0xff]
      %v5439 = vld [vmem:[#allocation3 + $0x60] sm:$0xff]
      %v5440 = vld [vmem:[#allocation3 + $0x68] sm:$0xff]
      %v5441 = vld [vmem:[#allocation3 + $0x70] sm:$0xff]
      %v5442 = vld [vmem:[#allocation3 + $0x78] sm:$0xff]
      %v5443 = vld [vmem:[#allocation3 + $0x80] sm:$0xff]
      %v5444 = vld [vmem:[#allocation3 + $0x88] sm:$0xff]
      %v5445 = vld [vmem:[#allocation3 + $0x90] sm:$0xff]
      %v5446 = vld [vmem:[#allocation3 + $0x98] sm:$0xff]
      %v5447 = vld [vmem:[#allocation3 + $0xa0] sm:$0xff]
      %v5448 = vld [vmem:[#allocation3 + $0xa8] sm:$0xff]
      %v5449 = vld [vmem:[#allocation3 + $0xb0] sm:$0xff]
      %v5450 = vld [vmem:[#allocation3 + $0xb8] sm:$0xff]
      %v5451 = vld [vmem:[#allocation3 + $0xc0] sm:$0xff]
      %v5452 = vld [vmem:[#allocation3 + $0xc8] sm:$0xff]
      %v5453 = vld [vmem:[#allocation3 + $0xd0] sm:$0xff]
      %v5454 = vld [vmem:[#allocation3 + $0xd8] sm:$0xff]
      %v5455 = vld [vmem:[#allocation3 + $0xe0] sm:$0xff]
      %v5456 = vld [vmem:[#allocation3 + $0xe8] sm:$0xff]
      %v5457 = vld [vmem:[#allocation3 + $0xf0] sm:$0xff]
      %v5458 = vld [vmem:[#allocation3 + $0xf8] sm:$0xff]
      %v5459 = vld [vmem:[%s425] sm:$0xff]
      %v5460 = vld [vmem:[%s425 + $0x8] sm:$0xff]
      %v5461 = vld [vmem:[%s425 + $0x10] sm:$0xff]
      %v5462 = vld [vmem:[%s425 + $0x18] sm:$0xff]
      %v5463 = vld [vmem:[%s425 + $0x20] sm:$0xff]
      %v5464 = vld [vmem:[%s425 + $0x28] sm:$0xff]
      %v5465 = vld [vmem:[%s425 + $0x30] sm:$0xff]
      %v5466 = vld [vmem:[%s425 + $0x38] sm:$0xff]
      %v5467 = vld [vmem:[%s425 + $0x40] sm:$0xff]
      %v5468 = vld [vmem:[%s425 + $0x48] sm:$0xff]
      %v5469 = vld [vmem:[%s425 + $0x50] sm:$0xff]
      %v5470 = vld [vmem:[%s425 + $0x58] sm:$0xff]
      %v5471 = vld [vmem:[%s425 + $0x60] sm:$0xff]
      %v5472 = vld [vmem:[%s425 + $0x68] sm:$0xff]
      %v5473 = vld [vmem:[%s425 + $0x70] sm:$0xff]
      %v5474 = vld [vmem:[%s425 + $0x78] sm:$0xff]
      %v5475 = vld [vmem:[%s425 + $0x80] sm:$0xff]
      %v5476 = vld [vmem:[%s425 + $0x88] sm:$0xff]
      %v5477 = vld [vmem:[%s425 + $0x90] sm:$0xff]
      %v5478 = vld [vmem:[%s425 + $0x98] sm:$0xff]
      %v5479 = vld [vmem:[%s425 + $0xa0] sm:$0xff]
      %v5480 = vld [vmem:[%s425 + $0xa8] sm:$0xff]
      %v5481 = vld [vmem:[%s425 + $0xb0] sm:$0xff]
      %v5482 = vld [vmem:[%s425 + $0xb8] sm:$0xff]
      %v5483 = vld [vmem:[%s425 + $0xc0] sm:$0xff]
      %v5484 = vld [vmem:[%s425 + $0xc8] sm:$0xff]
      %v5485 = vld [vmem:[%s425 + $0xd0] sm:$0xff]
      %v5486 = vld [vmem:[%s425 + $0xd8] sm:$0xff]
      %v5487 = vld [vmem:[%s425 + $0xe0] sm:$0xff]
      %v5488 = vld [vmem:[%s425 + $0xe8] sm:$0xff]
      %v5489 = vld [vmem:[%s425 + $0xf0] sm:$0xff]
      %v5490 = vld [vmem:[%s425 + $0xf8] sm:$0xff]
      %v5491 = vadd.f32 %v5427, %v5459
      %v5492 = vadd.f32 %v5428, %v5460
      %v5493 = vadd.f32 %v5429, %v5461
      %v5494 = vadd.f32 %v5430, %v5462
      %v5495 = vadd.f32 %v5431, %v5463
      %v5496 = vadd.f32 %v5432, %v5464
      %v5497 = vadd.f32 %v5433, %v5465
      %v5498 = vadd.f32 %v5434, %v5466
      %v5499 = vadd.f32 %v5435, %v5467
      %v5500 = vadd.f32 %v5436, %v5468
      %v5501 = vadd.f32 %v5437, %v5469
      %v5502 = vadd.f32 %v5438, %v5470
      %v5503 = vadd.f32 %v5439, %v5471
      %v5504 = vadd.f32 %v5440, %v5472
      %v5505 = vadd.f32 %v5441, %v5473
      %v5506 = vadd.f32 %v5442, %v5474
      %v5507 = vadd.f32 %v5443, %v5475
      %v5508 = vadd.f32 %v5444, %v5476
      %v5509 = vadd.f32 %v5445, %v5477
      %v5510 = vadd.f32 %v5446, %v5478
      %v5511 = vadd.f32 %v5447, %v5479
      %v5512 = vadd.f32 %v5448, %v5480
      %v5513 = vadd.f32 %v5449, %v5481
      %v5514 = vadd.f32 %v5450, %v5482
      %v5515 = vadd.f32 %v5451, %v5483
      %v5516 = vadd.f32 %v5452, %v5484
      %v5517 = vadd.f32 %v5453, %v5485
      %v5518 = vadd.f32 %v5454, %v5486
      %v5519 = vadd.f32 %v5455, %v5487
      %v5520 = vadd.f32 %v5456, %v5488
      %v5521 = vadd.f32 %v5457, %v5489
      %v5522 = vadd.f32 %v5458, %v5490
      %5523 = vst.msk [vmem:[%s455] sm:$0xff] %vm2977, %v5491
      %5524 = vst.msk [vmem:[%s455 + $0x8] sm:$0xff] %vm2977, %v5492
      %5525 = vst.msk [vmem:[%s455 + $0x10] sm:$0xff] %vm2977, %v5493
      %5526 = vst.msk [vmem:[%s455 + $0x18] sm:$0xff] %vm2977, %v5494
      %5527 = vst.msk [vmem:[%s455 + $0x20] sm:$0xff] %vm2977, %v5495
      %5528 = vst.msk [vmem:[%s455 + $0x28] sm:$0xff] %vm2977, %v5496
      %5529 = vst.msk [vmem:[%s455 + $0x30] sm:$0xff] %vm2977, %v5497
      %5530 = vst.msk [vmem:[%s455 + $0x38] sm:$0xff] %vm2977, %v5498
      %5531 = vst.msk [vmem:[%s455 + $0x40] sm:$0xff] %vm2977, %v5499
      %5532 = vst.msk [vmem:[%s455 + $0x48] sm:$0xff] %vm2977, %v5500
      %5533 = vst.msk [vmem:[%s455 + $0x50] sm:$0xff] %vm2977, %v5501
      %5534 = vst.msk [vmem:[%s455 + $0x58] sm:$0xff] %vm2977, %v5502
      %5535 = vst.msk [vmem:[%s455 + $0x60] sm:$0xff] %vm2977, %v5503
      %5536 = vst.msk [vmem:[%s455 + $0x68] sm:$0xff] %vm2977, %v5504
      %5537 = vst.msk [vmem:[%s455 + $0x70] sm:$0xff] %vm2977, %v5505
      %5538 = vst.msk [vmem:[%s455 + $0x78] sm:$0xff] %vm2977, %v5506
      %5539 = vst.msk [vmem:[%s455 + $0x80] sm:$0xff] %vm2977, %v5507
      %5540 = vst.msk [vmem:[%s455 + $0x88] sm:$0xff] %vm2977, %v5508
      %5541 = vst.msk [vmem:[%s455 + $0x90] sm:$0xff] %vm2977, %v5509
      %5542 = vst.msk [vmem:[%s455 + $0x98] sm:$0xff] %vm2977, %v5510
      %5543 = vst.msk [vmem:[%s455 + $0xa0] sm:$0xff] %vm2977, %v5511
      %5544 = vst.msk [vmem:[%s455 + $0xa8] sm:$0xff] %vm2977, %v5512
      %5545 = vst.msk [vmem:[%s455 + $0xb0] sm:$0xff] %vm2977, %v5513
      %5546 = vst.msk [vmem:[%s455 + $0xb8] sm:$0xff] %vm2977, %v5514
      %5547 = vst.msk [vmem:[%s455 + $0xc0] sm:$0xff] %vm2977, %v5515
      %5548 = vst.msk [vmem:[%s455 + $0xc8] sm:$0xff] %vm2977, %v5516
      %5549 = vst.msk [vmem:[%s455 + $0xd0] sm:$0xff] %vm2977, %v5517
      %5550 = vst.msk [vmem:[%s455 + $0xd8] sm:$0xff] %vm2977, %v5518
      %5551 = vst.msk [vmem:[%s455 + $0xe0] sm:$0xff] %vm2977, %v5519
      %5552 = vst.msk [vmem:[%s455 + $0xe8] sm:$0xff] %vm2977, %v5520
      %5553 = vst.msk [vmem:[%s455 + $0xf0] sm:$0xff] %vm2977, %v5521
      %5554 = vst.msk [vmem:[%s455 + $0xf8] sm:$0xff] %vm2977, %v5522
      %s5555 = smul.u32 16, %s23
      %p5556 = scmp.lt.s32.totalorder %s22, 1
      %s5557 = scalar_select %p5556, %s22, 1
      %p5558 = scmp.lt.s32.totalorder %s5555, 15
      %s5559 = scalar_select %p5558, %s5555, 15
      %s5560 = smul.addr %s5559, 2
      %s5561 = smul.addr %s5557, 32
      %s5562 = sadd.s32 %s5560, %s5561
      %s5563 = smul.addr %s5562, 8
      %s5564 = scalar_lea.vmem %s7, %s5563
      // Predicated region
      $region49: #{residual_conv_unit.1} parent=47 // pred_check
        %p5565 = pneg %p234
      $region50: #{residual_conv_unit.1} parent=47 // pred_check_branch
        %5567 = sbr.rel (%p5565) target = $region52
      $region51: #{residual_conv_unit.1} parent=47 // pred_region
        %s5568 = smul.u32 16, %s23
      $region52: #{residual_conv_unit.1} parent=47 // pred_fallthru
        _
    $region48: #{residual_conv_unit.1} parent=5 // pred_fallthru
      _
    %p5569 = scmp.le.s32.totalorder 2, %s13
    // Predicated region
    $region53: #{residual_conv_unit.1} parent=5 // pred_check
      %p5570 = pneg %p5569
    $region54: #{residual_conv_unit.1} parent=5 // pred_check_branch
      %5572 = sbr.rel (%p5570) target = $region56
    $region55: #{residual_conv_unit.1} parent=5 // pred_region
      %s5573 = ssub.s32 %s13, 2
      // Predicated region
      $region57: #{residual_conv_unit.1} parent=55 // pred_check
        %p5574 = pneg %p240
      $region58: #{residual_conv_unit.1} parent=55 // pred_check_branch
        %5576 = sbr.rel (%p5574) target = $region60
      $region59: #{residual_conv_unit.1} parent=55 // pred_region
        %s5577 = smul.u32 16, %s25
        %p5578 = scmp.lt.s32.totalorder %s24, 1
        %s5579 = scalar_select %p5578, %s24, 1
        %p5580 = scmp.lt.s32.totalorder %s5577, 15
        %s5581 = scalar_select %p5580, %s5577, 15
        %s5582 = smul.addr %s5581, 2
        %s5583 = smul.addr %s5579, 32
        %s5584 = sadd.s32 %s5582, %s5583
        %s5585 = smul.addr %s5584, 8
        %s5586 = scalar_lea.vmem %s7, %s5585
      $region60: #{residual_conv_unit.1} parent=55 // pred_fallthru
        _
    $region56: #{residual_conv_unit.1} parent=5 // pred_fallthru
      _
  $region6: #{residual_conv_unit.1} parent=0 // loop_footer
    %s17 = sadd.s32 1, %s13
  $region7: #{residual_conv_unit.1} parent=0 // loop_footer_branch
    %12 = sbr.rel target = $region3
  $region8: #{residual_conv_unit.1} parent=0 // loop_exit
    _

</llo_original>
